<compile_context>
chip_gen: v6e
topology: v6e:2x2x1
jax: 0.10.0
libtpu: 0.0.40
codegen_flags: <defaults>
</compile_context>

<pallas_src>
import math
import functools

import jax
import jax.numpy as jnp
from jax.experimental import pallas as pl
from jax.experimental.pallas import tpu as pltpu


def _round_up(x, m):
    return ((x + m - 1) // m) * m


# ----------------------------------------------------------------------------
# Fused conv kernel: per (batch, output-row-tile), accumulate kh*kw tap matmuls.
# ----------------------------------------------------------------------------
def _fused_conv_kernel(x_ref, w_ref, b_ref, o_ref, acc_ref, *, taps, tm, ow, cg):
    # x_ref : (Hq, Wq, Cg)        padded (polyphase) NHWC image, resident per batch
    # w_ref : (kh*kw, Cg, Nc)     per-tap weight slabs (zero outside the tap's group)
    # b_ref : (1, Nc)             bias (zero-padded to Nc)
    # o_ref : (tm*ow, Nc)         lane-dense output tile (Nc multiple of 128)
    # acc_ref: (tm*ow, Nc) f32    VMEM scratch accumulator
    row0 = pl.program_id(1) * tm  # first output row of this tile

    for tap_idx, (qi, qj) in enumerate(taps):
        # Contiguous slab: tm rows starting at row0+qi, ow cols starting at qj.
        patch = x_ref[pl.ds(row0 + qi, tm), pl.ds(qj, ow), :]        # (tm, ow, cg)
        contrib = jnp.dot(patch.reshape(tm * ow, cg), w_ref[tap_idx],
                          preferred_element_type=jnp.float32)        # (tm*ow, Nc)
        if tap_idx == 0:
            acc_ref[...] = contrib
        else:
            acc_ref[...] += contrib

    o_ref[...] = acc_ref[...] + b_ref[...]   # broadcast bias over rows


# ----------------------------------------------------------------------------
# Forward pass (matches the PyTorch MyConvolution semantics; returns NCHW f32)
# ----------------------------------------------------------------------------
@functools.partial(jax.jit,
                   static_argnames=("kernel_size", "stride", "padding", "row_tile"))
def my_convolution_forward(x, weights, biases, *, kernel_size, stride, padding,
                           row_tile=None):
    # x: (B, Cin, H, W), weights: (Cout, Cin, kh, kw), biases: (Cout,)
    B, Cin, H, W = x.shape
    Cout = weights.shape[0]
    kh, kw = kernel_size
    s = int(stride)

    OH = (H - kh + 2 * padding) // s + 1
    OW = (W - kw + 2 * padding) // s + 1

    # --- NCHW -> NHWC + spatial zero padding (pure layout, done once in XLA) ---
    xp = jnp.pad(jnp.transpose(x.astype(jnp.float32), (0, 2, 3, 1)),
                 ((0, 0), (padding, padding), (padding, padding), (0, 0)))
    Hp, Wp = H + 2 * padding, W + 2 * padding

    # --- polyphase (space-to-depth by stride): makes all in-kernel slices contiguous ---
    if s > 1:
        Hq0, Wq0 = _round_up(Hp, s) // s, _round_up(Wp, s) // s
        xp = jnp.pad(xp, ((0, 0), (0, Hq0 * s - Hp), (0, Wq0 * s - Wp), (0, 0)))
        xq = xp.reshape(B, Hq0, s, Wq0, s, Cin)
        xq = jnp.transpose(xq, (0, 1, 3, 2, 4, 5)).reshape(B, Hq0, Wq0, s * s * Cin)
    else:
        Hq0, Wq0 = Hp, Wp
        xq = xp
    Cg = s * s * Cin                      # channels per polyphase pixel
    qi_max, qj_max = (kh - 1) // s, (kw - 1) // s

    # --- tiling ---------------------------------------------------------------
    OW_pad = _round_up(OW, 8)             # keeps in-kernel reshape a sublane-tile no-op
    if row_tile is None:
        tm = max(1, min(OH, 2048 // OW_pad))   # ~2K output pixels (=> ~1 MiB f32 acc)
    else:
        tm = max(1, min(OH, int(row_tile)))
    n_t = -(-OH // tm)                    # cdiv
    OH_pad = n_t * tm
    tmrows = tm * OW_pad

    # pad the (polyphase) image so the last row tile / padded cols read only zeros
    Hq_req, Wq_req = OH_pad + qi_max, OW_pad + qj_max
    xq = jnp.pad(xq, ((0, 0),
                      (0, max(0, Hq_req - Hq0)),
                      (0, max(0, Wq_req - Wq0)),
                      (0, 0)))
    Hq_a, Wq_a = max(Hq0, Hq_req), max(Wq0, Wq_req)

    # --- weights / bias: per-tap slabs, lane-dense output channels ------------
    Nc = _round_up(Cout, 128)             # lane-dense stores (pad cols sliced off below)
    w_t = jnp.transpose(weights.astype(jnp.float32), (2, 3, 1, 0))  # (kh, kw, Cin, Cout)
    w_taps = jnp.zeros((kh * kw, Cg, Nc), jnp.float32)
    taps = []
    for i in range(kh):
        for j in range(kw):
            qi, ri = divmod(i, s)
            qj, rj = divmod(j, s)
            rg = ri * s + rj              # polyphase channel group of this tap
            w_taps = w_taps.at[i * kw + j, rg * Cin:(rg + 1) * Cin, :Cout].set(w_t[i, j])
            taps.append((qi, qj))
    taps = tuple(taps)
    # NOTE: Cin stays un-padded on the lane dim on purpose — padding it would inflate
    # input HBM traffic; the MXU under-utilization at tiny Cin is not the bottleneck.
    b_pad = jnp.zeros((1, Nc), jnp.float32).at[0, :Cout].set(biases.astype(jnp.float32))

    # --- explicit VMEM budget (double-buffered in/out blocks + scratch) -------
    est_bytes = (2 * (Hq_a * Wq_a * Cg + kh * kw * Cg * Nc + Nc + tmrows * Nc)
                 + tmrows * Nc) * 4
    vmem_limit = int(min(48 * 2**20, max(2 * est_bytes, 16 * 2**20)))

    kern = functools.partial(_fused_conv_kernel, taps=taps, tm=tm, ow=OW_pad, cg=Cg)

    y = pl.pallas_call(
        kern,
        out_shape=jax.ShapeDtypeStruct((B * n_t * tmrows, Nc), jnp.float32),
        grid=(B, n_t),
        in_specs=[
            # whole (polyphase-)padded image per batch; block index changes only with b,
            # so the pipeline re-DMAs it once per batch and keeps it resident across t.
            pl.BlockSpec((None, Hq_a, Wq_a, Cg), lambda b, t: (b, 0, 0, 0)),
            pl.BlockSpec((kh * kw, Cg, Nc), lambda b, t: (0, 0, 0)),
            pl.BlockSpec((1, Nc), lambda b, t: (0, 0)),
        ],
        out_specs=pl.BlockSpec((tmrows, Nc), lambda b, t: (b * n_t + t, 0)),
        scratch_shapes=[pltpu.VMEM((tmrows, Nc), jnp.float32)],
        compiler_params=pltpu.CompilerParams(
            dimension_semantics=("parallel", "arbitrary"),
            vmem_limit_bytes=vmem_limit,
        ),
    )(xq, w_taps, b_pad)

    # drop row/col/channel padding; module contract is NCHW (one extra layout pass)
    y = y.reshape(B, OH_pad, OW_pad, Nc)[:, :OH, :OW, :Cout]
    return jnp.transpose(y, (0, 3, 1, 2))


# ----------------------------------------------------------------------------
# Deterministic parameter init (mirrors MyConvolution.__init__)
# ----------------------------------------------------------------------------
def init_params(key, in_channels, out_channels, kernel_size):
    kh, kw = kernel_size
    kw_key, kb_key = jax.random.split(key)
    weights = jax.random.normal(
        kw_key, (out_channels, in_channels, kh, kw), dtype=jnp.float32)
    bound = 1.0 / math.sqrt(kh * kw)
    biases = jax.random.uniform(
        kb_key, (out_channels,), minval=-bound, maxval=bound, dtype=jnp.float32)
    return weights, biases


if __name__ == "__main__":
    key = jax.random.PRNGKey(0)
    xkey, pkey = jax.random.split(key)

    B, Cin, H, W = 2, 4, 16, 16
    Cout = 8
    ks = (3, 3)

    x = jax.random.normal(xkey, (B, Cin, H, W), dtype=jnp.float32)
    weights, biases = init_params(pkey, Cin, Cout, ks)

    def reference(x, w, b, stride, padding):
        return jax.lax.conv_general_dilated(
            x, w, window_strides=(stride, stride),
            padding=[(padding, padding), (padding, padding)],
            dimension_numbers=("NCHW", "OIHW", "NCHW"),
        ) + b[None, :, None, None]

    configs = [
        dict(stride=1, padding=1, row_tile=None),  # primary config
        dict(stride=1, padding=1, row_tile=4),     # multi row-tile grid path
        dict(stride=2, padding=1, row_tile=None),  # polyphase stride path
    ]
    for cfg in configs:
        out = my_convolution_forward(
            x, weights, biases, kernel_size=ks,
            stride=cfg["stride"], padding=cfg["padding"], row_tile=cfg["row_tile"])
        out = jax.block_until_ready(out)
        ref = reference(x, weights, biases, cfg["stride"], cfg["padding"])
        oh = (H - ks[0] + 2 * cfg["padding"]) // cfg["stride"] + 1
        ow = (W - ks[1] + 2 * cfg["padding"]) // cfg["stride"] + 1
        assert out.shape == (B, Cout, oh, ow), out.shape
        assert jnp.allclose(out, ref, atol=1e-4, rtol=1e-4), cfg

    print("KERNEL_OK")
</pallas_src>

<mosaic_0001>
module attributes {stable_mosaic.version = 11 : i64} {
  func.func @_fused_conv_kernel(%arg0: i32, %arg1: i32, %arg2: memref<1x18x18x4xf32, #tpu.memory_space<vmem>>, %arg3: memref<9x4x128xf32, #tpu.memory_space<vmem>>, %arg4: memref<1x128xf32, #tpu.memory_space<vmem>>, %arg5: memref<256x128xf32, #tpu.memory_space<vmem>>, %arg6: memref<256x128xf32, #tpu.memory_space<vmem>>) attributes {dimension_semantics = [#tpu.dimension_semantics<parallel>, #tpu.dimension_semantics<arbitrary>], iteration_bounds = array<i64: 2, 1>, scalar_prefetch = 0 : i64, scratch_operands = 1 : i64, tpu.core_type = #tpu.core_type<tc>, window_params = [{transform_indices = @transform_0, window_bounds = array<i64: 1, 18, 18, 4>}, {pipeline_mode = #tpu.pipeline_mode<synchronous>, transform_indices = @transform_1, window_bounds = array<i64: 9, 4, 128>}, {pipeline_mode = #tpu.pipeline_mode<synchronous>, transform_indices = @transform_2, window_bounds = array<i64: 1, 128>}, {transform_indices = @transform_3, window_bounds = array<i64: 256, 128>}]} {
    %c16_i32 = arith.constant 16 : i32
    %0 = arith.muli %arg1, %c16_i32 : i32
    %c0_i32 = arith.constant 0 : i32
    %1 = arith.addi %0, %c0_i32 : i32
    %c0 = arith.constant 0 : index
    %2 = arith.index_cast %1 : i32 to index
    %c0_0 = arith.constant 0 : index
    %c0_1 = arith.constant 0 : index
    %3 = vector.load %arg2[%c0, %2, %c0_0, %c0_1] : memref<1x18x18x4xf32, #tpu.memory_space<vmem>>, vector<1x16x16x4xf32>
    %4 = vector.shape_cast %3 : vector<1x16x16x4xf32> to vector<16x16x4xf32>
    %5 = vector.shape_cast %4 : vector<16x16x4xf32> to vector<256x4xf32>
    %c0_2 = arith.constant 0 : index
    %c0_3 = arith.constant 0 : index
    %c0_4 = arith.constant 0 : index
    %6 = vector.load %arg3[%c0_2, %c0_3, %c0_4] : memref<9x4x128xf32, #tpu.memory_space<vmem>>, vector<1x4x128xf32>
    %7 = vector.shape_cast %6 : vector<1x4x128xf32> to vector<4x128xf32>
    %cst = arith.constant dense<0.000000e+00> : vector<256x128xf32>
    %8 = tpu.matmul %5, %7, %cst {dimension_numbers = #tpu.dot_dimension_numbers<[1], [0], [0], [1], [0, 0, 1, 1], [], []>} : vector<256x4xf32>, vector<4x128xf32>, vector<256x128xf32> -> vector<256x128xf32>
    %c0_5 = arith.constant 0 : index
    %c0_6 = arith.constant 0 : index
    %9 = vector.load %arg6[%c0_5, %c0_6] : memref<256x128xf32, #tpu.memory_space<vmem>>, vector<256x128xf32>
    tpu.vector_store %arg6[%c0_5, %c0_6], %8 {strides = array<i32>} : memref<256x128xf32, #tpu.memory_space<vmem>>, vector<256x128xf32>,
    %c0_i32_7 = arith.constant 0 : i32
    %10 = arith.addi %0, %c0_i32_7 : i32
    %c0_8 = arith.constant 0 : index
    %11 = arith.index_cast %10 : i32 to index
    %c1 = arith.constant 1 : index
    %c0_9 = arith.constant 0 : index
    %12 = vector.load %arg2[%c0_8, %11, %c1, %c0_9] : memref<1x18x18x4xf32, #tpu.memory_space<vmem>>, vector<1x16x16x4xf32>
    %13 = vector.shape_cast %12 : vector<1x16x16x4xf32> to vector<16x16x4xf32>
    %14 = vector.shape_cast %13 : vector<16x16x4xf32> to vector<256x4xf32>
    %c1_10 = arith.constant 1 : index
    %c0_11 = arith.constant 0 : index
    %c0_12 = arith.constant 0 : index
    %15 = vector.load %arg3[%c1_10, %c0_11, %c0_12] : memref<9x4x128xf32, #tpu.memory_space<vmem>>, vector<1x4x128xf32>
    %16 = vector.shape_cast %15 : vector<1x4x128xf32> to vector<4x128xf32>
    %cst_13 = arith.constant dense<0.000000e+00> : vector<256x128xf32>
    %17 = tpu.matmul %14, %16, %cst_13 {dimension_numbers = #tpu.dot_dimension_numbers<[1], [0], [0], [1], [0, 0, 1, 1], [], []>} : vector<256x4xf32>, vector<4x128xf32>, vector<256x128xf32> -> vector<256x128xf32>
    %c0_14 = arith.constant 0 : index
    %c0_15 = arith.constant 0 : index
    %18 = vector.load %arg6[%c0_14, %c0_15] : memref<256x128xf32, #tpu.memory_space<vmem>>, vector<256x128xf32>
    %19 = arith.addf %18, %17 : vector<256x128xf32>
    %c0_16 = arith.constant 0 : index
    %c0_17 = arith.constant 0 : index
    %20 = vector.load %arg6[%c0_16, %c0_17] : memref<256x128xf32, #tpu.memory_space<vmem>>, vector<256x128xf32>
    tpu.vector_store %arg6[%c0_16, %c0_17], %19 {strides = array<i32>} : memref<256x128xf32, #tpu.memory_space<vmem>>, vector<256x128xf32>,
    %c0_i32_18 = arith.constant 0 : i32
    %21 = arith.addi %0, %c0_i32_18 : i32
    %c0_19 = arith.constant 0 : index
    %22 = arith.index_cast %21 : i32 to index
    %c2 = arith.constant 2 : index
    %c0_20 = arith.constant 0 : index
    %23 = vector.load %arg2[%c0_19, %22, %c2, %c0_20] : memref<1x18x18x4xf32, #tpu.memory_space<vmem>>, vector<1x16x16x4xf32>
    %24 = vector.shape_cast %23 : vector<1x16x16x4xf32> to vector<16x16x4xf32>
    %25 = vector.shape_cast %24 : vector<16x16x4xf32> to vector<256x4xf32>
    %c2_21 = arith.constant 2 : index
    %c0_22 = arith.constant 0 : index
    %c0_23 = arith.constant 0 : index
    %26 = vector.load %arg3[%c2_21, %c0_22, %c0_23] : memref<9x4x128xf32, #tpu.memory_space<vmem>>, vector<1x4x128xf32>
    %27 = vector.shape_cast %26 : vector<1x4x128xf32> to vector<4x128xf32>
    %cst_24 = arith.constant dense<0.000000e+00> : vector<256x128xf32>
    %28 = tpu.matmul %25, %27, %cst_24 {dimension_numbers = #tpu.dot_dimension_numbers<[1], [0], [0], [1], [0, 0, 1, 1], [], []>} : vector<256x4xf32>, vector<4x128xf32>, vector<256x128xf32> -> vector<256x128xf32>
    %c0_25 = arith.constant 0 : index
    %c0_26 = arith.constant 0 : index
    %29 = vector.load %arg6[%c0_25, %c0_26] : memref<256x128xf32, #tpu.memory_space<vmem>>, vector<256x128xf32>
    %30 = arith.addf %29, %28 : vector<256x128xf32>
    %c0_27 = arith.constant 0 : index
    %c0_28 = arith.constant 0 : index
    %31 = vector.load %arg6[%c0_27, %c0_28] : memref<256x128xf32, #tpu.memory_space<vmem>>, vector<256x128xf32>
    tpu.vector_store %arg6[%c0_27, %c0_28], %30 {strides = array<i32>} : memref<256x128xf32, #tpu.memory_space<vmem>>, vector<256x128xf32>,
    %c1_i32 = arith.constant 1 : i32
    %32 = arith.addi %0, %c1_i32 : i32
    %c0_29 = arith.constant 0 : index
    %33 = arith.index_cast %32 : i32 to index
    %c0_30 = arith.constant 0 : index
    %c0_31 = arith.constant 0 : index
    %34 = vector.load %arg2[%c0_29, %33, %c0_30, %c0_31] : memref<1x18x18x4xf32, #tpu.memory_space<vmem>>, vector<1x16x16x4xf32>
    %35 = vector.shape_cast %34 : vector<1x16x16x4xf32> to vector<16x16x4xf32>
    %36 = vector.shape_cast %35 : vector<16x16x4xf32> to vector<256x4xf32>
    %c3 = arith.constant 3 : index
    %c0_32 = arith.constant 0 : index
    %c0_33 = arith.constant 0 : index
    %37 = vector.load %arg3[%c3, %c0_32, %c0_33] : memref<9x4x128xf32, #tpu.memory_space<vmem>>, vector<1x4x128xf32>
    %38 = vector.shape_cast %37 : vector<1x4x128xf32> to vector<4x128xf32>
    %cst_34 = arith.constant dense<0.000000e+00> : vector<256x128xf32>
    %39 = tpu.matmul %36, %38, %cst_34 {dimension_numbers = #tpu.dot_dimension_numbers<[1], [0], [0], [1], [0, 0, 1, 1], [], []>} : vector<256x4xf32>, vector<4x128xf32>, vector<256x128xf32> -> vector<256x128xf32>
    %c0_35 = arith.constant 0 : index
    %c0_36 = arith.constant 0 : index
    %40 = vector.load %arg6[%c0_35, %c0_36] : memref<256x128xf32, #tpu.memory_space<vmem>>, vector<256x128xf32>
    %41 = arith.addf %40, %39 : vector<256x128xf32>
    %c0_37 = arith.constant 0 : index
    %c0_38 = arith.constant 0 : index
    %42 = vector.load %arg6[%c0_37, %c0_38] : memref<256x128xf32, #tpu.memory_space<vmem>>, vector<256x128xf32>
    tpu.vector_store %arg6[%c0_37, %c0_38], %41 {strides = array<i32>} : memref<256x128xf32, #tpu.memory_space<vmem>>, vector<256x128xf32>,
    %c1_i32_39 = arith.constant 1 : i32
    %43 = arith.addi %0, %c1_i32_39 : i32
    %c0_40 = arith.constant 0 : index
    %44 = arith.index_cast %43 : i32 to index
    %c1_41 = arith.constant 1 : index
    %c0_42 = arith.constant 0 : index
    %45 = vector.load %arg2[%c0_40, %44, %c1_41, %c0_42] : memref<1x18x18x4xf32, #tpu.memory_space<vmem>>, vector<1x16x16x4xf32>
    %46 = vector.shape_cast %45 : vector<1x16x16x4xf32> to vector<16x16x4xf32>
    %47 = vector.shape_cast %46 : vector<16x16x4xf32> to vector<256x4xf32>
    %c4 = arith.constant 4 : index
    %c0_43 = arith.constant 0 : index
    %c0_44 = arith.constant 0 : index
    %48 = vector.load %arg3[%c4, %c0_43, %c0_44] : memref<9x4x128xf32, #tpu.memory_space<vmem>>, vector<1x4x128xf32>
    %49 = vector.shape_cast %48 : vector<1x4x128xf32> to vector<4x128xf32>
    %cst_45 = arith.constant dense<0.000000e+00> : vector<256x128xf32>
    %50 = tpu.matmul %47, %49, %cst_45 {dimension_numbers = #tpu.dot_dimension_numbers<[1], [0], [0], [1], [0, 0, 1, 1], [], []>} : vector<256x4xf32>, vector<4x128xf32>, vector<256x128xf32> -> vector<256x128xf32>
    %c0_46 = arith.constant 0 : index
    %c0_47 = arith.constant 0 : index
    %51 = vector.load %arg6[%c0_46, %c0_47] : memref<256x128xf32, #tpu.memory_space<vmem>>, vector<256x128xf32>
    %52 = arith.addf %51, %50 : vector<256x128xf32>
    %c0_48 = arith.constant 0 : index
    %c0_49 = arith.constant 0 : index
    %53 = vector.load %arg6[%c0_48, %c0_49] : memref<256x128xf32, #tpu.memory_space<vmem>>, vector<256x128xf32>
    tpu.vector_store %arg6[%c0_48, %c0_49], %52 {strides = array<i32>} : memref<256x128xf32, #tpu.memory_space<vmem>>, vector<256x128xf32>,
    %c1_i32_50 = arith.constant 1 : i32
    %54 = arith.addi %0, %c1_i32_50 : i32
    %c0_51 = arith.constant 0 : index
    %55 = arith.index_cast %54 : i32 to index
    %c2_52 = arith.constant 2 : index
    %c0_53 = arith.constant 0 : index
    %56 = vector.load %arg2[%c0_51, %55, %c2_52, %c0_53] : memref<1x18x18x4xf32, #tpu.memory_space<vmem>>, vector<1x16x16x4xf32>
    %57 = vector.shape_cast %56 : vector<1x16x16x4xf32> to vector<16x16x4xf32>
    %58 = vector.shape_cast %57 : vector<16x16x4xf32> to vector<256x4xf32>
    %c5 = arith.constant 5 : index
    %c0_54 = arith.constant 0 : index
    %c0_55 = arith.constant 0 : index
    %59 = vector.load %arg3[%c5, %c0_54, %c0_55] : memref<9x4x128xf32, #tpu.memory_space<vmem>>, vector<1x4x128xf32>
    %60 = vector.shape_cast %59 : vector<1x4x128xf32> to vector<4x128xf32>
    %cst_56 = arith.constant dense<0.000000e+00> : vector<256x128xf32>
    %61 = tpu.matmul %58, %60, %cst_56 {dimension_numbers = #tpu.dot_dimension_numbers<[1], [0], [0], [1], [0, 0, 1, 1], [], []>} : vector<256x4xf32>, vector<4x128xf32>, vector<256x128xf32> -> vector<256x128xf32>
    %c0_57 = arith.constant 0 : index
    %c0_58 = arith.constant 0 : index
    %62 = vector.load %arg6[%c0_57, %c0_58] : memref<256x128xf32, #tpu.memory_space<vmem>>, vector<256x128xf32>
    %63 = arith.addf %62, %61 : vector<256x128xf32>
    %c0_59 = arith.constant 0 : index
    %c0_60 = arith.constant 0 : index
    %64 = vector.load %arg6[%c0_59, %c0_60] : memref<256x128xf32, #tpu.memory_space<vmem>>, vector<256x128xf32>
    tpu.vector_store %arg6[%c0_59, %c0_60], %63 {strides = array<i32>} : memref<256x128xf32, #tpu.memory_space<vmem>>, vector<256x128xf32>,
    %c2_i32 = arith.constant 2 : i32
    %65 = arith.addi %0, %c2_i32 : i32
    %c0_61 = arith.constant 0 : index
    %66 = arith.index_cast %65 : i32 to index
    %c0_62 = arith.constant 0 : index
    %c0_63 = arith.constant 0 : index
    %67 = vector.load %arg2[%c0_61, %66, %c0_62, %c0_63] : memref<1x18x18x4xf32, #tpu.memory_space<vmem>>, vector<1x16x16x4xf32>
    %68 = vector.shape_cast %67 : vector<1x16x16x4xf32> to vector<16x16x4xf32>
    %69 = vector.shape_cast %68 : vector<16x16x4xf32> to vector<256x4xf32>
    %c6 = arith.constant 6 : index
    %c0_64 = arith.constant 0 : index
    %c0_65 = arith.constant 0 : index
    %70 = vector.load %arg3[%c6, %c0_64, %c0_65] : memref<9x4x128xf32, #tpu.memory_space<vmem>>, vector<1x4x128xf32>
    %71 = vector.shape_cast %70 : vector<1x4x128xf32> to vector<4x128xf32>
    %cst_66 = arith.constant dense<0.000000e+00> : vector<256x128xf32>
    %72 = tpu.matmul %69, %71, %cst_66 {dimension_numbers = #tpu.dot_dimension_numbers<[1], [0], [0], [1], [0, 0, 1, 1], [], []>} : vector<256x4xf32>, vector<4x128xf32>, vector<256x128xf32> -> vector<256x128xf32>
    %c0_67 = arith.constant 0 : index
    %c0_68 = arith.constant 0 : index
    %73 = vector.load %arg6[%c0_67, %c0_68] : memref<256x128xf32, #tpu.memory_space<vmem>>, vector<256x128xf32>
    %74 = arith.addf %73, %72 : vector<256x128xf32>
    %c0_69 = arith.constant 0 : index
    %c0_70 = arith.constant 0 : index
    %75 = vector.load %arg6[%c0_69, %c0_70] : memref<256x128xf32, #tpu.memory_space<vmem>>, vector<256x128xf32>
    tpu.vector_store %arg6[%c0_69, %c0_70], %74 {strides = array<i32>} : memref<256x128xf32, #tpu.memory_space<vmem>>, vector<256x128xf32>,
    %c2_i32_71 = arith.constant 2 : i32
    %76 = arith.addi %0, %c2_i32_71 : i32
    %c0_72 = arith.constant 0 : index
    %77 = arith.index_cast %76 : i32 to index
    %c1_73 = arith.constant 1 : index
    %c0_74 = arith.constant 0 : index
    %78 = vector.load %arg2[%c0_72, %77, %c1_73, %c0_74] : memref<1x18x18x4xf32, #tpu.memory_space<vmem>>, vector<1x16x16x4xf32>
    %79 = vector.shape_cast %78 : vector<1x16x16x4xf32> to vector<16x16x4xf32>
    %80 = vector.shape_cast %79 : vector<16x16x4xf32> to vector<256x4xf32>
    %c7 = arith.constant 7 : index
    %c0_75 = arith.constant 0 : index
    %c0_76 = arith.constant 0 : index
    %81 = vector.load %arg3[%c7, %c0_75, %c0_76] : memref<9x4x128xf32, #tpu.memory_space<vmem>>, vector<1x4x128xf32>
    %82 = vector.shape_cast %81 : vector<1x4x128xf32> to vector<4x128xf32>
    %cst_77 = arith.constant dense<0.000000e+00> : vector<256x128xf32>
    %83 = tpu.matmul %80, %82, %cst_77 {dimension_numbers = #tpu.dot_dimension_numbers<[1], [0], [0], [1], [0, 0, 1, 1], [], []>} : vector<256x4xf32>, vector<4x128xf32>, vector<256x128xf32> -> vector<256x128xf32>
    %c0_78 = arith.constant 0 : index
    %c0_79 = arith.constant 0 : index
    %84 = vector.load %arg6[%c0_78, %c0_79] : memref<256x128xf32, #tpu.memory_space<vmem>>, vector<256x128xf32>
    %85 = arith.addf %84, %83 : vector<256x128xf32>
    %c0_80 = arith.constant 0 : index
    %c0_81 = arith.constant 0 : index
    %86 = vector.load %arg6[%c0_80, %c0_81] : memref<256x128xf32, #tpu.memory_space<vmem>>, vector<256x128xf32>
    tpu.vector_store %arg6[%c0_80, %c0_81], %85 {strides = array<i32>} : memref<256x128xf32, #tpu.memory_space<vmem>>, vector<256x128xf32>,
    %c2_i32_82 = arith.constant 2 : i32
    %87 = arith.addi %0, %c2_i32_82 : i32
    %c0_83 = arith.constant 0 : index
    %88 = arith.index_cast %87 : i32 to index
    %c2_84 = arith.constant 2 : index
    %c0_85 = arith.constant 0 : index
    %89 = vector.load %arg2[%c0_83, %88, %c2_84, %c0_85] : memref<1x18x18x4xf32, #tpu.memory_space<vmem>>, vector<1x16x16x4xf32>
    %90 = vector.shape_cast %89 : vector<1x16x16x4xf32> to vector<16x16x4xf32>
    %91 = vector.shape_cast %90 : vector<16x16x4xf32> to vector<256x4xf32>
    %c8 = arith.constant 8 : index
    %c0_86 = arith.constant 0 : index
    %c0_87 = arith.constant 0 : index
    %92 = vector.load %arg3[%c8, %c0_86, %c0_87] : memref<9x4x128xf32, #tpu.memory_space<vmem>>, vector<1x4x128xf32>
    %93 = vector.shape_cast %92 : vector<1x4x128xf32> to vector<4x128xf32>
    %cst_88 = arith.constant dense<0.000000e+00> : vector<256x128xf32>
    %94 = tpu.matmul %91, %93, %cst_88 {dimension_numbers = #tpu.dot_dimension_numbers<[1], [0], [0], [1], [0, 0, 1, 1], [], []>} : vector<256x4xf32>, vector<4x128xf32>, vector<256x128xf32> -> vector<256x128xf32>
    %c0_89 = arith.constant 0 : index
    %c0_90 = arith.constant 0 : index
    %95 = vector.load %arg6[%c0_89, %c0_90] : memref<256x128xf32, #tpu.memory_space<vmem>>, vector<256x128xf32>
    %96 = arith.addf %95, %94 : vector<256x128xf32>
    %c0_91 = arith.constant 0 : index
    %c0_92 = arith.constant 0 : index
    %97 = vector.load %arg6[%c0_91, %c0_92] : memref<256x128xf32, #tpu.memory_space<vmem>>, vector<256x128xf32>
    tpu.vector_store %arg6[%c0_91, %c0_92], %96 {strides = array<i32>} : memref<256x128xf32, #tpu.memory_space<vmem>>, vector<256x128xf32>,
    %c0_93 = arith.constant 0 : index
    %c0_94 = arith.constant 0 : index
    %98 = vector.load %arg6[%c0_93, %c0_94] : memref<256x128xf32, #tpu.memory_space<vmem>>, vector<256x128xf32>
    %c0_95 = arith.constant 0 : index
    %c0_96 = arith.constant 0 : index
    %99 = vector.load %arg4[%c0_95, %c0_96] : memref<1x128xf32, #tpu.memory_space<vmem>>, vector<1x128xf32>
    %100 = vector.broadcast %99 : vector<1x128xf32> to vector<256x128xf32>
    %101 = arith.addf %98, %100 : vector<256x128xf32>
    %c0_97 = arith.constant 0 : index
    %c0_98 = arith.constant 0 : index
    %102 = vector.load %arg5[%c0_97, %c0_98] : memref<256x128xf32, #tpu.memory_space<vmem>>, vector<256x128xf32>
    tpu.vector_store %arg5[%c0_97, %c0_98], %101 {strides = array<i32>} : memref<256x128xf32, #tpu.memory_space<vmem>>, vector<256x128xf32>,
    return
  }
  func.func @transform_0(%arg0: i32, %arg1: i32) -> (i32, i32, i32, i32) {
    %c0_i32 = arith.constant 0 : i32
    %c0_i32_0 = arith.constant 0 : i32
    %c0_i32_1 = arith.constant 0 : i32
    %c0_i32_2 = arith.constant 0 : i32
    return %arg0, %c0_i32, %c0_i32_0, %c0_i32_1 : i32, i32, i32, i32
  }
  func.func @transform_1(%arg0: i32, %arg1: i32) -> (i32, i32, i32) {
    %c0_i32 = arith.constant 0 : i32
    %c0_i32_0 = arith.constant 0 : i32
    %c0_i32_1 = arith.constant 0 : i32
    %c0_i32_2 = arith.constant 0 : i32
    return %c0_i32, %c0_i32_0, %c0_i32_1 : i32, i32, i32
  }
  func.func @transform_2(%arg0: i32, %arg1: i32) -> (i32, i32) {
    %c0_i32 = arith.constant 0 : i32
    %c0_i32_0 = arith.constant 0 : i32
    %c0_i32_1 = arith.constant 0 : i32
    return %c0_i32, %c0_i32_0 : i32, i32
  }
  func.func @transform_3(%arg0: i32, %arg1: i32) -> (i32, i32) {
    %c1_i32 = arith.constant 1 : i32
    %0 = arith.muli %arg0, %c1_i32 : i32
    %1 = arith.addi %0, %arg1 : i32
    %c0_i32 = arith.constant 0 : i32
    %c0_i32_0 = arith.constant 0 : i32
    return %1, %c0_i32 : i32, i32
  }
}

</mosaic_0001>

<llo_original>
// kernel: my_convolution_forward.1
$region0: #{my_convolution_forward.1}
  #allocation0 [shape = 'u32[]', space=smem, size = 0x4, offset = 0x4, fixed_abs, tag = 'smem constant byte address 0x4 - core index']
  #allocation1 [shape = 'u32[144,128]{1,0:T(1,128)}', space=vmem, size = 0x12000, scoped, tag = 'internal scratch']
  #allocation2 [shape = 'f32[256,128]{1,0:T(8,128)}', space=vmem, size = 0x20000, scoped, tag = 'scratch operand']
  %s0 = inlined_call_operand.vmem [shape: f32[2,18,18,4], index: 0, kind: input, shape index: {}]
  %s1 = inlined_call_operand.vmem [shape: f32[9,4,128], index: 1, kind: input, shape index: {}]
  %s2 = inlined_call_operand.vmem [shape: f32[1,128], index: 2, kind: input, shape index: {}]
  %s3 = inlined_call_operand.vmem [shape: f32[512,128], index: 3, kind: output, shape index: {}]
  %s4 = sld [smem:[#allocation0]]
  $region45: #{my_convolution_forward.1} parent=0
    _
  %s6 = ssub.s32 1, %s4
  %s7 = scalar_select 0, %s6, %s4
  loop: start=0, step=1, limit=4
  $region2: #{my_convolution_forward.1} parent=0 // loop_pre_header
    _
  $region3: #{my_convolution_forward.1} parent=0 // loop_header
    %s9 = sphi 0, %s13
    %p10 = scmp.ge.s32.totalorder %s9, 4
    %s16 = sphi 0, %s28
    %s17 = sphi 0, %s24
    %s18 = sphi 0, %s16
    %s19 = sphi 0, %s17
    %s20 = sphi 0, %s18
    %s21 = sphi 0, %s19
    %s31 = sphi 0, %s33
    %s34 = sphi 0, %s31
    %s35 = sphi 0, %s34
    %s51 = sphi 0, %s35
    %s55 = sphi 0, %s55
    %s57 = sphi 0, %s55
    %s58 = sphi 0, %s57
    %s72 = sphi 0, %s58
    %s76 = sphi 0, %s76
    %s78 = sphi 0, %s76
    %s79 = sphi 0, %s78
    %s93 = sphi 0, %s79
    %s101 = sphi 0, %s103
    %s104 = sphi 0, %s101
    %s105 = sphi 0, %s104
    %s121 = sphi 0, %s105
  $region4: #{my_convolution_forward.1} parent=0 // loop_header_branch
    %12 = sbr.rel (%p10) target = $region8
  $region5: #{my_convolution_forward.1} parent=0 // loop_body
    %s14 = ssub.s32 %s9, 1
    %s15 = ssub.s32 %s9, 2
    %s22 = sadd.s32 1, %s17
    %p23 = scmp.ge.s32.totalorder %s22, 1
    %s24 = scalar_select %p23, 0, %s22
    %s25 = sadd.s32 1, %s16
    %s26 = scalar_select %p23, %s25, %s16
    %p27 = scmp.ge.s32.totalorder %s26, 2
    %s28 = scalar_select %p27, 0, %s26
    %s29 = ssub.s32 %s16, %s28
    %p30 = scmp.eq.s32.totalorder %s29, 0
    %s32 = sadd.s32 %s31, 1
    %s33 = scalar_select %p30, %s31, %s32
    %p36 = pneg %p30
    %p37 = scmp.eq.s32.totalorder %s9, 1
    %p38 = por %p36, %p37
    %p39 = scmp.ne.s32.totalorder %s31, %s34
    %p40 = scmp.eq.s32.totalorder %s9, 0
    %p41 = por %p39, %p40
    %p42 = scmp.ne.s32.totalorder %s31, %s34
    %p43 = scmp.eq.s32.totalorder %s14, 1
    %p44 = por %p42, %p43
    %p45 = scmp.ne.s32.totalorder %s34, %s35
    %p46 = scmp.eq.s32.totalorder %s14, 0
    %p47 = por %p45, %p46
    %p48 = scmp.ne.s32.totalorder %s34, %s35
    %p49 = scmp.eq.s32.totalorder %s15, 1
    %p50 = por %p48, %p49
    %p52 = scmp.ne.s32.totalorder %s35, %s51
    %p53 = scmp.eq.s32.totalorder %s15, 0
    %p54 = por %p52, %p53
    %s56 = sadd.s32 %s55, 1
    %p59 = scmp.eq.s32.totalorder %s9, 1
    %p60 = scmp.ne.s32.totalorder %s55, %s57
    %p61 = scmp.eq.s32.totalorder %s9, 0
    %p62 = por %p60, %p61
    %p63 = scmp.ne.s32.totalorder %s55, %s57
    %p64 = scmp.eq.s32.totalorder %s14, 1
    %p65 = por %p63, %p64
    %p66 = scmp.ne.s32.totalorder %s57, %s58
    %p67 = scmp.eq.s32.totalorder %s14, 0
    %p68 = por %p66, %p67
    %p69 = scmp.ne.s32.totalorder %s57, %s58
    %p70 = scmp.eq.s32.totalorder %s15, 1
    %p71 = por %p69, %p70
    %p73 = scmp.ne.s32.totalorder %s58, %s72
    %p74 = scmp.eq.s32.totalorder %s15, 0
    %p75 = por %p73, %p74
    %s77 = sadd.s32 %s76, 1
    %p80 = scmp.eq.s32.totalorder %s9, 1
    %p81 = scmp.ne.s32.totalorder %s76, %s78
    %p82 = scmp.eq.s32.totalorder %s9, 0
    %p83 = por %p81, %p82
    %p84 = scmp.ne.s32.totalorder %s76, %s78
    %p85 = scmp.eq.s32.totalorder %s14, 1
    %p86 = por %p84, %p85
    %p87 = scmp.ne.s32.totalorder %s78, %s79
    %p88 = scmp.eq.s32.totalorder %s14, 0
    %p89 = por %p87, %p88
    %p90 = scmp.ne.s32.totalorder %s78, %s79
    %p91 = scmp.eq.s32.totalorder %s15, 1
    %p92 = por %p90, %p91
    %p94 = scmp.ne.s32.totalorder %s79, %s93
    %p95 = scmp.eq.s32.totalorder %s15, 0
    %p96 = por %p94, %p95
    %s97 = sadd.s32 %s16, %s17
    %s98 = sadd.s32 %s28, %s24
    %s99 = ssub.s32 %s97, %s98
    %p100 = scmp.eq.s32.totalorder %s99, 0
    %s102 = sadd.s32 %s101, 1
    %s103 = scalar_select %p100, %s101, %s102
    %p106 = pneg %p100
    %p107 = scmp.eq.s32.totalorder %s9, 1
    %p108 = por %p106, %p107
    %p109 = scmp.ne.s32.totalorder %s101, %s104
    %p110 = scmp.eq.s32.totalorder %s9, 0
    %p111 = por %p109, %p110
    %p112 = scmp.ne.s32.totalorder %s101, %s104
    %p113 = scmp.eq.s32.totalorder %s14, 1
    %p114 = por %p112, %p113
    %p115 = scmp.ne.s32.totalorder %s104, %s105
    %p116 = scmp.eq.s32.totalorder %s14, 0
    %p117 = por %p115, %p116
    %p118 = scmp.ne.s32.totalorder %s104, %s105
    %p119 = scmp.eq.s32.totalorder %s15, 1
    %p120 = por %p118, %p119
    %p122 = scmp.ne.s32.totalorder %s105, %s121
    %p123 = scmp.eq.s32.totalorder %s15, 0
    %p124 = por %p122, %p123
    %p125 = scmp.le.s32.totalorder 1, %s9
    %p126 = scmp.lt.s32.totalorder %s9, 3
    %p127 = pnand %p125, %p126
    %p128 = pneg %p127
    // Predicated region
    $region9: #{my_convolution_forward.1} parent=5 // pred_check
      _
    $region10: #{my_convolution_forward.1} parent=5 // pred_check_branch
      %130 = sbr.rel (%p127) target = $region12
    $region11: #{my_convolution_forward.1} parent=5 // pred_region
      %s131 = ssub.s32 %s9, 1
      // Predicated region
      $region13: #{my_convolution_forward.1} parent=11 // pred_check
        %p132 = pneg %p68
      $region14: #{my_convolution_forward.1} parent=11 // pred_check_branch
        %134 = sbr.rel (%p132) target = $region16
      $region15: #{my_convolution_forward.1} parent=11 // pred_region
        _
      $region16: #{my_convolution_forward.1} parent=11 // pred_fallthru
        _
      // Predicated region
      $region17: #{my_convolution_forward.1} parent=11 // pred_check
        %p135 = pneg %p89
      $region18: #{my_convolution_forward.1} parent=11 // pred_check_branch
        %137 = sbr.rel (%p135) target = $region20
      $region19: #{my_convolution_forward.1} parent=11 // pred_region
        _
      $region20: #{my_convolution_forward.1} parent=11 // pred_fallthru
        _
    $region12: #{my_convolution_forward.1} parent=5 // pred_fallthru
      _
    %p138 = scmp.lt.s32.totalorder %s9, 2
    // Predicated region
    $region21: #{my_convolution_forward.1} parent=5 // pred_check
      %p139 = pneg %p138
    $region22: #{my_convolution_forward.1} parent=5 // pred_check_branch
      %141 = sbr.rel (%p139) target = $region24
    $region23: #{my_convolution_forward.1} parent=5 // pred_region
      // Predicated region
      $region25: #{my_convolution_forward.1} parent=23 // pred_check
        %p142 = pneg %p41
      $region26: #{my_convolution_forward.1} parent=23 // pred_check_branch
        %144 = sbr.rel (%p142) target = $region28
      $region27: #{my_convolution_forward.1} parent=23 // pred_region
        %p145 = scmp.lt.s32.totalorder %s16, 1
        %s146 = scalar_select %p145, %s16, 1
        %s147 = smul.addr %s146, 54
        %s148 = smul.addr %s147, 8
        %s149 = scalar_lea.vmem %s0, %s148
      $region28: #{my_convolution_forward.1} parent=23 // pred_fallthru
        _
    $region24: #{my_convolution_forward.1} parent=5 // pred_fallthru
      _
    %p150 = scmp.le.s32.totalorder 1, %s9
    %p151 = scmp.lt.s32.totalorder %s9, 3
    %p152 = pnand %p150, %p151
    %p153 = pneg %p152
    // Predicated region
    $region29: #{my_convolution_forward.1} parent=5 // pred_check
      _
    $region30: #{my_convolution_forward.1} parent=5 // pred_check_branch
      %155 = sbr.rel (%p152) target = $region32
    $region31: #{my_convolution_forward.1} parent=5 // pred_region
      %s156 = ssub.s32 %s9, 1
      %p157 = scmp.lt.s32.totalorder %s18, 1
      %s158 = scalar_select %p157, %s18, 1
      %s159 = smul.addr %s158, 54
      %s160 = smul.addr %s159, 8
      %s161 = scalar_lea.vmem %s0, %s160
      %p162 = pneg %p47
      %p163 = pneg %p44
      %p164 = pneg %p68
      %p165 = pneg %p65
      %p166 = pneg %p89
      %p167 = pneg %p86
      %p168 = pneg %p117
      %p169 = pneg %p114
      %s170 = sadd.s32 %s18, %s19
      %s171 = smul.u32 32, %s170
      %p172 = scmp.lt.s32.totalorder %s171, 63
      %s173 = scalar_select %p172, %s171, 63
      %s174 = smul.addr %s173, 8
      %s175 = scalar_lea.vmem %s3, %s174
      %p176 = scmp.lt.s32.totalorder %s18, 1
      %s177 = scalar_select %p176, %s18, 1
      %s178 = smul.addr %s177, 54
      %s179 = smul.addr %s178, 8
      %s180 = scalar_lea.vmem %s0, %s179
      %s181 = sadd.s32 %s18, %s19
      %s182 = smul.u32 32, %s181
      %p183 = scmp.lt.s32.totalorder %s182, 63
      %s184 = scalar_select %p183, %s182, 63
      %s185 = smul.addr %s184, 8
      %s186 = scalar_lea.vmem %s3, %s185
      %s187 = sadd.s32 %s18, %s19
      %s188 = smul.u32 32, %s187
      %s189 = smul.u32 %s19, 16
      %s190 = smul.u32 %s189, 24
      %s191 = scalar_lea.vmem %s180, %s190
      %v192 = vld [vmem:[%s191] sm:$0xff]
      %v193 = vld [vmem:[%s191 + $0x8] sm:$0xff]
      %v194 = vld [vmem:[%s191 + $0x18] sm:$0xff]
      %v195 = vld [vmem:[%s191 + $0x20] sm:$0xff]
      %v196 = vld [vmem:[%s191 + $0x30] sm:$0xff]
      %v197 = vld [vmem:[%s191 + $0x38] sm:$0xff]
      %v198 = vld [vmem:[%s191 + $0x48] sm:$0xff]
      %v199 = vld [vmem:[%s191 + $0x50] sm:$0xff]
      %v200 = vld [vmem:[%s191 + $0x60] sm:$0xff]
      %v201 = vld [vmem:[%s191 + $0x68] sm:$0xff]
      %v202 = vld [vmem:[%s191 + $0x78] sm:$0xff]
      %v203 = vld [vmem:[%s191 + $0x80] sm:$0xff]
      %v204 = vld [vmem:[%s191 + $0x90] sm:$0xff]
      %v205 = vld [vmem:[%s191 + $0x98] sm:$0xff]
      %v206 = vld [vmem:[%s191 + $0xa8] sm:$0xff]
      %v207 = vld [vmem:[%s191 + $0xb0] sm:$0xff]
      %v208 = vld [vmem:[%s191 + $0xc0] sm:$0xff]
      %v209 = vld [vmem:[%s191 + $0xc8] sm:$0xff]
      %v210 = vld [vmem:[%s191 + $0xd8] sm:$0xff]
      %v211 = vld [vmem:[%s191 + $0xe0] sm:$0xff]
      %v212 = vld [vmem:[%s191 + $0xf0] sm:$0xff]
      %v213 = vld [vmem:[%s191 + $0xf8] sm:$0xff]
      %v214 = vld [vmem:[%s191 + $0x108] sm:$0xff]
      %v215 = vld [vmem:[%s191 + $0x110] sm:$0xff]
      %v216 = vld [vmem:[%s191 + $0x120] sm:$0xff]
      %v217 = vld [vmem:[%s191 + $0x128] sm:$0xff]
      %v218 = vld [vmem:[%s191 + $0x138] sm:$0xff]
      %v219 = vld [vmem:[%s191 + $0x140] sm:$0xff]
      %v220 = vld [vmem:[%s191 + $0x150] sm:$0xff]
      %v221 = vld [vmem:[%s191 + $0x158] sm:$0xff]
      %v222 = vld [vmem:[%s191 + $0x168] sm:$0xff]
      %v223 = vld [vmem:[%s191 + $0x170] sm:$0xff]
      %v224 = vld [vmem:[%s1] sm:$0xf]
      %vm225 = vcmask 31744
      %v227 = vsel %vm225, %v192, 0
      %v230 = vsel %vm225, %v193, 0
      %v233 = vsel %vm225, %v194, 0
      %v236 = vsel %vm225, %v195, 0
      %v239 = vsel %vm225, %v196, 0
      %v242 = vsel %vm225, %v197, 0
      %v245 = vsel %vm225, %v198, 0
      %v248 = vsel %vm225, %v199, 0
      %v251 = vsel %vm225, %v200, 0
      %v254 = vsel %vm225, %v201, 0
      %v257 = vsel %vm225, %v202, 0
      %v260 = vsel %vm225, %v203, 0
      %v263 = vsel %vm225, %v204, 0
      %v266 = vsel %vm225, %v205, 0
      %v269 = vsel %vm225, %v206, 0
      %v272 = vsel %vm225, %v207, 0
      %v275 = vsel %vm225, %v208, 0
      %v278 = vsel %vm225, %v209, 0
      %v281 = vsel %vm225, %v210, 0
      %v284 = vsel %vm225, %v211, 0
      %v287 = vsel %vm225, %v212, 0
      %v290 = vsel %vm225, %v213, 0
      %v293 = vsel %vm225, %v214, 0
      %v296 = vsel %vm225, %v215, 0
      %v299 = vsel %vm225, %v216, 0
      %v302 = vsel %vm225, %v217, 0
      %v305 = vsel %vm225, %v218, 0
      %v308 = vsel %vm225, %v219, 0
      %v311 = vsel %vm225, %v220, 0
      %v314 = vsel %vm225, %v221, 0
      %v317 = vsel %vm225, %v222, 0
      %v320 = vsel %vm225, %v223, 0
      %vm322 = vcmask 1043456
      %v324 = vsel %vm322, %v224, 0
      %326 = vmatprep.subr.mxu0 0.0
      %327 = vmatpush1.msra.mxu0 0.0
      %328 = vmatprep.subr.mxu0 0.0
      %329 = vmatpush1.msra.mxu0 0.0
      %330 = vmatprep.subr.mxu0 0.0
      %331 = vmatpush1.msra.mxu0 0.0
      %332 = vmatprep.subr.mxu0 0.0
      %333 = vmatpush1.msra.mxu0 0.0
      %334 = vmatprep.subr.mxu0 0.0
      %335 = vmatpush1.msra.mxu0 0.0
      %336 = vmatprep.subr.mxu0 0.0
      %337 = vmatpush1.msra.mxu0 0.0
      %338 = vmatprep.subr.mxu0 0.0
      %339 = vmatpush1.msra.mxu0 0.0
      %340 = vmatprep.subr.mxu0 0.0
      %341 = vmatpush1.msra.mxu0 0.0
      %342 = vmatprep.subr.mxu0 0.0
      %343 = vmatpush1.msra.mxu0 0.0
      %344 = vmatprep.subr.mxu0 0.0
      %345 = vmatpush1.msra.mxu0 0.0
      %346 = vmatprep.subr.mxu0 0.0
      %347 = vmatpush1.msra.mxu0 0.0
      %348 = vmatprep.subr.mxu0 0.0
      %349 = vmatpush1.msra.mxu0 0.0
      %350 = vmatprep.subr.mxu0 0.0
      %351 = vmatpush1.msra.mxu0 0.0
      %352 = vmatprep.subr.mxu0 0.0
      %353 = vmatpush1.msra.mxu0 0.0
      %354 = vmatprep.subr.mxu0 0.0
      %355 = vmatpush1.msra.mxu0 0.0
      %356 = vmatprep.subr.mxu0 0.0
      %357 = vmatpush1.msra.mxu0 %v324
      %358 = vmatprep.subr.mxu0 0.0
      %359 = vmatpush2.msra.mxu0 0.0
      %360 = vmatprep.subr.mxu0 0.0
      %361 = vmatpush2.msra.mxu0 0.0
      %362 = vmatprep.subr.mxu0 0.0
      %363 = vmatpush2.msra.mxu0 0.0
      %364 = vmatprep.subr.mxu0 0.0
      %365 = vmatpush2.msra.mxu0 0.0
      %366 = vmatprep.subr.mxu0 0.0
      %367 = vmatpush2.msra.mxu0 0.0
      %368 = vmatprep.subr.mxu0 0.0
      %369 = vmatpush2.msra.mxu0 0.0
      %370 = vmatprep.subr.mxu0 0.0
      %371 = vmatpush2.msra.mxu0 0.0
      %372 = vmatprep.subr.mxu0 0.0
      %373 = vmatpush2.msra.mxu0 0.0
      %374 = vmatprep.subr.mxu0 0.0
      %375 = vmatpush2.msra.mxu0 0.0
      %376 = vmatprep.subr.mxu0 0.0
      %377 = vmatpush2.msra.mxu0 0.0
      %378 = vmatprep.subr.mxu0 0.0
      %379 = vmatpush2.msra.mxu0 0.0
      %380 = vmatprep.subr.mxu0 0.0
      %381 = vmatpush2.msra.mxu0 0.0
      %382 = vmatprep.subr.mxu0 0.0
      %383 = vmatpush2.msra.mxu0 0.0
      %384 = vmatprep.subr.mxu0 0.0
      %385 = vmatpush2.msra.mxu0 0.0
      %386 = vmatprep.subr.mxu0 0.0
      %387 = vmatpush2.msra.mxu0 0.0
      %388 = vmatprep.subr.mxu0 0.0
      %389 = vmatpush2.msra.mxu0 0.0
      %390 = vmatprep.mubr.f32.mxu0 0.0
      %391 = vmatmul.mubr.f32.gmra.mxu0 %v227
      %v392 = vpop.f32.mrf.mxu0
      %v393 = vadd.f32 0.0, %v392
      %v394 = vpop.f32.mrf.mxu0
      %395 = vmatprep.mubr.f32.mxu0 0.0
      %396 = vmatmul.mubr.f32.gmra.mxu0 %v230
      %v397 = vpop.f32.mrf.mxu0
      %v398 = vadd.f32 0.0, %v397
      %v399 = vpop.f32.mrf.mxu0
      %400 = vmatprep.mubr.f32.mxu0 0.0
      %401 = vmatmul.mubr.f32.gmra.mxu0 %v233
      %v402 = vpop.f32.mrf.mxu0
      %v403 = vadd.f32 0.0, %v402
      %v404 = vpop.f32.mrf.mxu0
      %405 = vmatprep.mubr.f32.mxu0 0.0
      %406 = vmatmul.mubr.f32.gmra.mxu0 %v236
      %v407 = vpop.f32.mrf.mxu0
      %v408 = vadd.f32 0.0, %v407
      %v409 = vpop.f32.mrf.mxu0
      %410 = vmatprep.mubr.f32.mxu0 0.0
      %411 = vmatmul.mubr.f32.gmra.mxu0 %v239
      %v412 = vpop.f32.mrf.mxu0
      %v413 = vadd.f32 0.0, %v412
      %v414 = vpop.f32.mrf.mxu0
      %415 = vmatprep.mubr.f32.mxu0 0.0
      %416 = vmatmul.mubr.f32.gmra.mxu0 %v242
      %v417 = vpop.f32.mrf.mxu0
      %v418 = vadd.f32 0.0, %v417
      %v419 = vpop.f32.mrf.mxu0
      %420 = vmatprep.mubr.f32.mxu0 0.0
      %421 = vmatmul.mubr.f32.gmra.mxu0 %v245
      %v422 = vpop.f32.mrf.mxu0
      %v423 = vadd.f32 0.0, %v422
      %v424 = vpop.f32.mrf.mxu0
      %425 = vmatprep.mubr.f32.mxu0 0.0
      %426 = vmatmul.mubr.f32.gmra.mxu0 %v248
      %v427 = vpop.f32.mrf.mxu0
      %v428 = vadd.f32 0.0, %v427
      %v429 = vpop.f32.mrf.mxu0
      %430 = vmatprep.mubr.f32.mxu0 0.0
      %431 = vmatmul.mubr.f32.gmra.mxu0 %v251
      %v432 = vpop.f32.mrf.mxu0
      %v433 = vadd.f32 0.0, %v432
      %v434 = vpop.f32.mrf.mxu0
      %435 = vmatprep.mubr.f32.mxu0 0.0
      %436 = vmatmul.mubr.f32.gmra.mxu0 %v254
      %v437 = vpop.f32.mrf.mxu0
      %v438 = vadd.f32 0.0, %v437
      %v439 = vpop.f32.mrf.mxu0
      %440 = vmatprep.mubr.f32.mxu0 0.0
      %441 = vmatmul.mubr.f32.gmra.mxu0 %v257
      %v442 = vpop.f32.mrf.mxu0
      %v443 = vadd.f32 0.0, %v442
      %v444 = vpop.f32.mrf.mxu0
      %445 = vmatprep.mubr.f32.mxu0 0.0
      %446 = vmatmul.mubr.f32.gmra.mxu0 %v260
      %v447 = vpop.f32.mrf.mxu0
      %v448 = vadd.f32 0.0, %v447
      %v449 = vpop.f32.mrf.mxu0
      %450 = vmatprep.mubr.f32.mxu0 0.0
      %451 = vmatmul.mubr.f32.gmra.mxu0 %v263
      %v452 = vpop.f32.mrf.mxu0
      %v453 = vadd.f32 0.0, %v452
      %v454 = vpop.f32.mrf.mxu0
      %455 = vmatprep.mubr.f32.mxu0 0.0
      %456 = vmatmul.mubr.f32.gmra.mxu0 %v266
      %v457 = vpop.f32.mrf.mxu0
      %v458 = vadd.f32 0.0, %v457
      %v459 = vpop.f32.mrf.mxu0
      %460 = vmatprep.mubr.f32.mxu0 0.0
      %461 = vmatmul.mubr.f32.gmra.mxu0 %v269
      %v462 = vpop.f32.mrf.mxu0
      %v463 = vadd.f32 0.0, %v462
      %v464 = vpop.f32.mrf.mxu0
      %465 = vmatprep.mubr.f32.mxu0 0.0
      %466 = vmatmul.mubr.f32.gmra.mxu0 %v272
      %v467 = vpop.f32.mrf.mxu0
      %v468 = vadd.f32 0.0, %v467
      %v469 = vpop.f32.mrf.mxu0
      %470 = vmatprep.mubr.f32.mxu0 0.0
      %471 = vmatmul.mubr.f32.gmra.mxu0 %v275
      %v472 = vpop.f32.mrf.mxu0
      %v473 = vadd.f32 0.0, %v472
      %v474 = vpop.f32.mrf.mxu0
      %475 = vmatprep.mubr.f32.mxu0 0.0
      %476 = vmatmul.mubr.f32.gmra.mxu0 %v278
      %v477 = vpop.f32.mrf.mxu0
      %v478 = vadd.f32 0.0, %v477
      %v479 = vpop.f32.mrf.mxu0
      %480 = vmatprep.mubr.f32.mxu0 0.0
      %481 = vmatmul.mubr.f32.gmra.mxu0 %v281
      %v482 = vpop.f32.mrf.mxu0
      %v483 = vadd.f32 0.0, %v482
      %v484 = vpop.f32.mrf.mxu0
      %485 = vmatprep.mubr.f32.mxu0 0.0
      %486 = vmatmul.mubr.f32.gmra.mxu0 %v284
      %v487 = vpop.f32.mrf.mxu0
      %v488 = vadd.f32 0.0, %v487
      %v489 = vpop.f32.mrf.mxu0
      %490 = vmatprep.mubr.f32.mxu0 0.0
      %491 = vmatmul.mubr.f32.gmra.mxu0 %v287
      %v492 = vpop.f32.mrf.mxu0
      %v493 = vadd.f32 0.0, %v492
      %v494 = vpop.f32.mrf.mxu0
      %495 = vmatprep.mubr.f32.mxu0 0.0
      %496 = vmatmul.mubr.f32.gmra.mxu0 %v290
      %v497 = vpop.f32.mrf.mxu0
      %v498 = vadd.f32 0.0, %v497
      %v499 = vpop.f32.mrf.mxu0
      %500 = vmatprep.mubr.f32.mxu0 0.0
      %501 = vmatmul.mubr.f32.gmra.mxu0 %v293
      %v502 = vpop.f32.mrf.mxu0
      %v503 = vadd.f32 0.0, %v502
      %v504 = vpop.f32.mrf.mxu0
      %505 = vmatprep.mubr.f32.mxu0 0.0
      %506 = vmatmul.mubr.f32.gmra.mxu0 %v296
      %v507 = vpop.f32.mrf.mxu0
      %v508 = vadd.f32 0.0, %v507
      %v509 = vpop.f32.mrf.mxu0
      %510 = vmatprep.mubr.f32.mxu0 0.0
      %511 = vmatmul.mubr.f32.gmra.mxu0 %v299
      %v512 = vpop.f32.mrf.mxu0
      %v513 = vadd.f32 0.0, %v512
      %v514 = vpop.f32.mrf.mxu0
      %515 = vmatprep.mubr.f32.mxu0 0.0
      %516 = vmatmul.mubr.f32.gmra.mxu0 %v302
      %v517 = vpop.f32.mrf.mxu0
      %v518 = vadd.f32 0.0, %v517
      %v519 = vpop.f32.mrf.mxu0
      %520 = vmatprep.mubr.f32.mxu0 0.0
      %521 = vmatmul.mubr.f32.gmra.mxu0 %v305
      %v522 = vpop.f32.mrf.mxu0
      %v523 = vadd.f32 0.0, %v522
      %v524 = vpop.f32.mrf.mxu0
      %525 = vmatprep.mubr.f32.mxu0 0.0
      %526 = vmatmul.mubr.f32.gmra.mxu0 %v308
      %v527 = vpop.f32.mrf.mxu0
      %v528 = vadd.f32 0.0, %v527
      %v529 = vpop.f32.mrf.mxu0
      %530 = vmatprep.mubr.f32.mxu0 0.0
      %531 = vmatmul.mubr.f32.gmra.mxu0 %v311
      %v532 = vpop.f32.mrf.mxu0
      %v533 = vadd.f32 0.0, %v532
      %v534 = vpop.f32.mrf.mxu0
      %535 = vmatprep.mubr.f32.mxu0 0.0
      %536 = vmatmul.mubr.f32.gmra.mxu0 %v314
      %v537 = vpop.f32.mrf.mxu0
      %v538 = vadd.f32 0.0, %v537
      %v539 = vpop.f32.mrf.mxu0
      %540 = vmatprep.mubr.f32.mxu0 0.0
      %541 = vmatmul.mubr.f32.gmra.mxu0 %v317
      %v542 = vpop.f32.mrf.mxu0
      %v543 = vadd.f32 0.0, %v542
      %v544 = vpop.f32.mrf.mxu0
      %545 = vmatprep.mubr.f32.mxu0 0.0
      %546 = vmatmul.mubr.f32.gmra.mxu0 %v320
      %v547 = vpop.f32.mrf.mxu0
      %v548 = vadd.f32 0.0, %v547
      %v549 = vpop.f32.mrf.mxu0
      %550 = vdwg.mxu0
      %551 = vst [vmem:[#allocation2] sm:$0xff] %v393
      %552 = vst [vmem:[#allocation2 + $0x8] sm:$0xff] %v398
      %553 = vst [vmem:[#allocation2 + $0x10] sm:$0xff] %v403
      %554 = vst [vmem:[#allocation2 + $0x18] sm:$0xff] %v408
      %555 = vst [vmem:[#allocation2 + $0x20] sm:$0xff] %v413
      %556 = vst [vmem:[#allocation2 + $0x28] sm:$0xff] %v418
      %557 = vst [vmem:[#allocation2 + $0x30] sm:$0xff] %v423
      %558 = vst [vmem:[#allocation2 + $0x38] sm:$0xff] %v428
      %559 = vst [vmem:[#allocation2 + $0x40] sm:$0xff] %v433
      %560 = vst [vmem:[#allocation2 + $0x48] sm:$0xff] %v438
      %561 = vst [vmem:[#allocation2 + $0x50] sm:$0xff] %v443
      %562 = vst [vmem:[#allocation2 + $0x58] sm:$0xff] %v448
      %563 = vst [vmem:[#allocation2 + $0x60] sm:$0xff] %v453
      %564 = vst [vmem:[#allocation2 + $0x68] sm:$0xff] %v458
      %565 = vst [vmem:[#allocation2 + $0x70] sm:$0xff] %v463
      %566 = vst [vmem:[#allocation2 + $0x78] sm:$0xff] %v468
      %567 = vst [vmem:[#allocation2 + $0x80] sm:$0xff] %v473
      %568 = vst [vmem:[#allocation2 + $0x88] sm:$0xff] %v478
      %569 = vst [vmem:[#allocation2 + $0x90] sm:$0xff] %v483
      %570 = vst [vmem:[#allocation2 + $0x98] sm:$0xff] %v488
      %571 = vst [vmem:[#allocation2 + $0xa0] sm:$0xff] %v493
      %572 = vst [vmem:[#allocation2 + $0xa8] sm:$0xff] %v498
      %573 = vst [vmem:[#allocation2 + $0xb0] sm:$0xff] %v503
      %574 = vst [vmem:[#allocation2 + $0xb8] sm:$0xff] %v508
      %575 = vst [vmem:[#allocation2 + $0xc0] sm:$0xff] %v513
      %576 = vst [vmem:[#allocation2 + $0xc8] sm:$0xff] %v518
      %577 = vst [vmem:[#allocation2 + $0xd0] sm:$0xff] %v523
      %578 = vst [vmem:[#allocation2 + $0xd8] sm:$0xff] %v528
      %579 = vst [vmem:[#allocation2 + $0xe0] sm:$0xff] %v533
      %580 = vst [vmem:[#allocation2 + $0xe8] sm:$0xff] %v538
      %581 = vst [vmem:[#allocation2 + $0xf0] sm:$0xff] %v543
      %582 = vst [vmem:[#allocation2 + $0xf8] sm:$0xff] %v548
      %v583 = vld [vmem:[%s191 + $0x1] sm:$0xff]
      %v584 = vld [vmem:[%s191 + $0x9] sm:$0xff]
      %v585 = vld [vmem:[%s191 + $0x19] sm:$0xff]
      %v586 = vld [vmem:[%s191 + $0x21] sm:$0xff]
      %v587 = vld [vmem:[%s191 + $0x31] sm:$0xff]
      %v588 = vld [vmem:[%s191 + $0x39] sm:$0xff]
      %v589 = vld [vmem:[%s191 + $0x49] sm:$0xff]
      %v590 = vld [vmem:[%s191 + $0x51] sm:$0xff]
      %v591 = vld [vmem:[%s191 + $0x61] sm:$0xff]
      %v592 = vld [vmem:[%s191 + $0x69] sm:$0xff]
      %v593 = vld [vmem:[%s191 + $0x79] sm:$0xff]
      %v594 = vld [vmem:[%s191 + $0x81] sm:$0xff]
      %v595 = vld [vmem:[%s191 + $0x91] sm:$0xff]
      %v596 = vld [vmem:[%s191 + $0x99] sm:$0xff]
      %v597 = vld [vmem:[%s191 + $0xa9] sm:$0xff]
      %v598 = vld [vmem:[%s191 + $0xb1] sm:$0xff]
      %v599 = vld [vmem:[%s191 + $0xc1] sm:$0xff]
      %v600 = vld [vmem:[%s191 + $0xc9] sm:$0xff]
      %v601 = vld [vmem:[%s191 + $0xd9] sm:$0xff]
      %v602 = vld [vmem:[%s191 + $0xe1] sm:$0xff]
      %v603 = vld [vmem:[%s191 + $0xf1] sm:$0xff]
      %v604 = vld [vmem:[%s191 + $0xf9] sm:$0xff]
      %v605 = vld [vmem:[%s191 + $0x109] sm:$0xff]
      %v606 = vld [vmem:[%s191 + $0x111] sm:$0xff]
      %v607 = vld [vmem:[%s191 + $0x121] sm:$0xff]
      %v608 = vld [vmem:[%s191 + $0x129] sm:$0xff]
      %v609 = vld [vmem:[%s191 + $0x139] sm:$0xff]
      %v610 = vld [vmem:[%s191 + $0x141] sm:$0xff]
      %v611 = vld [vmem:[%s191 + $0x151] sm:$0xff]
      %v612 = vld [vmem:[%s191 + $0x159] sm:$0xff]
      %v613 = vld [vmem:[%s191 + $0x169] sm:$0xff]
      %v614 = vld [vmem:[%s191 + $0x171] sm:$0xff]
      %s615 = scalar_lea.vmem %s1, 4
      %v616 = vld [vmem:[%s615] sm:$0xf]
      %v618 = vsel %vm225, %v583, 0
      %v621 = vsel %vm225, %v584, 0
      %v624 = vsel %vm225, %v585, 0
      %v627 = vsel %vm225, %v586, 0
      %v630 = vsel %vm225, %v587, 0
      %v633 = vsel %vm225, %v588, 0
      %v636 = vsel %vm225, %v589, 0
      %v639 = vsel %vm225, %v590, 0
      %v642 = vsel %vm225, %v591, 0
      %v645 = vsel %vm225, %v592, 0
      %v648 = vsel %vm225, %v593, 0
      %v651 = vsel %vm225, %v594, 0
      %v654 = vsel %vm225, %v595, 0
      %v657 = vsel %vm225, %v596, 0
      %v660 = vsel %vm225, %v597, 0
      %v663 = vsel %vm225, %v598, 0
      %v666 = vsel %vm225, %v599, 0
      %v669 = vsel %vm225, %v600, 0
      %v672 = vsel %vm225, %v601, 0
      %v675 = vsel %vm225, %v602, 0
      %v678 = vsel %vm225, %v603, 0
      %v681 = vsel %vm225, %v604, 0
      %v684 = vsel %vm225, %v605, 0
      %v687 = vsel %vm225, %v606, 0
      %v690 = vsel %vm225, %v607, 0
      %v693 = vsel %vm225, %v608, 0
      %v696 = vsel %vm225, %v609, 0
      %v699 = vsel %vm225, %v610, 0
      %v702 = vsel %vm225, %v611, 0
      %v705 = vsel %vm225, %v612, 0
      %v708 = vsel %vm225, %v613, 0
      %v711 = vsel %vm225, %v614, 0
      %v714 = vsel %vm322, %v616, 0
      %716 = vmatprep.subr.mxu0 0.0
      %717 = vmatpush1.msra.mxu0 0.0
      %718 = vmatprep.subr.mxu0 0.0
      %719 = vmatpush1.msra.mxu0 0.0
      %720 = vmatprep.subr.mxu0 0.0
      %721 = vmatpush1.msra.mxu0 0.0
      %722 = vmatprep.subr.mxu0 0.0
      %723 = vmatpush1.msra.mxu0 0.0
      %724 = vmatprep.subr.mxu0 0.0
      %725 = vmatpush1.msra.mxu0 0.0
      %726 = vmatprep.subr.mxu0 0.0
      %727 = vmatpush1.msra.mxu0 0.0
      %728 = vmatprep.subr.mxu0 0.0
      %729 = vmatpush1.msra.mxu0 0.0
      %730 = vmatprep.subr.mxu0 0.0
      %731 = vmatpush1.msra.mxu0 0.0
      %732 = vmatprep.subr.mxu0 0.0
      %733 = vmatpush1.msra.mxu0 0.0
      %734 = vmatprep.subr.mxu0 0.0
      %735 = vmatpush1.msra.mxu0 0.0
      %736 = vmatprep.subr.mxu0 0.0
      %737 = vmatpush1.msra.mxu0 0.0
      %738 = vmatprep.subr.mxu0 0.0
      %739 = vmatpush1.msra.mxu0 0.0
      %740 = vmatprep.subr.mxu0 0.0
      %741 = vmatpush1.msra.mxu0 0.0
      %742 = vmatprep.subr.mxu0 0.0
      %743 = vmatpush1.msra.mxu0 0.0
      %744 = vmatprep.subr.mxu0 0.0
      %745 = vmatpush1.msra.mxu0 0.0
      %746 = vmatprep.subr.mxu0 0.0
      %747 = vmatpush1.msra.mxu0 %v714
      %748 = vmatprep.subr.mxu0 0.0
      %749 = vmatpush2.msra.mxu0 0.0
      %750 = vmatprep.subr.mxu0 0.0
      %751 = vmatpush2.msra.mxu0 0.0
      %752 = vmatprep.subr.mxu0 0.0
      %753 = vmatpush2.msra.mxu0 0.0
      %754 = vmatprep.subr.mxu0 0.0
      %755 = vmatpush2.msra.mxu0 0.0
      %756 = vmatprep.subr.mxu0 0.0
      %757 = vmatpush2.msra.mxu0 0.0
      %758 = vmatprep.subr.mxu0 0.0
      %759 = vmatpush2.msra.mxu0 0.0
      %760 = vmatprep.subr.mxu0 0.0
      %761 = vmatpush2.msra.mxu0 0.0
      %762 = vmatprep.subr.mxu0 0.0
      %763 = vmatpush2.msra.mxu0 0.0
      %764 = vmatprep.subr.mxu0 0.0
      %765 = vmatpush2.msra.mxu0 0.0
      %766 = vmatprep.subr.mxu0 0.0
      %767 = vmatpush2.msra.mxu0 0.0
      %768 = vmatprep.subr.mxu0 0.0
      %769 = vmatpush2.msra.mxu0 0.0
      %770 = vmatprep.subr.mxu0 0.0
      %771 = vmatpush2.msra.mxu0 0.0
      %772 = vmatprep.subr.mxu0 0.0
      %773 = vmatpush2.msra.mxu0 0.0
      %774 = vmatprep.subr.mxu0 0.0
      %775 = vmatpush2.msra.mxu0 0.0
      %776 = vmatprep.subr.mxu0 0.0
      %777 = vmatpush2.msra.mxu0 0.0
      %778 = vmatprep.subr.mxu0 0.0
      %779 = vmatpush2.msra.mxu0 0.0
      %780 = vmatprep.mubr.f32.mxu0 0.0
      %781 = vmatmul.mubr.f32.gmra.mxu0 %v618
      %v782 = vpop.f32.mrf.mxu0
      %v783 = vadd.f32 0.0, %v782
      %v784 = vpop.f32.mrf.mxu0
      %785 = vmatprep.mubr.f32.mxu0 0.0
      %786 = vmatmul.mubr.f32.gmra.mxu0 %v621
      %v787 = vpop.f32.mrf.mxu0
      %v788 = vadd.f32 0.0, %v787
      %v789 = vpop.f32.mrf.mxu0
      %790 = vmatprep.mubr.f32.mxu0 0.0
      %791 = vmatmul.mubr.f32.gmra.mxu0 %v624
      %v792 = vpop.f32.mrf.mxu0
      %v793 = vadd.f32 0.0, %v792
      %v794 = vpop.f32.mrf.mxu0
      %795 = vmatprep.mubr.f32.mxu0 0.0
      %796 = vmatmul.mubr.f32.gmra.mxu0 %v627
      %v797 = vpop.f32.mrf.mxu0
      %v798 = vadd.f32 0.0, %v797
      %v799 = vpop.f32.mrf.mxu0
      %800 = vmatprep.mubr.f32.mxu0 0.0
      %801 = vmatmul.mubr.f32.gmra.mxu0 %v630
      %v802 = vpop.f32.mrf.mxu0
      %v803 = vadd.f32 0.0, %v802
      %v804 = vpop.f32.mrf.mxu0
      %805 = vmatprep.mubr.f32.mxu0 0.0
      %806 = vmatmul.mubr.f32.gmra.mxu0 %v633
      %v807 = vpop.f32.mrf.mxu0
      %v808 = vadd.f32 0.0, %v807
      %v809 = vpop.f32.mrf.mxu0
      %810 = vmatprep.mubr.f32.mxu0 0.0
      %811 = vmatmul.mubr.f32.gmra.mxu0 %v636
      %v812 = vpop.f32.mrf.mxu0
      %v813 = vadd.f32 0.0, %v812
      %v814 = vpop.f32.mrf.mxu0
      %815 = vmatprep.mubr.f32.mxu0 0.0
      %816 = vmatmul.mubr.f32.gmra.mxu0 %v639
      %v817 = vpop.f32.mrf.mxu0
      %v818 = vadd.f32 0.0, %v817
      %v819 = vpop.f32.mrf.mxu0
      %820 = vmatprep.mubr.f32.mxu0 0.0
      %821 = vmatmul.mubr.f32.gmra.mxu0 %v642
      %v822 = vpop.f32.mrf.mxu0
      %v823 = vadd.f32 0.0, %v822
      %v824 = vpop.f32.mrf.mxu0
      %825 = vmatprep.mubr.f32.mxu0 0.0
      %826 = vmatmul.mubr.f32.gmra.mxu0 %v645
      %v827 = vpop.f32.mrf.mxu0
      %v828 = vadd.f32 0.0, %v827
      %v829 = vpop.f32.mrf.mxu0
      %830 = vmatprep.mubr.f32.mxu0 0.0
      %831 = vmatmul.mubr.f32.gmra.mxu0 %v648
      %v832 = vpop.f32.mrf.mxu0
      %v833 = vadd.f32 0.0, %v832
      %v834 = vpop.f32.mrf.mxu0
      %835 = vmatprep.mubr.f32.mxu0 0.0
      %836 = vmatmul.mubr.f32.gmra.mxu0 %v651
      %v837 = vpop.f32.mrf.mxu0
      %v838 = vadd.f32 0.0, %v837
      %v839 = vpop.f32.mrf.mxu0
      %840 = vmatprep.mubr.f32.mxu0 0.0
      %841 = vmatmul.mubr.f32.gmra.mxu0 %v654
      %v842 = vpop.f32.mrf.mxu0
      %v843 = vadd.f32 0.0, %v842
      %v844 = vpop.f32.mrf.mxu0
      %845 = vmatprep.mubr.f32.mxu0 0.0
      %846 = vmatmul.mubr.f32.gmra.mxu0 %v657
      %v847 = vpop.f32.mrf.mxu0
      %v848 = vadd.f32 0.0, %v847
      %v849 = vpop.f32.mrf.mxu0
      %850 = vmatprep.mubr.f32.mxu0 0.0
      %851 = vmatmul.mubr.f32.gmra.mxu0 %v660
      %v852 = vpop.f32.mrf.mxu0
      %v853 = vadd.f32 0.0, %v852
      %v854 = vpop.f32.mrf.mxu0
      %855 = vmatprep.mubr.f32.mxu0 0.0
      %856 = vmatmul.mubr.f32.gmra.mxu0 %v663
      %v857 = vpop.f32.mrf.mxu0
      %v858 = vadd.f32 0.0, %v857
      %v859 = vpop.f32.mrf.mxu0
      %860 = vmatprep.mubr.f32.mxu0 0.0
      %861 = vmatmul.mubr.f32.gmra.mxu0 %v666
      %v862 = vpop.f32.mrf.mxu0
      %v863 = vadd.f32 0.0, %v862
      %v864 = vpop.f32.mrf.mxu0
      %865 = vmatprep.mubr.f32.mxu0 0.0
      %866 = vmatmul.mubr.f32.gmra.mxu0 %v669
      %v867 = vpop.f32.mrf.mxu0
      %v868 = vadd.f32 0.0, %v867
      %v869 = vpop.f32.mrf.mxu0
      %870 = vmatprep.mubr.f32.mxu0 0.0
      %871 = vmatmul.mubr.f32.gmra.mxu0 %v672
      %v872 = vpop.f32.mrf.mxu0
      %v873 = vadd.f32 0.0, %v872
      %v874 = vpop.f32.mrf.mxu0
      %875 = vmatprep.mubr.f32.mxu0 0.0
      %876 = vmatmul.mubr.f32.gmra.mxu0 %v675
      %v877 = vpop.f32.mrf.mxu0
      %v878 = vadd.f32 0.0, %v877
      %v879 = vpop.f32.mrf.mxu0
      %880 = vmatprep.mubr.f32.mxu0 0.0
      %881 = vmatmul.mubr.f32.gmra.mxu0 %v678
      %v882 = vpop.f32.mrf.mxu0
      %v883 = vadd.f32 0.0, %v882
      %v884 = vpop.f32.mrf.mxu0
      %885 = vmatprep.mubr.f32.mxu0 0.0
      %886 = vmatmul.mubr.f32.gmra.mxu0 %v681
      %v887 = vpop.f32.mrf.mxu0
      %v888 = vadd.f32 0.0, %v887
      %v889 = vpop.f32.mrf.mxu0
      %890 = vmatprep.mubr.f32.mxu0 0.0
      %891 = vmatmul.mubr.f32.gmra.mxu0 %v684
      %v892 = vpop.f32.mrf.mxu0
      %v893 = vadd.f32 0.0, %v892
      %v894 = vpop.f32.mrf.mxu0
      %895 = vmatprep.mubr.f32.mxu0 0.0
      %896 = vmatmul.mubr.f32.gmra.mxu0 %v687
      %v897 = vpop.f32.mrf.mxu0
      %v898 = vadd.f32 0.0, %v897
      %v899 = vpop.f32.mrf.mxu0
      %900 = vmatprep.mubr.f32.mxu0 0.0
      %901 = vmatmul.mubr.f32.gmra.mxu0 %v690
      %v902 = vpop.f32.mrf.mxu0
      %v903 = vadd.f32 0.0, %v902
      %v904 = vpop.f32.mrf.mxu0
      %905 = vmatprep.mubr.f32.mxu0 0.0
      %906 = vmatmul.mubr.f32.gmra.mxu0 %v693
      %v907 = vpop.f32.mrf.mxu0
      %v908 = vadd.f32 0.0, %v907
      %v909 = vpop.f32.mrf.mxu0
      %910 = vmatprep.mubr.f32.mxu0 0.0
      %911 = vmatmul.mubr.f32.gmra.mxu0 %v696
      %v912 = vpop.f32.mrf.mxu0
      %v913 = vadd.f32 0.0, %v912
      %v914 = vpop.f32.mrf.mxu0
      %915 = vmatprep.mubr.f32.mxu0 0.0
      %916 = vmatmul.mubr.f32.gmra.mxu0 %v699
      %v917 = vpop.f32.mrf.mxu0
      %v918 = vadd.f32 0.0, %v917
      %v919 = vpop.f32.mrf.mxu0
      %920 = vmatprep.mubr.f32.mxu0 0.0
      %921 = vmatmul.mubr.f32.gmra.mxu0 %v702
      %v922 = vpop.f32.mrf.mxu0
      %v923 = vadd.f32 0.0, %v922
      %v924 = vpop.f32.mrf.mxu0
      %925 = vmatprep.mubr.f32.mxu0 0.0
      %926 = vmatmul.mubr.f32.gmra.mxu0 %v705
      %v927 = vpop.f32.mrf.mxu0
      %v928 = vadd.f32 0.0, %v927
      %v929 = vpop.f32.mrf.mxu0
      %930 = vmatprep.mubr.f32.mxu0 0.0
      %931 = vmatmul.mubr.f32.gmra.mxu0 %v708
      %v932 = vpop.f32.mrf.mxu0
      %v933 = vadd.f32 0.0, %v932
      %v934 = vpop.f32.mrf.mxu0
      %935 = vmatprep.mubr.f32.mxu0 0.0
      %936 = vmatmul.mubr.f32.gmra.mxu0 %v711
      %v937 = vpop.f32.mrf.mxu0
      %v938 = vadd.f32 0.0, %v937
      %v939 = vpop.f32.mrf.mxu0
      %940 = vdwg.mxu0
      %v941 = vld [vmem:[#allocation2] sm:$0xff]
      %v942 = vld [vmem:[#allocation2 + $0x8] sm:$0xff]
      %v943 = vld [vmem:[#allocation2 + $0x10] sm:$0xff]
      %v944 = vld [vmem:[#allocation2 + $0x18] sm:$0xff]
      %v945 = vld [vmem:[#allocation2 + $0x20] sm:$0xff]
      %v946 = vld [vmem:[#allocation2 + $0x28] sm:$0xff]
      %v947 = vld [vmem:[#allocation2 + $0x30] sm:$0xff]
      %v948 = vld [vmem:[#allocation2 + $0x38] sm:$0xff]
      %v949 = vld [vmem:[#allocation2 + $0x40] sm:$0xff]
      %v950 = vld [vmem:[#allocation2 + $0x48] sm:$0xff]
      %v951 = vld [vmem:[#allocation2 + $0x50] sm:$0xff]
      %v952 = vld [vmem:[#allocation2 + $0x58] sm:$0xff]
      %v953 = vld [vmem:[#allocation2 + $0x60] sm:$0xff]
      %v954 = vld [vmem:[#allocation2 + $0x68] sm:$0xff]
      %v955 = vld [vmem:[#allocation2 + $0x70] sm:$0xff]
      %v956 = vld [vmem:[#allocation2 + $0x78] sm:$0xff]
      %v957 = vld [vmem:[#allocation2 + $0x80] sm:$0xff]
      %v958 = vld [vmem:[#allocation2 + $0x88] sm:$0xff]
      %v959 = vld [vmem:[#allocation2 + $0x90] sm:$0xff]
      %v960 = vld [vmem:[#allocation2 + $0x98] sm:$0xff]
      %v961 = vld [vmem:[#allocation2 + $0xa0] sm:$0xff]
      %v962 = vld [vmem:[#allocation2 + $0xa8] sm:$0xff]
      %v963 = vld [vmem:[#allocation2 + $0xb0] sm:$0xff]
      %v964 = vld [vmem:[#allocation2 + $0xb8] sm:$0xff]
      %v965 = vld [vmem:[#allocation2 + $0xc0] sm:$0xff]
      %v966 = vld [vmem:[#allocation2 + $0xc8] sm:$0xff]
      %v967 = vld [vmem:[#allocation2 + $0xd0] sm:$0xff]
      %v968 = vld [vmem:[#allocation2 + $0xd8] sm:$0xff]
      %v969 = vld [vmem:[#allocation2 + $0xe0] sm:$0xff]
      %v970 = vld [vmem:[#allocation2 + $0xe8] sm:$0xff]
      %v971 = vld [vmem:[#allocation2 + $0xf0] sm:$0xff]
      %v972 = vld [vmem:[#allocation2 + $0xf8] sm:$0xff]
      %v973 = vadd.f32 %v941, %v783
      %v974 = vadd.f32 %v942, %v788
      %v975 = vadd.f32 %v943, %v793
      %v976 = vadd.f32 %v944, %v798
      %v977 = vadd.f32 %v945, %v803
      %v978 = vadd.f32 %v946, %v808
      %v979 = vadd.f32 %v947, %v813
      %v980 = vadd.f32 %v948, %v818
      %v981 = vadd.f32 %v949, %v823
      %v982 = vadd.f32 %v950, %v828
      %v983 = vadd.f32 %v951, %v833
      %v984 = vadd.f32 %v952, %v838
      %v985 = vadd.f32 %v953, %v843
      %v986 = vadd.f32 %v954, %v848
      %v987 = vadd.f32 %v955, %v853
      %v988 = vadd.f32 %v956, %v858
      %v989 = vadd.f32 %v957, %v863
      %v990 = vadd.f32 %v958, %v868
      %v991 = vadd.f32 %v959, %v873
      %v992 = vadd.f32 %v960, %v878
      %v993 = vadd.f32 %v961, %v883
      %v994 = vadd.f32 %v962, %v888
      %v995 = vadd.f32 %v963, %v893
      %v996 = vadd.f32 %v964, %v898
      %v997 = vadd.f32 %v965, %v903
      %v998 = vadd.f32 %v966, %v908
      %v999 = vadd.f32 %v967, %v913
      %v1000 = vadd.f32 %v968, %v918
      %v1001 = vadd.f32 %v969, %v923
      %v1002 = vadd.f32 %v970, %v928
      %v1003 = vadd.f32 %v971, %v933
      %v1004 = vadd.f32 %v972, %v938
      %1005 = vst [vmem:[#allocation2] sm:$0xff] %v973
      %1006 = vst [vmem:[#allocation2 + $0x8] sm:$0xff] %v974
      %1007 = vst [vmem:[#allocation2 + $0x10] sm:$0xff] %v975
      %1008 = vst [vmem:[#allocation2 + $0x18] sm:$0xff] %v976
      %1009 = vst [vmem:[#allocation2 + $0x20] sm:$0xff] %v977
      %1010 = vst [vmem:[#allocation2 + $0x28] sm:$0xff] %v978
      %1011 = vst [vmem:[#allocation2 + $0x30] sm:$0xff] %v979
      %1012 = vst [vmem:[#allocation2 + $0x38] sm:$0xff] %v980
      %1013 = vst [vmem:[#allocation2 + $0x40] sm:$0xff] %v981
      %1014 = vst [vmem:[#allocation2 + $0x48] sm:$0xff] %v982
      %1015 = vst [vmem:[#allocation2 + $0x50] sm:$0xff] %v983
      %1016 = vst [vmem:[#allocation2 + $0x58] sm:$0xff] %v984
      %1017 = vst [vmem:[#allocation2 + $0x60] sm:$0xff] %v985
      %1018 = vst [vmem:[#allocation2 + $0x68] sm:$0xff] %v986
      %1019 = vst [vmem:[#allocation2 + $0x70] sm:$0xff] %v987
      %1020 = vst [vmem:[#allocation2 + $0x78] sm:$0xff] %v988
      %1021 = vst [vmem:[#allocation2 + $0x80] sm:$0xff] %v989
      %1022 = vst [vmem:[#allocation2 + $0x88] sm:$0xff] %v990
      %1023 = vst [vmem:[#allocation2 + $0x90] sm:$0xff] %v991
      %1024 = vst [vmem:[#allocation2 + $0x98] sm:$0xff] %v992
      %1025 = vst [vmem:[#allocation2 + $0xa0] sm:$0xff] %v993
      %1026 = vst [vmem:[#allocation2 + $0xa8] sm:$0xff] %v994
      %1027 = vst [vmem:[#allocation2 + $0xb0] sm:$0xff] %v995
      %1028 = vst [vmem:[#allocation2 + $0xb8] sm:$0xff] %v996
      %1029 = vst [vmem:[#allocation2 + $0xc0] sm:$0xff] %v997
      %1030 = vst [vmem:[#allocation2 + $0xc8] sm:$0xff] %v998
      %1031 = vst [vmem:[#allocation2 + $0xd0] sm:$0xff] %v999
      %1032 = vst [vmem:[#allocation2 + $0xd8] sm:$0xff] %v1000
      %1033 = vst [vmem:[#allocation2 + $0xe0] sm:$0xff] %v1001
      %1034 = vst [vmem:[#allocation2 + $0xe8] sm:$0xff] %v1002
      %1035 = vst [vmem:[#allocation2 + $0xf0] sm:$0xff] %v1003
      %1036 = vst [vmem:[#allocation2 + $0xf8] sm:$0xff] %v1004
      %v1037 = vld [vmem:[%s191 + $0x2] sm:$0xff]
      %v1038 = vld [vmem:[%s191 + $0xa] sm:$0xff]
      %v1039 = vld [vmem:[%s191 + $0x1a] sm:$0xff]
      %v1040 = vld [vmem:[%s191 + $0x22] sm:$0xff]
      %v1041 = vld [vmem:[%s191 + $0x32] sm:$0xff]
      %v1042 = vld [vmem:[%s191 + $0x3a] sm:$0xff]
      %v1043 = vld [vmem:[%s191 + $0x4a] sm:$0xff]
      %v1044 = vld [vmem:[%s191 + $0x52] sm:$0xff]
      %v1045 = vld [vmem:[%s191 + $0x62] sm:$0xff]
      %v1046 = vld [vmem:[%s191 + $0x6a] sm:$0xff]
      %v1047 = vld [vmem:[%s191 + $0x7a] sm:$0xff]
      %v1048 = vld [vmem:[%s191 + $0x82] sm:$0xff]
      %v1049 = vld [vmem:[%s191 + $0x92] sm:$0xff]
      %v1050 = vld [vmem:[%s191 + $0x9a] sm:$0xff]
      %v1051 = vld [vmem:[%s191 + $0xaa] sm:$0xff]
      %v1052 = vld [vmem:[%s191 + $0xb2] sm:$0xff]
      %v1053 = vld [vmem:[%s191 + $0xc2] sm:$0xff]
      %v1054 = vld [vmem:[%s191 + $0xca] sm:$0xff]
      %v1055 = vld [vmem:[%s191 + $0xda] sm:$0xff]
      %v1056 = vld [vmem:[%s191 + $0xe2] sm:$0xff]
      %v1057 = vld [vmem:[%s191 + $0xf2] sm:$0xff]
      %v1058 = vld [vmem:[%s191 + $0xfa] sm:$0xff]
      %v1059 = vld [vmem:[%s191 + $0x10a] sm:$0xff]
      %v1060 = vld [vmem:[%s191 + $0x112] sm:$0xff]
      %v1061 = vld [vmem:[%s191 + $0x122] sm:$0xff]
      %v1062 = vld [vmem:[%s191 + $0x12a] sm:$0xff]
      %v1063 = vld [vmem:[%s191 + $0x13a] sm:$0xff]
      %v1064 = vld [vmem:[%s191 + $0x142] sm:$0xff]
      %v1065 = vld [vmem:[%s191 + $0x152] sm:$0xff]
      %v1066 = vld [vmem:[%s191 + $0x15a] sm:$0xff]
      %v1067 = vld [vmem:[%s191 + $0x16a] sm:$0xff]
      %v1068 = vld [vmem:[%s191 + $0x172] sm:$0xff]
      %s1069 = scalar_lea.vmem %s1, 8
      %v1070 = vld [vmem:[%s1069] sm:$0xf]
      %v1072 = vsel %vm225, %v1037, 0
      %v1075 = vsel %vm225, %v1038, 0
      %v1078 = vsel %vm225, %v1039, 0
      %v1081 = vsel %vm225, %v1040, 0
      %v1084 = vsel %vm225, %v1041, 0
      %v1087 = vsel %vm225, %v1042, 0
      %v1090 = vsel %vm225, %v1043, 0
      %v1093 = vsel %vm225, %v1044, 0
      %v1096 = vsel %vm225, %v1045, 0
      %v1099 = vsel %vm225, %v1046, 0
      %v1102 = vsel %vm225, %v1047, 0
      %v1105 = vsel %vm225, %v1048, 0
      %v1108 = vsel %vm225, %v1049, 0
      %v1111 = vsel %vm225, %v1050, 0
      %v1114 = vsel %vm225, %v1051, 0
      %v1117 = vsel %vm225, %v1052, 0
      %v1120 = vsel %vm225, %v1053, 0
      %v1123 = vsel %vm225, %v1054, 0
      %v1126 = vsel %vm225, %v1055, 0
      %v1129 = vsel %vm225, %v1056, 0
      %v1132 = vsel %vm225, %v1057, 0
      %v1135 = vsel %vm225, %v1058, 0
      %v1138 = vsel %vm225, %v1059, 0
      %v1141 = vsel %vm225, %v1060, 0
      %v1144 = vsel %vm225, %v1061, 0
      %v1147 = vsel %vm225, %v1062, 0
      %v1150 = vsel %vm225, %v1063, 0
      %v1153 = vsel %vm225, %v1064, 0
      %v1156 = vsel %vm225, %v1065, 0
      %v1159 = vsel %vm225, %v1066, 0
      %v1162 = vsel %vm225, %v1067, 0
      %v1165 = vsel %vm225, %v1068, 0
      %v1168 = vsel %vm322, %v1070, 0
      %1170 = vmatprep.subr.mxu0 0.0
      %1171 = vmatpush1.msra.mxu0 0.0
      %1172 = vmatprep.subr.mxu0 0.0
      %1173 = vmatpush1.msra.mxu0 0.0
      %1174 = vmatprep.subr.mxu0 0.0
      %1175 = vmatpush1.msra.mxu0 0.0
      %1176 = vmatprep.subr.mxu0 0.0
      %1177 = vmatpush1.msra.mxu0 0.0
      %1178 = vmatprep.subr.mxu0 0.0
      %1179 = vmatpush1.msra.mxu0 0.0
      %1180 = vmatprep.subr.mxu0 0.0
      %1181 = vmatpush1.msra.mxu0 0.0
      %1182 = vmatprep.subr.mxu0 0.0
      %1183 = vmatpush1.msra.mxu0 0.0
      %1184 = vmatprep.subr.mxu0 0.0
      %1185 = vmatpush1.msra.mxu0 0.0
      %1186 = vmatprep.subr.mxu0 0.0
      %1187 = vmatpush1.msra.mxu0 0.0
      %1188 = vmatprep.subr.mxu0 0.0
      %1189 = vmatpush1.msra.mxu0 0.0
      %1190 = vmatprep.subr.mxu0 0.0
      %1191 = vmatpush1.msra.mxu0 0.0
      %1192 = vmatprep.subr.mxu0 0.0
      %1193 = vmatpush1.msra.mxu0 0.0
      %1194 = vmatprep.subr.mxu0 0.0
      %1195 = vmatpush1.msra.mxu0 0.0
      %1196 = vmatprep.subr.mxu0 0.0
      %1197 = vmatpush1.msra.mxu0 0.0
      %1198 = vmatprep.subr.mxu0 0.0
      %1199 = vmatpush1.msra.mxu0 0.0
      %1200 = vmatprep.subr.mxu0 0.0
      %1201 = vmatpush1.msra.mxu0 %v1168
      %1202 = vmatprep.subr.mxu0 0.0
      %1203 = vmatpush2.msra.mxu0 0.0
      %1204 = vmatprep.subr.mxu0 0.0
      %1205 = vmatpush2.msra.mxu0 0.0
      %1206 = vmatprep.subr.mxu0 0.0
      %1207 = vmatpush2.msra.mxu0 0.0
      %1208 = vmatprep.subr.mxu0 0.0
      %1209 = vmatpush2.msra.mxu0 0.0
      %1210 = vmatprep.subr.mxu0 0.0
      %1211 = vmatpush2.msra.mxu0 0.0
      %1212 = vmatprep.subr.mxu0 0.0
      %1213 = vmatpush2.msra.mxu0 0.0
      %1214 = vmatprep.subr.mxu0 0.0
      %1215 = vmatpush2.msra.mxu0 0.0
      %1216 = vmatprep.subr.mxu0 0.0
      %1217 = vmatpush2.msra.mxu0 0.0
      %1218 = vmatprep.subr.mxu0 0.0
      %1219 = vmatpush2.msra.mxu0 0.0
      %1220 = vmatprep.subr.mxu0 0.0
      %1221 = vmatpush2.msra.mxu0 0.0
      %1222 = vmatprep.subr.mxu0 0.0
      %1223 = vmatpush2.msra.mxu0 0.0
      %1224 = vmatprep.subr.mxu0 0.0
      %1225 = vmatpush2.msra.mxu0 0.0
      %1226 = vmatprep.subr.mxu0 0.0
      %1227 = vmatpush2.msra.mxu0 0.0
      %1228 = vmatprep.subr.mxu0 0.0
      %1229 = vmatpush2.msra.mxu0 0.0
      %1230 = vmatprep.subr.mxu0 0.0
      %1231 = vmatpush2.msra.mxu0 0.0
      %1232 = vmatprep.subr.mxu0 0.0
      %1233 = vmatpush2.msra.mxu0 0.0
      %1234 = vmatprep.mubr.f32.mxu0 0.0
      %1235 = vmatmul.mubr.f32.gmra.mxu0 %v1072
      %v1236 = vpop.f32.mrf.mxu0
      %v1237 = vadd.f32 0.0, %v1236
      %v1238 = vpop.f32.mrf.mxu0
      %1239 = vmatprep.mubr.f32.mxu0 0.0
      %1240 = vmatmul.mubr.f32.gmra.mxu0 %v1075
      %v1241 = vpop.f32.mrf.mxu0
      %v1242 = vadd.f32 0.0, %v1241
      %v1243 = vpop.f32.mrf.mxu0
      %1244 = vmatprep.mubr.f32.mxu0 0.0
      %1245 = vmatmul.mubr.f32.gmra.mxu0 %v1078
      %v1246 = vpop.f32.mrf.mxu0
      %v1247 = vadd.f32 0.0, %v1246
      %v1248 = vpop.f32.mrf.mxu0
      %1249 = vmatprep.mubr.f32.mxu0 0.0
      %1250 = vmatmul.mubr.f32.gmra.mxu0 %v1081
      %v1251 = vpop.f32.mrf.mxu0
      %v1252 = vadd.f32 0.0, %v1251
      %v1253 = vpop.f32.mrf.mxu0
      %1254 = vmatprep.mubr.f32.mxu0 0.0
      %1255 = vmatmul.mubr.f32.gmra.mxu0 %v1084
      %v1256 = vpop.f32.mrf.mxu0
      %v1257 = vadd.f32 0.0, %v1256
      %v1258 = vpop.f32.mrf.mxu0
      %1259 = vmatprep.mubr.f32.mxu0 0.0
      %1260 = vmatmul.mubr.f32.gmra.mxu0 %v1087
      %v1261 = vpop.f32.mrf.mxu0
      %v1262 = vadd.f32 0.0, %v1261
      %v1263 = vpop.f32.mrf.mxu0
      %1264 = vmatprep.mubr.f32.mxu0 0.0
      %1265 = vmatmul.mubr.f32.gmra.mxu0 %v1090
      %v1266 = vpop.f32.mrf.mxu0
      %v1267 = vadd.f32 0.0, %v1266
      %v1268 = vpop.f32.mrf.mxu0
      %1269 = vmatprep.mubr.f32.mxu0 0.0
      %1270 = vmatmul.mubr.f32.gmra.mxu0 %v1093
      %v1271 = vpop.f32.mrf.mxu0
      %v1272 = vadd.f32 0.0, %v1271
      %v1273 = vpop.f32.mrf.mxu0
      %1274 = vmatprep.mubr.f32.mxu0 0.0
      %1275 = vmatmul.mubr.f32.gmra.mxu0 %v1096
      %v1276 = vpop.f32.mrf.mxu0
      %v1277 = vadd.f32 0.0, %v1276
      %v1278 = vpop.f32.mrf.mxu0
      %1279 = vmatprep.mubr.f32.mxu0 0.0
      %1280 = vmatmul.mubr.f32.gmra.mxu0 %v1099
      %v1281 = vpop.f32.mrf.mxu0
      %v1282 = vadd.f32 0.0, %v1281
      %v1283 = vpop.f32.mrf.mxu0
      %1284 = vmatprep.mubr.f32.mxu0 0.0
      %1285 = vmatmul.mubr.f32.gmra.mxu0 %v1102
      %v1286 = vpop.f32.mrf.mxu0
      %v1287 = vadd.f32 0.0, %v1286
      %v1288 = vpop.f32.mrf.mxu0
      %1289 = vmatprep.mubr.f32.mxu0 0.0
      %1290 = vmatmul.mubr.f32.gmra.mxu0 %v1105
      %v1291 = vpop.f32.mrf.mxu0
      %v1292 = vadd.f32 0.0, %v1291
      %v1293 = vpop.f32.mrf.mxu0
      %1294 = vmatprep.mubr.f32.mxu0 0.0
      %1295 = vmatmul.mubr.f32.gmra.mxu0 %v1108
      %v1296 = vpop.f32.mrf.mxu0
      %v1297 = vadd.f32 0.0, %v1296
      %v1298 = vpop.f32.mrf.mxu0
      %1299 = vmatprep.mubr.f32.mxu0 0.0
      %1300 = vmatmul.mubr.f32.gmra.mxu0 %v1111
      %v1301 = vpop.f32.mrf.mxu0
      %v1302 = vadd.f32 0.0, %v1301
      %v1303 = vpop.f32.mrf.mxu0
      %1304 = vmatprep.mubr.f32.mxu0 0.0
      %1305 = vmatmul.mubr.f32.gmra.mxu0 %v1114
      %v1306 = vpop.f32.mrf.mxu0
      %v1307 = vadd.f32 0.0, %v1306
      %v1308 = vpop.f32.mrf.mxu0
      %1309 = vmatprep.mubr.f32.mxu0 0.0
      %1310 = vmatmul.mubr.f32.gmra.mxu0 %v1117
      %v1311 = vpop.f32.mrf.mxu0
      %v1312 = vadd.f32 0.0, %v1311
      %v1313 = vpop.f32.mrf.mxu0
      %1314 = vmatprep.mubr.f32.mxu0 0.0
      %1315 = vmatmul.mubr.f32.gmra.mxu0 %v1120
      %v1316 = vpop.f32.mrf.mxu0
      %v1317 = vadd.f32 0.0, %v1316
      %v1318 = vpop.f32.mrf.mxu0
      %1319 = vmatprep.mubr.f32.mxu0 0.0
      %1320 = vmatmul.mubr.f32.gmra.mxu0 %v1123
      %v1321 = vpop.f32.mrf.mxu0
      %v1322 = vadd.f32 0.0, %v1321
      %v1323 = vpop.f32.mrf.mxu0
      %1324 = vmatprep.mubr.f32.mxu0 0.0
      %1325 = vmatmul.mubr.f32.gmra.mxu0 %v1126
      %v1326 = vpop.f32.mrf.mxu0
      %v1327 = vadd.f32 0.0, %v1326
      %v1328 = vpop.f32.mrf.mxu0
      %1329 = vmatprep.mubr.f32.mxu0 0.0
      %1330 = vmatmul.mubr.f32.gmra.mxu0 %v1129
      %v1331 = vpop.f32.mrf.mxu0
      %v1332 = vadd.f32 0.0, %v1331
      %v1333 = vpop.f32.mrf.mxu0
      %1334 = vmatprep.mubr.f32.mxu0 0.0
      %1335 = vmatmul.mubr.f32.gmra.mxu0 %v1132
      %v1336 = vpop.f32.mrf.mxu0
      %v1337 = vadd.f32 0.0, %v1336
      %v1338 = vpop.f32.mrf.mxu0
      %1339 = vmatprep.mubr.f32.mxu0 0.0
      %1340 = vmatmul.mubr.f32.gmra.mxu0 %v1135
      %v1341 = vpop.f32.mrf.mxu0
      %v1342 = vadd.f32 0.0, %v1341
      %v1343 = vpop.f32.mrf.mxu0
      %1344 = vmatprep.mubr.f32.mxu0 0.0
      %1345 = vmatmul.mubr.f32.gmra.mxu0 %v1138
      %v1346 = vpop.f32.mrf.mxu0
      %v1347 = vadd.f32 0.0, %v1346
      %v1348 = vpop.f32.mrf.mxu0
      %1349 = vmatprep.mubr.f32.mxu0 0.0
      %1350 = vmatmul.mubr.f32.gmra.mxu0 %v1141
      %v1351 = vpop.f32.mrf.mxu0
      %v1352 = vadd.f32 0.0, %v1351
      %v1353 = vpop.f32.mrf.mxu0
      %1354 = vmatprep.mubr.f32.mxu0 0.0
      %1355 = vmatmul.mubr.f32.gmra.mxu0 %v1144
      %v1356 = vpop.f32.mrf.mxu0
      %v1357 = vadd.f32 0.0, %v1356
      %v1358 = vpop.f32.mrf.mxu0
      %1359 = vmatprep.mubr.f32.mxu0 0.0
      %1360 = vmatmul.mubr.f32.gmra.mxu0 %v1147
      %v1361 = vpop.f32.mrf.mxu0
      %v1362 = vadd.f32 0.0, %v1361
      %v1363 = vpop.f32.mrf.mxu0
      %1364 = vmatprep.mubr.f32.mxu0 0.0
      %1365 = vmatmul.mubr.f32.gmra.mxu0 %v1150
      %v1366 = vpop.f32.mrf.mxu0
      %v1367 = vadd.f32 0.0, %v1366
      %v1368 = vpop.f32.mrf.mxu0
      %1369 = vmatprep.mubr.f32.mxu0 0.0
      %1370 = vmatmul.mubr.f32.gmra.mxu0 %v1153
      %v1371 = vpop.f32.mrf.mxu0
      %v1372 = vadd.f32 0.0, %v1371
      %v1373 = vpop.f32.mrf.mxu0
      %1374 = vmatprep.mubr.f32.mxu0 0.0
      %1375 = vmatmul.mubr.f32.gmra.mxu0 %v1156
      %v1376 = vpop.f32.mrf.mxu0
      %v1377 = vadd.f32 0.0, %v1376
      %v1378 = vpop.f32.mrf.mxu0
      %1379 = vmatprep.mubr.f32.mxu0 0.0
      %1380 = vmatmul.mubr.f32.gmra.mxu0 %v1159
      %v1381 = vpop.f32.mrf.mxu0
      %v1382 = vadd.f32 0.0, %v1381
      %v1383 = vpop.f32.mrf.mxu0
      %1384 = vmatprep.mubr.f32.mxu0 0.0
      %1385 = vmatmul.mubr.f32.gmra.mxu0 %v1162
      %v1386 = vpop.f32.mrf.mxu0
      %v1387 = vadd.f32 0.0, %v1386
      %v1388 = vpop.f32.mrf.mxu0
      %1389 = vmatprep.mubr.f32.mxu0 0.0
      %1390 = vmatmul.mubr.f32.gmra.mxu0 %v1165
      %v1391 = vpop.f32.mrf.mxu0
      %v1392 = vadd.f32 0.0, %v1391
      %v1393 = vpop.f32.mrf.mxu0
      %1394 = vdwg.mxu0
      %v1395 = vld [vmem:[#allocation2] sm:$0xff]
      %v1396 = vld [vmem:[#allocation2 + $0x8] sm:$0xff]
      %v1397 = vld [vmem:[#allocation2 + $0x10] sm:$0xff]
      %v1398 = vld [vmem:[#allocation2 + $0x18] sm:$0xff]
      %v1399 = vld [vmem:[#allocation2 + $0x20] sm:$0xff]
      %v1400 = vld [vmem:[#allocation2 + $0x28] sm:$0xff]
      %v1401 = vld [vmem:[#allocation2 + $0x30] sm:$0xff]
      %v1402 = vld [vmem:[#allocation2 + $0x38] sm:$0xff]
      %v1403 = vld [vmem:[#allocation2 + $0x40] sm:$0xff]
      %v1404 = vld [vmem:[#allocation2 + $0x48] sm:$0xff]
      %v1405 = vld [vmem:[#allocation2 + $0x50] sm:$0xff]
      %v1406 = vld [vmem:[#allocation2 + $0x58] sm:$0xff]
      %v1407 = vld [vmem:[#allocation2 + $0x60] sm:$0xff]
      %v1408 = vld [vmem:[#allocation2 + $0x68] sm:$0xff]
      %v1409 = vld [vmem:[#allocation2 + $0x70] sm:$0xff]
      %v1410 = vld [vmem:[#allocation2 + $0x78] sm:$0xff]
      %v1411 = vld [vmem:[#allocation2 + $0x80] sm:$0xff]
      %v1412 = vld [vmem:[#allocation2 + $0x88] sm:$0xff]
      %v1413 = vld [vmem:[#allocation2 + $0x90] sm:$0xff]
      %v1414 = vld [vmem:[#allocation2 + $0x98] sm:$0xff]
      %v1415 = vld [vmem:[#allocation2 + $0xa0] sm:$0xff]
      %v1416 = vld [vmem:[#allocation2 + $0xa8] sm:$0xff]
      %v1417 = vld [vmem:[#allocation2 + $0xb0] sm:$0xff]
      %v1418 = vld [vmem:[#allocation2 + $0xb8] sm:$0xff]
      %v1419 = vld [vmem:[#allocation2 + $0xc0] sm:$0xff]
      %v1420 = vld [vmem:[#allocation2 + $0xc8] sm:$0xff]
      %v1421 = vld [vmem:[#allocation2 + $0xd0] sm:$0xff]
      %v1422 = vld [vmem:[#allocation2 + $0xd8] sm:$0xff]
      %v1423 = vld [vmem:[#allocation2 + $0xe0] sm:$0xff]
      %v1424 = vld [vmem:[#allocation2 + $0xe8] sm:$0xff]
      %v1425 = vld [vmem:[#allocation2 + $0xf0] sm:$0xff]
      %v1426 = vld [vmem:[#allocation2 + $0xf8] sm:$0xff]
      %v1427 = vadd.f32 %v1395, %v1237
      %v1428 = vadd.f32 %v1396, %v1242
      %v1429 = vadd.f32 %v1397, %v1247
      %v1430 = vadd.f32 %v1398, %v1252
      %v1431 = vadd.f32 %v1399, %v1257
      %v1432 = vadd.f32 %v1400, %v1262
      %v1433 = vadd.f32 %v1401, %v1267
      %v1434 = vadd.f32 %v1402, %v1272
      %v1435 = vadd.f32 %v1403, %v1277
      %v1436 = vadd.f32 %v1404, %v1282
      %v1437 = vadd.f32 %v1405, %v1287
      %v1438 = vadd.f32 %v1406, %v1292
      %v1439 = vadd.f32 %v1407, %v1297
      %v1440 = vadd.f32 %v1408, %v1302
      %v1441 = vadd.f32 %v1409, %v1307
      %v1442 = vadd.f32 %v1410, %v1312
      %v1443 = vadd.f32 %v1411, %v1317
      %v1444 = vadd.f32 %v1412, %v1322
      %v1445 = vadd.f32 %v1413, %v1327
      %v1446 = vadd.f32 %v1414, %v1332
      %v1447 = vadd.f32 %v1415, %v1337
      %v1448 = vadd.f32 %v1416, %v1342
      %v1449 = vadd.f32 %v1417, %v1347
      %v1450 = vadd.f32 %v1418, %v1352
      %v1451 = vadd.f32 %v1419, %v1357
      %v1452 = vadd.f32 %v1420, %v1362
      %v1453 = vadd.f32 %v1421, %v1367
      %v1454 = vadd.f32 %v1422, %v1372
      %v1455 = vadd.f32 %v1423, %v1377
      %v1456 = vadd.f32 %v1424, %v1382
      %v1457 = vadd.f32 %v1425, %v1387
      %v1458 = vadd.f32 %v1426, %v1392
      %1459 = vst [vmem:[#allocation2] sm:$0xff] %v1427
      %1460 = vst [vmem:[#allocation2 + $0x8] sm:$0xff] %v1428
      %1461 = vst [vmem:[#allocation2 + $0x10] sm:$0xff] %v1429
      %1462 = vst [vmem:[#allocation2 + $0x18] sm:$0xff] %v1430
      %1463 = vst [vmem:[#allocation2 + $0x20] sm:$0xff] %v1431
      %1464 = vst [vmem:[#allocation2 + $0x28] sm:$0xff] %v1432
      %1465 = vst [vmem:[#allocation2 + $0x30] sm:$0xff] %v1433
      %1466 = vst [vmem:[#allocation2 + $0x38] sm:$0xff] %v1434
      %1467 = vst [vmem:[#allocation2 + $0x40] sm:$0xff] %v1435
      %1468 = vst [vmem:[#allocation2 + $0x48] sm:$0xff] %v1436
      %1469 = vst [vmem:[#allocation2 + $0x50] sm:$0xff] %v1437
      %1470 = vst [vmem:[#allocation2 + $0x58] sm:$0xff] %v1438
      %1471 = vst [vmem:[#allocation2 + $0x60] sm:$0xff] %v1439
      %1472 = vst [vmem:[#allocation2 + $0x68] sm:$0xff] %v1440
      %1473 = vst [vmem:[#allocation2 + $0x70] sm:$0xff] %v1441
      %1474 = vst [vmem:[#allocation2 + $0x78] sm:$0xff] %v1442
      %1475 = vst [vmem:[#allocation2 + $0x80] sm:$0xff] %v1443
      %1476 = vst [vmem:[#allocation2 + $0x88] sm:$0xff] %v1444
      %1477 = vst [vmem:[#allocation2 + $0x90] sm:$0xff] %v1445
      %1478 = vst [vmem:[#allocation2 + $0x98] sm:$0xff] %v1446
      %1479 = vst [vmem:[#allocation2 + $0xa0] sm:$0xff] %v1447
      %1480 = vst [vmem:[#allocation2 + $0xa8] sm:$0xff] %v1448
      %1481 = vst [vmem:[#allocation2 + $0xb0] sm:$0xff] %v1449
      %1482 = vst [vmem:[#allocation2 + $0xb8] sm:$0xff] %v1450
      %1483 = vst [vmem:[#allocation2 + $0xc0] sm:$0xff] %v1451
      %1484 = vst [vmem:[#allocation2 + $0xc8] sm:$0xff] %v1452
      %1485 = vst [vmem:[#allocation2 + $0xd0] sm:$0xff] %v1453
      %1486 = vst [vmem:[#allocation2 + $0xd8] sm:$0xff] %v1454
      %1487 = vst [vmem:[#allocation2 + $0xe0] sm:$0xff] %v1455
      %1488 = vst [vmem:[#allocation2 + $0xe8] sm:$0xff] %v1456
      %1489 = vst [vmem:[#allocation2 + $0xf0] sm:$0xff] %v1457
      %1490 = vst [vmem:[#allocation2 + $0xf8] sm:$0xff] %v1458
      %s1491 = sadd.s32 %s189, 1
      %s1492 = smul.u32 %s1491, 24
      %s1493 = scalar_lea.vmem %s180, %s1492
      %v1494 = vld [vmem:[%s1493] sm:$0xff]
      %v1495 = vld [vmem:[%s1493 + $0x8] sm:$0xff]
      %v1496 = vld [vmem:[%s1493 + $0x18] sm:$0xff]
      %v1497 = vld [vmem:[%s1493 + $0x20] sm:$0xff]
      %v1498 = vld [vmem:[%s1493 + $0x30] sm:$0xff]
      %v1499 = vld [vmem:[%s1493 + $0x38] sm:$0xff]
      %v1500 = vld [vmem:[%s1493 + $0x48] sm:$0xff]
      %v1501 = vld [vmem:[%s1493 + $0x50] sm:$0xff]
      %v1502 = vld [vmem:[%s1493 + $0x60] sm:$0xff]
      %v1503 = vld [vmem:[%s1493 + $0x68] sm:$0xff]
      %v1504 = vld [vmem:[%s1493 + $0x78] sm:$0xff]
      %v1505 = vld [vmem:[%s1493 + $0x80] sm:$0xff]
      %v1506 = vld [vmem:[%s1493 + $0x90] sm:$0xff]
      %v1507 = vld [vmem:[%s1493 + $0x98] sm:$0xff]
      %v1508 = vld [vmem:[%s1493 + $0xa8] sm:$0xff]
      %v1509 = vld [vmem:[%s1493 + $0xb0] sm:$0xff]
      %v1510 = vld [vmem:[%s1493 + $0xc0] sm:$0xff]
      %v1511 = vld [vmem:[%s1493 + $0xc8] sm:$0xff]
      %v1512 = vld [vmem:[%s1493 + $0xd8] sm:$0xff]
      %v1513 = vld [vmem:[%s1493 + $0xe0] sm:$0xff]
      %v1514 = vld [vmem:[%s1493 + $0xf0] sm:$0xff]
      %v1515 = vld [vmem:[%s1493 + $0xf8] sm:$0xff]
      %v1516 = vld [vmem:[%s1493 + $0x108] sm:$0xff]
      %v1517 = vld [vmem:[%s1493 + $0x110] sm:$0xff]
      %v1518 = vld [vmem:[%s1493 + $0x120] sm:$0xff]
      %v1519 = vld [vmem:[%s1493 + $0x128] sm:$0xff]
      %v1520 = vld [vmem:[%s1493 + $0x138] sm:$0xff]
      %v1521 = vld [vmem:[%s1493 + $0x140] sm:$0xff]
      %v1522 = vld [vmem:[%s1493 + $0x150] sm:$0xff]
      %v1523 = vld [vmem:[%s1493 + $0x158] sm:$0xff]
      %v1524 = vld [vmem:[%s1493 + $0x168] sm:$0xff]
      %v1525 = vld [vmem:[%s1493 + $0x170] sm:$0xff]
      %s1526 = scalar_lea.vmem %s1, 12
      %v1527 = vld [vmem:[%s1526] sm:$0xf]
      %v1529 = vsel %vm225, %v1494, 0
      %v1532 = vsel %vm225, %v1495, 0
      %v1535 = vsel %vm225, %v1496, 0
      %v1538 = vsel %vm225, %v1497, 0
      %v1541 = vsel %vm225, %v1498, 0
      %v1544 = vsel %vm225, %v1499, 0
      %v1547 = vsel %vm225, %v1500, 0
      %v1550 = vsel %vm225, %v1501, 0
      %v1553 = vsel %vm225, %v1502, 0
      %v1556 = vsel %vm225, %v1503, 0
      %v1559 = vsel %vm225, %v1504, 0
      %v1562 = vsel %vm225, %v1505, 0
      %v1565 = vsel %vm225, %v1506, 0
      %v1568 = vsel %vm225, %v1507, 0
      %v1571 = vsel %vm225, %v1508, 0
      %v1574 = vsel %vm225, %v1509, 0
      %v1577 = vsel %vm225, %v1510, 0
      %v1580 = vsel %vm225, %v1511, 0
      %v1583 = vsel %vm225, %v1512, 0
      %v1586 = vsel %vm225, %v1513, 0
      %v1589 = vsel %vm225, %v1514, 0
      %v1592 = vsel %vm225, %v1515, 0
      %v1595 = vsel %vm225, %v1516, 0
      %v1598 = vsel %vm225, %v1517, 0
      %v1601 = vsel %vm225, %v1518, 0
      %v1604 = vsel %vm225, %v1519, 0
      %v1607 = vsel %vm225, %v1520, 0
      %v1610 = vsel %vm225, %v1521, 0
      %v1613 = vsel %vm225, %v1522, 0
      %v1616 = vsel %vm225, %v1523, 0
      %v1619 = vsel %vm225, %v1524, 0
      %v1622 = vsel %vm225, %v1525, 0
      %v1625 = vsel %vm322, %v1527, 0
      %1627 = vmatprep.subr.mxu0 0.0
      %1628 = vmatpush1.msra.mxu0 0.0
      %1629 = vmatprep.subr.mxu0 0.0
      %1630 = vmatpush1.msra.mxu0 0.0
      %1631 = vmatprep.subr.mxu0 0.0
      %1632 = vmatpush1.msra.mxu0 0.0
      %1633 = vmatprep.subr.mxu0 0.0
      %1634 = vmatpush1.msra.mxu0 0.0
      %1635 = vmatprep.subr.mxu0 0.0
      %1636 = vmatpush1.msra.mxu0 0.0
      %1637 = vmatprep.subr.mxu0 0.0
      %1638 = vmatpush1.msra.mxu0 0.0
      %1639 = vmatprep.subr.mxu0 0.0
      %1640 = vmatpush1.msra.mxu0 0.0
      %1641 = vmatprep.subr.mxu0 0.0
      %1642 = vmatpush1.msra.mxu0 0.0
      %1643 = vmatprep.subr.mxu0 0.0
      %1644 = vmatpush1.msra.mxu0 0.0
      %1645 = vmatprep.subr.mxu0 0.0
      %1646 = vmatpush1.msra.mxu0 0.0
      %1647 = vmatprep.subr.mxu0 0.0
      %1648 = vmatpush1.msra.mxu0 0.0
      %1649 = vmatprep.subr.mxu0 0.0
      %1650 = vmatpush1.msra.mxu0 0.0
      %1651 = vmatprep.subr.mxu0 0.0
      %1652 = vmatpush1.msra.mxu0 0.0
      %1653 = vmatprep.subr.mxu0 0.0
      %1654 = vmatpush1.msra.mxu0 0.0
      %1655 = vmatprep.subr.mxu0 0.0
      %1656 = vmatpush1.msra.mxu0 0.0
      %1657 = vmatprep.subr.mxu0 0.0
      %1658 = vmatpush1.msra.mxu0 %v1625
      %1659 = vmatprep.subr.mxu0 0.0
      %1660 = vmatpush2.msra.mxu0 0.0
      %1661 = vmatprep.subr.mxu0 0.0
      %1662 = vmatpush2.msra.mxu0 0.0
      %1663 = vmatprep.subr.mxu0 0.0
      %1664 = vmatpush2.msra.mxu0 0.0
      %1665 = vmatprep.subr.mxu0 0.0
      %1666 = vmatpush2.msra.mxu0 0.0
      %1667 = vmatprep.subr.mxu0 0.0
      %1668 = vmatpush2.msra.mxu0 0.0
      %1669 = vmatprep.subr.mxu0 0.0
      %1670 = vmatpush2.msra.mxu0 0.0
      %1671 = vmatprep.subr.mxu0 0.0
      %1672 = vmatpush2.msra.mxu0 0.0
      %1673 = vmatprep.subr.mxu0 0.0
      %1674 = vmatpush2.msra.mxu0 0.0
      %1675 = vmatprep.subr.mxu0 0.0
      %1676 = vmatpush2.msra.mxu0 0.0
      %1677 = vmatprep.subr.mxu0 0.0
      %1678 = vmatpush2.msra.mxu0 0.0
      %1679 = vmatprep.subr.mxu0 0.0
      %1680 = vmatpush2.msra.mxu0 0.0
      %1681 = vmatprep.subr.mxu0 0.0
      %1682 = vmatpush2.msra.mxu0 0.0
      %1683 = vmatprep.subr.mxu0 0.0
      %1684 = vmatpush2.msra.mxu0 0.0
      %1685 = vmatprep.subr.mxu0 0.0
      %1686 = vmatpush2.msra.mxu0 0.0
      %1687 = vmatprep.subr.mxu0 0.0
      %1688 = vmatpush2.msra.mxu0 0.0
      %1689 = vmatprep.subr.mxu0 0.0
      %1690 = vmatpush2.msra.mxu0 0.0
      %1691 = vmatprep.mubr.f32.mxu0 0.0
      %1692 = vmatmul.mubr.f32.gmra.mxu0 %v1529
      %v1693 = vpop.f32.mrf.mxu0
      %v1694 = vadd.f32 0.0, %v1693
      %v1695 = vpop.f32.mrf.mxu0
      %1696 = vmatprep.mubr.f32.mxu0 0.0
      %1697 = vmatmul.mubr.f32.gmra.mxu0 %v1532
      %v1698 = vpop.f32.mrf.mxu0
      %v1699 = vadd.f32 0.0, %v1698
      %v1700 = vpop.f32.mrf.mxu0
      %1701 = vmatprep.mubr.f32.mxu0 0.0
      %1702 = vmatmul.mubr.f32.gmra.mxu0 %v1535
      %v1703 = vpop.f32.mrf.mxu0
      %v1704 = vadd.f32 0.0, %v1703
      %v1705 = vpop.f32.mrf.mxu0
      %1706 = vmatprep.mubr.f32.mxu0 0.0
      %1707 = vmatmul.mubr.f32.gmra.mxu0 %v1538
      %v1708 = vpop.f32.mrf.mxu0
      %v1709 = vadd.f32 0.0, %v1708
      %v1710 = vpop.f32.mrf.mxu0
      %1711 = vmatprep.mubr.f32.mxu0 0.0
      %1712 = vmatmul.mubr.f32.gmra.mxu0 %v1541
      %v1713 = vpop.f32.mrf.mxu0
      %v1714 = vadd.f32 0.0, %v1713
      %v1715 = vpop.f32.mrf.mxu0
      %1716 = vmatprep.mubr.f32.mxu0 0.0
      %1717 = vmatmul.mubr.f32.gmra.mxu0 %v1544
      %v1718 = vpop.f32.mrf.mxu0
      %v1719 = vadd.f32 0.0, %v1718
      %v1720 = vpop.f32.mrf.mxu0
      %1721 = vmatprep.mubr.f32.mxu0 0.0
      %1722 = vmatmul.mubr.f32.gmra.mxu0 %v1547
      %v1723 = vpop.f32.mrf.mxu0
      %v1724 = vadd.f32 0.0, %v1723
      %v1725 = vpop.f32.mrf.mxu0
      %1726 = vmatprep.mubr.f32.mxu0 0.0
      %1727 = vmatmul.mubr.f32.gmra.mxu0 %v1550
      %v1728 = vpop.f32.mrf.mxu0
      %v1729 = vadd.f32 0.0, %v1728
      %v1730 = vpop.f32.mrf.mxu0
      %1731 = vmatprep.mubr.f32.mxu0 0.0
      %1732 = vmatmul.mubr.f32.gmra.mxu0 %v1553
      %v1733 = vpop.f32.mrf.mxu0
      %v1734 = vadd.f32 0.0, %v1733
      %v1735 = vpop.f32.mrf.mxu0
      %1736 = vmatprep.mubr.f32.mxu0 0.0
      %1737 = vmatmul.mubr.f32.gmra.mxu0 %v1556
      %v1738 = vpop.f32.mrf.mxu0
      %v1739 = vadd.f32 0.0, %v1738
      %v1740 = vpop.f32.mrf.mxu0
      %1741 = vmatprep.mubr.f32.mxu0 0.0
      %1742 = vmatmul.mubr.f32.gmra.mxu0 %v1559
      %v1743 = vpop.f32.mrf.mxu0
      %v1744 = vadd.f32 0.0, %v1743
      %v1745 = vpop.f32.mrf.mxu0
      %1746 = vmatprep.mubr.f32.mxu0 0.0
      %1747 = vmatmul.mubr.f32.gmra.mxu0 %v1562
      %v1748 = vpop.f32.mrf.mxu0
      %v1749 = vadd.f32 0.0, %v1748
      %v1750 = vpop.f32.mrf.mxu0
      %1751 = vmatprep.mubr.f32.mxu0 0.0
      %1752 = vmatmul.mubr.f32.gmra.mxu0 %v1565
      %v1753 = vpop.f32.mrf.mxu0
      %v1754 = vadd.f32 0.0, %v1753
      %v1755 = vpop.f32.mrf.mxu0
      %1756 = vmatprep.mubr.f32.mxu0 0.0
      %1757 = vmatmul.mubr.f32.gmra.mxu0 %v1568
      %v1758 = vpop.f32.mrf.mxu0
      %v1759 = vadd.f32 0.0, %v1758
      %v1760 = vpop.f32.mrf.mxu0
      %1761 = vmatprep.mubr.f32.mxu0 0.0
      %1762 = vmatmul.mubr.f32.gmra.mxu0 %v1571
      %v1763 = vpop.f32.mrf.mxu0
      %v1764 = vadd.f32 0.0, %v1763
      %v1765 = vpop.f32.mrf.mxu0
      %1766 = vmatprep.mubr.f32.mxu0 0.0
      %1767 = vmatmul.mubr.f32.gmra.mxu0 %v1574
      %v1768 = vpop.f32.mrf.mxu0
      %v1769 = vadd.f32 0.0, %v1768
      %v1770 = vpop.f32.mrf.mxu0
      %1771 = vmatprep.mubr.f32.mxu0 0.0
      %1772 = vmatmul.mubr.f32.gmra.mxu0 %v1577
      %v1773 = vpop.f32.mrf.mxu0
      %v1774 = vadd.f32 0.0, %v1773
      %v1775 = vpop.f32.mrf.mxu0
      %1776 = vmatprep.mubr.f32.mxu0 0.0
      %1777 = vmatmul.mubr.f32.gmra.mxu0 %v1580
      %v1778 = vpop.f32.mrf.mxu0
      %v1779 = vadd.f32 0.0, %v1778
      %v1780 = vpop.f32.mrf.mxu0
      %1781 = vmatprep.mubr.f32.mxu0 0.0
      %1782 = vmatmul.mubr.f32.gmra.mxu0 %v1583
      %v1783 = vpop.f32.mrf.mxu0
      %v1784 = vadd.f32 0.0, %v1783
      %v1785 = vpop.f32.mrf.mxu0
      %1786 = vmatprep.mubr.f32.mxu0 0.0
      %1787 = vmatmul.mubr.f32.gmra.mxu0 %v1586
      %v1788 = vpop.f32.mrf.mxu0
      %v1789 = vadd.f32 0.0, %v1788
      %v1790 = vpop.f32.mrf.mxu0
      %1791 = vmatprep.mubr.f32.mxu0 0.0
      %1792 = vmatmul.mubr.f32.gmra.mxu0 %v1589
      %v1793 = vpop.f32.mrf.mxu0
      %v1794 = vadd.f32 0.0, %v1793
      %v1795 = vpop.f32.mrf.mxu0
      %1796 = vmatprep.mubr.f32.mxu0 0.0
      %1797 = vmatmul.mubr.f32.gmra.mxu0 %v1592
      %v1798 = vpop.f32.mrf.mxu0
      %v1799 = vadd.f32 0.0, %v1798
      %v1800 = vpop.f32.mrf.mxu0
      %1801 = vmatprep.mubr.f32.mxu0 0.0
      %1802 = vmatmul.mubr.f32.gmra.mxu0 %v1595
      %v1803 = vpop.f32.mrf.mxu0
      %v1804 = vadd.f32 0.0, %v1803
      %v1805 = vpop.f32.mrf.mxu0
      %1806 = vmatprep.mubr.f32.mxu0 0.0
      %1807 = vmatmul.mubr.f32.gmra.mxu0 %v1598
      %v1808 = vpop.f32.mrf.mxu0
      %v1809 = vadd.f32 0.0, %v1808
      %v1810 = vpop.f32.mrf.mxu0
      %1811 = vmatprep.mubr.f32.mxu0 0.0
      %1812 = vmatmul.mubr.f32.gmra.mxu0 %v1601
      %v1813 = vpop.f32.mrf.mxu0
      %v1814 = vadd.f32 0.0, %v1813
      %v1815 = vpop.f32.mrf.mxu0
      %1816 = vmatprep.mubr.f32.mxu0 0.0
      %1817 = vmatmul.mubr.f32.gmra.mxu0 %v1604
      %v1818 = vpop.f32.mrf.mxu0
      %v1819 = vadd.f32 0.0, %v1818
      %v1820 = vpop.f32.mrf.mxu0
      %1821 = vmatprep.mubr.f32.mxu0 0.0
      %1822 = vmatmul.mubr.f32.gmra.mxu0 %v1607
      %v1823 = vpop.f32.mrf.mxu0
      %v1824 = vadd.f32 0.0, %v1823
      %v1825 = vpop.f32.mrf.mxu0
      %1826 = vmatprep.mubr.f32.mxu0 0.0
      %1827 = vmatmul.mubr.f32.gmra.mxu0 %v1610
      %v1828 = vpop.f32.mrf.mxu0
      %v1829 = vadd.f32 0.0, %v1828
      %v1830 = vpop.f32.mrf.mxu0
      %1831 = vmatprep.mubr.f32.mxu0 0.0
      %1832 = vmatmul.mubr.f32.gmra.mxu0 %v1613
      %v1833 = vpop.f32.mrf.mxu0
      %v1834 = vadd.f32 0.0, %v1833
      %v1835 = vpop.f32.mrf.mxu0
      %1836 = vmatprep.mubr.f32.mxu0 0.0
      %1837 = vmatmul.mubr.f32.gmra.mxu0 %v1616
      %v1838 = vpop.f32.mrf.mxu0
      %v1839 = vadd.f32 0.0, %v1838
      %v1840 = vpop.f32.mrf.mxu0
      %1841 = vmatprep.mubr.f32.mxu0 0.0
      %1842 = vmatmul.mubr.f32.gmra.mxu0 %v1619
      %v1843 = vpop.f32.mrf.mxu0
      %v1844 = vadd.f32 0.0, %v1843
      %v1845 = vpop.f32.mrf.mxu0
      %1846 = vmatprep.mubr.f32.mxu0 0.0
      %1847 = vmatmul.mubr.f32.gmra.mxu0 %v1622
      %v1848 = vpop.f32.mrf.mxu0
      %v1849 = vadd.f32 0.0, %v1848
      %v1850 = vpop.f32.mrf.mxu0
      %1851 = vdwg.mxu0
      %v1852 = vld [vmem:[#allocation2] sm:$0xff]
      %v1853 = vld [vmem:[#allocation2 + $0x8] sm:$0xff]
      %v1854 = vld [vmem:[#allocation2 + $0x10] sm:$0xff]
      %v1855 = vld [vmem:[#allocation2 + $0x18] sm:$0xff]
      %v1856 = vld [vmem:[#allocation2 + $0x20] sm:$0xff]
      %v1857 = vld [vmem:[#allocation2 + $0x28] sm:$0xff]
      %v1858 = vld [vmem:[#allocation2 + $0x30] sm:$0xff]
      %v1859 = vld [vmem:[#allocation2 + $0x38] sm:$0xff]
      %v1860 = vld [vmem:[#allocation2 + $0x40] sm:$0xff]
      %v1861 = vld [vmem:[#allocation2 + $0x48] sm:$0xff]
      %v1862 = vld [vmem:[#allocation2 + $0x50] sm:$0xff]
      %v1863 = vld [vmem:[#allocation2 + $0x58] sm:$0xff]
      %v1864 = vld [vmem:[#allocation2 + $0x60] sm:$0xff]
      %v1865 = vld [vmem:[#allocation2 + $0x68] sm:$0xff]
      %v1866 = vld [vmem:[#allocation2 + $0x70] sm:$0xff]
      %v1867 = vld [vmem:[#allocation2 + $0x78] sm:$0xff]
      %v1868 = vld [vmem:[#allocation2 + $0x80] sm:$0xff]
      %v1869 = vld [vmem:[#allocation2 + $0x88] sm:$0xff]
      %v1870 = vld [vmem:[#allocation2 + $0x90] sm:$0xff]
      %v1871 = vld [vmem:[#allocation2 + $0x98] sm:$0xff]
      %v1872 = vld [vmem:[#allocation2 + $0xa0] sm:$0xff]
      %v1873 = vld [vmem:[#allocation2 + $0xa8] sm:$0xff]
      %v1874 = vld [vmem:[#allocation2 + $0xb0] sm:$0xff]
      %v1875 = vld [vmem:[#allocation2 + $0xb8] sm:$0xff]
      %v1876 = vld [vmem:[#allocation2 + $0xc0] sm:$0xff]
      %v1877 = vld [vmem:[#allocation2 + $0xc8] sm:$0xff]
      %v1878 = vld [vmem:[#allocation2 + $0xd0] sm:$0xff]
      %v1879 = vld [vmem:[#allocation2 + $0xd8] sm:$0xff]
      %v1880 = vld [vmem:[#allocation2 + $0xe0] sm:$0xff]
      %v1881 = vld [vmem:[#allocation2 + $0xe8] sm:$0xff]
      %v1882 = vld [vmem:[#allocation2 + $0xf0] sm:$0xff]
      %v1883 = vld [vmem:[#allocation2 + $0xf8] sm:$0xff]
      %v1884 = vadd.f32 %v1852, %v1694
      %v1885 = vadd.f32 %v1853, %v1699
      %v1886 = vadd.f32 %v1854, %v1704
      %v1887 = vadd.f32 %v1855, %v1709
      %v1888 = vadd.f32 %v1856, %v1714
      %v1889 = vadd.f32 %v1857, %v1719
      %v1890 = vadd.f32 %v1858, %v1724
      %v1891 = vadd.f32 %v1859, %v1729
      %v1892 = vadd.f32 %v1860, %v1734
      %v1893 = vadd.f32 %v1861, %v1739
      %v1894 = vadd.f32 %v1862, %v1744
      %v1895 = vadd.f32 %v1863, %v1749
      %v1896 = vadd.f32 %v1864, %v1754
      %v1897 = vadd.f32 %v1865, %v1759
      %v1898 = vadd.f32 %v1866, %v1764
      %v1899 = vadd.f32 %v1867, %v1769
      %v1900 = vadd.f32 %v1868, %v1774
      %v1901 = vadd.f32 %v1869, %v1779
      %v1902 = vadd.f32 %v1870, %v1784
      %v1903 = vadd.f32 %v1871, %v1789
      %v1904 = vadd.f32 %v1872, %v1794
      %v1905 = vadd.f32 %v1873, %v1799
      %v1906 = vadd.f32 %v1874, %v1804
      %v1907 = vadd.f32 %v1875, %v1809
      %v1908 = vadd.f32 %v1876, %v1814
      %v1909 = vadd.f32 %v1877, %v1819
      %v1910 = vadd.f32 %v1878, %v1824
      %v1911 = vadd.f32 %v1879, %v1829
      %v1912 = vadd.f32 %v1880, %v1834
      %v1913 = vadd.f32 %v1881, %v1839
      %v1914 = vadd.f32 %v1882, %v1844
      %v1915 = vadd.f32 %v1883, %v1849
      %1916 = vst [vmem:[#allocation2] sm:$0xff] %v1884
      %1917 = vst [vmem:[#allocation2 + $0x8] sm:$0xff] %v1885
      %1918 = vst [vmem:[#allocation2 + $0x10] sm:$0xff] %v1886
      %1919 = vst [vmem:[#allocation2 + $0x18] sm:$0xff] %v1887
      %1920 = vst [vmem:[#allocation2 + $0x20] sm:$0xff] %v1888
      %1921 = vst [vmem:[#allocation2 + $0x28] sm:$0xff] %v1889
      %1922 = vst [vmem:[#allocation2 + $0x30] sm:$0xff] %v1890
      %1923 = vst [vmem:[#allocation2 + $0x38] sm:$0xff] %v1891
      %1924 = vst [vmem:[#allocation2 + $0x40] sm:$0xff] %v1892
      %1925 = vst [vmem:[#allocation2 + $0x48] sm:$0xff] %v1893
      %1926 = vst [vmem:[#allocation2 + $0x50] sm:$0xff] %v1894
      %1927 = vst [vmem:[#allocation2 + $0x58] sm:$0xff] %v1895
      %1928 = vst [vmem:[#allocation2 + $0x60] sm:$0xff] %v1896
      %1929 = vst [vmem:[#allocation2 + $0x68] sm:$0xff] %v1897
      %1930 = vst [vmem:[#allocation2 + $0x70] sm:$0xff] %v1898
      %1931 = vst [vmem:[#allocation2 + $0x78] sm:$0xff] %v1899
      %1932 = vst [vmem:[#allocation2 + $0x80] sm:$0xff] %v1900
      %1933 = vst [vmem:[#allocation2 + $0x88] sm:$0xff] %v1901
      %1934 = vst [vmem:[#allocation2 + $0x90] sm:$0xff] %v1902
      %1935 = vst [vmem:[#allocation2 + $0x98] sm:$0xff] %v1903
      %1936 = vst [vmem:[#allocation2 + $0xa0] sm:$0xff] %v1904
      %1937 = vst [vmem:[#allocation2 + $0xa8] sm:$0xff] %v1905
      %1938 = vst [vmem:[#allocation2 + $0xb0] sm:$0xff] %v1906
      %1939 = vst [vmem:[#allocation2 + $0xb8] sm:$0xff] %v1907
      %1940 = vst [vmem:[#allocation2 + $0xc0] sm:$0xff] %v1908
      %1941 = vst [vmem:[#allocation2 + $0xc8] sm:$0xff] %v1909
      %1942 = vst [vmem:[#allocation2 + $0xd0] sm:$0xff] %v1910
      %1943 = vst [vmem:[#allocation2 + $0xd8] sm:$0xff] %v1911
      %1944 = vst [vmem:[#allocation2 + $0xe0] sm:$0xff] %v1912
      %1945 = vst [vmem:[#allocation2 + $0xe8] sm:$0xff] %v1913
      %1946 = vst [vmem:[#allocation2 + $0xf0] sm:$0xff] %v1914
      %1947 = vst [vmem:[#allocation2 + $0xf8] sm:$0xff] %v1915
      %v1948 = vld [vmem:[%s1493 + $0x1] sm:$0xff]
      %v1949 = vld [vmem:[%s1493 + $0x9] sm:$0xff]
      %v1950 = vld [vmem:[%s1493 + $0x19] sm:$0xff]
      %v1951 = vld [vmem:[%s1493 + $0x21] sm:$0xff]
      %v1952 = vld [vmem:[%s1493 + $0x31] sm:$0xff]
      %v1953 = vld [vmem:[%s1493 + $0x39] sm:$0xff]
      %v1954 = vld [vmem:[%s1493 + $0x49] sm:$0xff]
      %v1955 = vld [vmem:[%s1493 + $0x51] sm:$0xff]
      %v1956 = vld [vmem:[%s1493 + $0x61] sm:$0xff]
      %v1957 = vld [vmem:[%s1493 + $0x69] sm:$0xff]
      %v1958 = vld [vmem:[%s1493 + $0x79] sm:$0xff]
      %v1959 = vld [vmem:[%s1493 + $0x81] sm:$0xff]
      %v1960 = vld [vmem:[%s1493 + $0x91] sm:$0xff]
      %v1961 = vld [vmem:[%s1493 + $0x99] sm:$0xff]
      %v1962 = vld [vmem:[%s1493 + $0xa9] sm:$0xff]
      %v1963 = vld [vmem:[%s1493 + $0xb1] sm:$0xff]
      %v1964 = vld [vmem:[%s1493 + $0xc1] sm:$0xff]
      %v1965 = vld [vmem:[%s1493 + $0xc9] sm:$0xff]
      %v1966 = vld [vmem:[%s1493 + $0xd9] sm:$0xff]
      %v1967 = vld [vmem:[%s1493 + $0xe1] sm:$0xff]
      %v1968 = vld [vmem:[%s1493 + $0xf1] sm:$0xff]
      %v1969 = vld [vmem:[%s1493 + $0xf9] sm:$0xff]
      %v1970 = vld [vmem:[%s1493 + $0x109] sm:$0xff]
      %v1971 = vld [vmem:[%s1493 + $0x111] sm:$0xff]
      %v1972 = vld [vmem:[%s1493 + $0x121] sm:$0xff]
      %v1973 = vld [vmem:[%s1493 + $0x129] sm:$0xff]
      %v1974 = vld [vmem:[%s1493 + $0x139] sm:$0xff]
      %v1975 = vld [vmem:[%s1493 + $0x141] sm:$0xff]
      %v1976 = vld [vmem:[%s1493 + $0x151] sm:$0xff]
      %v1977 = vld [vmem:[%s1493 + $0x159] sm:$0xff]
      %v1978 = vld [vmem:[%s1493 + $0x169] sm:$0xff]
      %v1979 = vld [vmem:[%s1493 + $0x171] sm:$0xff]
      %s1980 = scalar_lea.vmem %s1, 16
      %v1981 = vld [vmem:[%s1980] sm:$0xf]
      %v1983 = vsel %vm225, %v1948, 0
      %v1986 = vsel %vm225, %v1949, 0
      %v1989 = vsel %vm225, %v1950, 0
      %v1992 = vsel %vm225, %v1951, 0
      %v1995 = vsel %vm225, %v1952, 0
      %v1998 = vsel %vm225, %v1953, 0
      %v2001 = vsel %vm225, %v1954, 0
      %v2004 = vsel %vm225, %v1955, 0
      %v2007 = vsel %vm225, %v1956, 0
      %v2010 = vsel %vm225, %v1957, 0
      %v2013 = vsel %vm225, %v1958, 0
      %v2016 = vsel %vm225, %v1959, 0
      %v2019 = vsel %vm225, %v1960, 0
      %v2022 = vsel %vm225, %v1961, 0
      %v2025 = vsel %vm225, %v1962, 0
      %v2028 = vsel %vm225, %v1963, 0
      %v2031 = vsel %vm225, %v1964, 0
      %v2034 = vsel %vm225, %v1965, 0
      %v2037 = vsel %vm225, %v1966, 0
      %v2040 = vsel %vm225, %v1967, 0
      %v2043 = vsel %vm225, %v1968, 0
      %v2046 = vsel %vm225, %v1969, 0
      %v2049 = vsel %vm225, %v1970, 0
      %v2052 = vsel %vm225, %v1971, 0
      %v2055 = vsel %vm225, %v1972, 0
      %v2058 = vsel %vm225, %v1973, 0
      %v2061 = vsel %vm225, %v1974, 0
      %v2064 = vsel %vm225, %v1975, 0
      %v2067 = vsel %vm225, %v1976, 0
      %v2070 = vsel %vm225, %v1977, 0
      %v2073 = vsel %vm225, %v1978, 0
      %v2076 = vsel %vm225, %v1979, 0
      %v2079 = vsel %vm322, %v1981, 0
      %2081 = vmatprep.subr.mxu0 0.0
      %2082 = vmatpush1.msra.mxu0 0.0
      %2083 = vmatprep.subr.mxu0 0.0
      %2084 = vmatpush1.msra.mxu0 0.0
      %2085 = vmatprep.subr.mxu0 0.0
      %2086 = vmatpush1.msra.mxu0 0.0
      %2087 = vmatprep.subr.mxu0 0.0
      %2088 = vmatpush1.msra.mxu0 0.0
      %2089 = vmatprep.subr.mxu0 0.0
      %2090 = vmatpush1.msra.mxu0 0.0
      %2091 = vmatprep.subr.mxu0 0.0
      %2092 = vmatpush1.msra.mxu0 0.0
      %2093 = vmatprep.subr.mxu0 0.0
      %2094 = vmatpush1.msra.mxu0 0.0
      %2095 = vmatprep.subr.mxu0 0.0
      %2096 = vmatpush1.msra.mxu0 0.0
      %2097 = vmatprep.subr.mxu0 0.0
      %2098 = vmatpush1.msra.mxu0 0.0
      %2099 = vmatprep.subr.mxu0 0.0
      %2100 = vmatpush1.msra.mxu0 0.0
      %2101 = vmatprep.subr.mxu0 0.0
      %2102 = vmatpush1.msra.mxu0 0.0
      %2103 = vmatprep.subr.mxu0 0.0
      %2104 = vmatpush1.msra.mxu0 0.0
      %2105 = vmatprep.subr.mxu0 0.0
      %2106 = vmatpush1.msra.mxu0 0.0
      %2107 = vmatprep.subr.mxu0 0.0
      %2108 = vmatpush1.msra.mxu0 0.0
      %2109 = vmatprep.subr.mxu0 0.0
      %2110 = vmatpush1.msra.mxu0 0.0
      %2111 = vmatprep.subr.mxu0 0.0
      %2112 = vmatpush1.msra.mxu0 %v2079
      %2113 = vmatprep.subr.mxu0 0.0
      %2114 = vmatpush2.msra.mxu0 0.0
      %2115 = vmatprep.subr.mxu0 0.0
      %2116 = vmatpush2.msra.mxu0 0.0
      %2117 = vmatprep.subr.mxu0 0.0
      %2118 = vmatpush2.msra.mxu0 0.0
      %2119 = vmatprep.subr.mxu0 0.0
      %2120 = vmatpush2.msra.mxu0 0.0
      %2121 = vmatprep.subr.mxu0 0.0
      %2122 = vmatpush2.msra.mxu0 0.0
      %2123 = vmatprep.subr.mxu0 0.0
      %2124 = vmatpush2.msra.mxu0 0.0
      %2125 = vmatprep.subr.mxu0 0.0
      %2126 = vmatpush2.msra.mxu0 0.0
      %2127 = vmatprep.subr.mxu0 0.0
      %2128 = vmatpush2.msra.mxu0 0.0
      %2129 = vmatprep.subr.mxu0 0.0
      %2130 = vmatpush2.msra.mxu0 0.0
      %2131 = vmatprep.subr.mxu0 0.0
      %2132 = vmatpush2.msra.mxu0 0.0
      %2133 = vmatprep.subr.mxu0 0.0
      %2134 = vmatpush2.msra.mxu0 0.0
      %2135 = vmatprep.subr.mxu0 0.0
      %2136 = vmatpush2.msra.mxu0 0.0
      %2137 = vmatprep.subr.mxu0 0.0
      %2138 = vmatpush2.msra.mxu0 0.0
      %2139 = vmatprep.subr.mxu0 0.0
      %2140 = vmatpush2.msra.mxu0 0.0
      %2141 = vmatprep.subr.mxu0 0.0
      %2142 = vmatpush2.msra.mxu0 0.0
      %2143 = vmatprep.subr.mxu0 0.0
      %2144 = vmatpush2.msra.mxu0 0.0
      %2145 = vmatprep.mubr.f32.mxu0 0.0
      %2146 = vmatmul.mubr.f32.gmra.mxu0 %v1983
      %v2147 = vpop.f32.mrf.mxu0
      %v2148 = vadd.f32 0.0, %v2147
      %v2149 = vpop.f32.mrf.mxu0
      %2150 = vmatprep.mubr.f32.mxu0 0.0
      %2151 = vmatmul.mubr.f32.gmra.mxu0 %v1986
      %v2152 = vpop.f32.mrf.mxu0
      %v2153 = vadd.f32 0.0, %v2152
      %v2154 = vpop.f32.mrf.mxu0
      %2155 = vmatprep.mubr.f32.mxu0 0.0
      %2156 = vmatmul.mubr.f32.gmra.mxu0 %v1989
      %v2157 = vpop.f32.mrf.mxu0
      %v2158 = vadd.f32 0.0, %v2157
      %v2159 = vpop.f32.mrf.mxu0
      %2160 = vmatprep.mubr.f32.mxu0 0.0
      %2161 = vmatmul.mubr.f32.gmra.mxu0 %v1992
      %v2162 = vpop.f32.mrf.mxu0
      %v2163 = vadd.f32 0.0, %v2162
      %v2164 = vpop.f32.mrf.mxu0
      %2165 = vmatprep.mubr.f32.mxu0 0.0
      %2166 = vmatmul.mubr.f32.gmra.mxu0 %v1995
      %v2167 = vpop.f32.mrf.mxu0
      %v2168 = vadd.f32 0.0, %v2167
      %v2169 = vpop.f32.mrf.mxu0
      %2170 = vmatprep.mubr.f32.mxu0 0.0
      %2171 = vmatmul.mubr.f32.gmra.mxu0 %v1998
      %v2172 = vpop.f32.mrf.mxu0
      %v2173 = vadd.f32 0.0, %v2172
      %v2174 = vpop.f32.mrf.mxu0
      %2175 = vmatprep.mubr.f32.mxu0 0.0
      %2176 = vmatmul.mubr.f32.gmra.mxu0 %v2001
      %v2177 = vpop.f32.mrf.mxu0
      %v2178 = vadd.f32 0.0, %v2177
      %v2179 = vpop.f32.mrf.mxu0
      %2180 = vmatprep.mubr.f32.mxu0 0.0
      %2181 = vmatmul.mubr.f32.gmra.mxu0 %v2004
      %v2182 = vpop.f32.mrf.mxu0
      %v2183 = vadd.f32 0.0, %v2182
      %v2184 = vpop.f32.mrf.mxu0
      %2185 = vmatprep.mubr.f32.mxu0 0.0
      %2186 = vmatmul.mubr.f32.gmra.mxu0 %v2007
      %v2187 = vpop.f32.mrf.mxu0
      %v2188 = vadd.f32 0.0, %v2187
      %v2189 = vpop.f32.mrf.mxu0
      %2190 = vmatprep.mubr.f32.mxu0 0.0
      %2191 = vmatmul.mubr.f32.gmra.mxu0 %v2010
      %v2192 = vpop.f32.mrf.mxu0
      %v2193 = vadd.f32 0.0, %v2192
      %v2194 = vpop.f32.mrf.mxu0
      %2195 = vmatprep.mubr.f32.mxu0 0.0
      %2196 = vmatmul.mubr.f32.gmra.mxu0 %v2013
      %v2197 = vpop.f32.mrf.mxu0
      %v2198 = vadd.f32 0.0, %v2197
      %v2199 = vpop.f32.mrf.mxu0
      %2200 = vmatprep.mubr.f32.mxu0 0.0
      %2201 = vmatmul.mubr.f32.gmra.mxu0 %v2016
      %v2202 = vpop.f32.mrf.mxu0
      %v2203 = vadd.f32 0.0, %v2202
      %v2204 = vpop.f32.mrf.mxu0
      %2205 = vmatprep.mubr.f32.mxu0 0.0
      %2206 = vmatmul.mubr.f32.gmra.mxu0 %v2019
      %v2207 = vpop.f32.mrf.mxu0
      %v2208 = vadd.f32 0.0, %v2207
      %v2209 = vpop.f32.mrf.mxu0
      %2210 = vmatprep.mubr.f32.mxu0 0.0
      %2211 = vmatmul.mubr.f32.gmra.mxu0 %v2022
      %v2212 = vpop.f32.mrf.mxu0
      %v2213 = vadd.f32 0.0, %v2212
      %v2214 = vpop.f32.mrf.mxu0
      %2215 = vmatprep.mubr.f32.mxu0 0.0
      %2216 = vmatmul.mubr.f32.gmra.mxu0 %v2025
      %v2217 = vpop.f32.mrf.mxu0
      %v2218 = vadd.f32 0.0, %v2217
      %v2219 = vpop.f32.mrf.mxu0
      %2220 = vmatprep.mubr.f32.mxu0 0.0
      %2221 = vmatmul.mubr.f32.gmra.mxu0 %v2028
      %v2222 = vpop.f32.mrf.mxu0
      %v2223 = vadd.f32 0.0, %v2222
      %v2224 = vpop.f32.mrf.mxu0
      %2225 = vmatprep.mubr.f32.mxu0 0.0
      %2226 = vmatmul.mubr.f32.gmra.mxu0 %v2031
      %v2227 = vpop.f32.mrf.mxu0
      %v2228 = vadd.f32 0.0, %v2227
      %v2229 = vpop.f32.mrf.mxu0
      %2230 = vmatprep.mubr.f32.mxu0 0.0
      %2231 = vmatmul.mubr.f32.gmra.mxu0 %v2034
      %v2232 = vpop.f32.mrf.mxu0
      %v2233 = vadd.f32 0.0, %v2232
      %v2234 = vpop.f32.mrf.mxu0
      %2235 = vmatprep.mubr.f32.mxu0 0.0
      %2236 = vmatmul.mubr.f32.gmra.mxu0 %v2037
      %v2237 = vpop.f32.mrf.mxu0
      %v2238 = vadd.f32 0.0, %v2237
      %v2239 = vpop.f32.mrf.mxu0
      %2240 = vmatprep.mubr.f32.mxu0 0.0
      %2241 = vmatmul.mubr.f32.gmra.mxu0 %v2040
      %v2242 = vpop.f32.mrf.mxu0
      %v2243 = vadd.f32 0.0, %v2242
      %v2244 = vpop.f32.mrf.mxu0
      %2245 = vmatprep.mubr.f32.mxu0 0.0
      %2246 = vmatmul.mubr.f32.gmra.mxu0 %v2043
      %v2247 = vpop.f32.mrf.mxu0
      %v2248 = vadd.f32 0.0, %v2247
      %v2249 = vpop.f32.mrf.mxu0
      %2250 = vmatprep.mubr.f32.mxu0 0.0
      %2251 = vmatmul.mubr.f32.gmra.mxu0 %v2046
      %v2252 = vpop.f32.mrf.mxu0
      %v2253 = vadd.f32 0.0, %v2252
      %v2254 = vpop.f32.mrf.mxu0
      %2255 = vmatprep.mubr.f32.mxu0 0.0
      %2256 = vmatmul.mubr.f32.gmra.mxu0 %v2049
      %v2257 = vpop.f32.mrf.mxu0
      %v2258 = vadd.f32 0.0, %v2257
      %v2259 = vpop.f32.mrf.mxu0
      %2260 = vmatprep.mubr.f32.mxu0 0.0
      %2261 = vmatmul.mubr.f32.gmra.mxu0 %v2052
      %v2262 = vpop.f32.mrf.mxu0
      %v2263 = vadd.f32 0.0, %v2262
      %v2264 = vpop.f32.mrf.mxu0
      %2265 = vmatprep.mubr.f32.mxu0 0.0
      %2266 = vmatmul.mubr.f32.gmra.mxu0 %v2055
      %v2267 = vpop.f32.mrf.mxu0
      %v2268 = vadd.f32 0.0, %v2267
      %v2269 = vpop.f32.mrf.mxu0
      %2270 = vmatprep.mubr.f32.mxu0 0.0
      %2271 = vmatmul.mubr.f32.gmra.mxu0 %v2058
      %v2272 = vpop.f32.mrf.mxu0
      %v2273 = vadd.f32 0.0, %v2272
      %v2274 = vpop.f32.mrf.mxu0
      %2275 = vmatprep.mubr.f32.mxu0 0.0
      %2276 = vmatmul.mubr.f32.gmra.mxu0 %v2061
      %v2277 = vpop.f32.mrf.mxu0
      %v2278 = vadd.f32 0.0, %v2277
      %v2279 = vpop.f32.mrf.mxu0
      %2280 = vmatprep.mubr.f32.mxu0 0.0
      %2281 = vmatmul.mubr.f32.gmra.mxu0 %v2064
      %v2282 = vpop.f32.mrf.mxu0
      %v2283 = vadd.f32 0.0, %v2282
      %v2284 = vpop.f32.mrf.mxu0
      %2285 = vmatprep.mubr.f32.mxu0 0.0
      %2286 = vmatmul.mubr.f32.gmra.mxu0 %v2067
      %v2287 = vpop.f32.mrf.mxu0
      %v2288 = vadd.f32 0.0, %v2287
      %v2289 = vpop.f32.mrf.mxu0
      %2290 = vmatprep.mubr.f32.mxu0 0.0
      %2291 = vmatmul.mubr.f32.gmra.mxu0 %v2070
      %v2292 = vpop.f32.mrf.mxu0
      %v2293 = vadd.f32 0.0, %v2292
      %v2294 = vpop.f32.mrf.mxu0
      %2295 = vmatprep.mubr.f32.mxu0 0.0
      %2296 = vmatmul.mubr.f32.gmra.mxu0 %v2073
      %v2297 = vpop.f32.mrf.mxu0
      %v2298 = vadd.f32 0.0, %v2297
      %v2299 = vpop.f32.mrf.mxu0
      %2300 = vmatprep.mubr.f32.mxu0 0.0
      %2301 = vmatmul.mubr.f32.gmra.mxu0 %v2076
      %v2302 = vpop.f32.mrf.mxu0
      %v2303 = vadd.f32 0.0, %v2302
      %v2304 = vpop.f32.mrf.mxu0
      %2305 = vdwg.mxu0
      %v2306 = vld [vmem:[#allocation2] sm:$0xff]
      %v2307 = vld [vmem:[#allocation2 + $0x8] sm:$0xff]
      %v2308 = vld [vmem:[#allocation2 + $0x10] sm:$0xff]
      %v2309 = vld [vmem:[#allocation2 + $0x18] sm:$0xff]
      %v2310 = vld [vmem:[#allocation2 + $0x20] sm:$0xff]
      %v2311 = vld [vmem:[#allocation2 + $0x28] sm:$0xff]
      %v2312 = vld [vmem:[#allocation2 + $0x30] sm:$0xff]
      %v2313 = vld [vmem:[#allocation2 + $0x38] sm:$0xff]
      %v2314 = vld [vmem:[#allocation2 + $0x40] sm:$0xff]
      %v2315 = vld [vmem:[#allocation2 + $0x48] sm:$0xff]
      %v2316 = vld [vmem:[#allocation2 + $0x50] sm:$0xff]
      %v2317 = vld [vmem:[#allocation2 + $0x58] sm:$0xff]
      %v2318 = vld [vmem:[#allocation2 + $0x60] sm:$0xff]
      %v2319 = vld [vmem:[#allocation2 + $0x68] sm:$0xff]
      %v2320 = vld [vmem:[#allocation2 + $0x70] sm:$0xff]
      %v2321 = vld [vmem:[#allocation2 + $0x78] sm:$0xff]
      %v2322 = vld [vmem:[#allocation2 + $0x80] sm:$0xff]
      %v2323 = vld [vmem:[#allocation2 + $0x88] sm:$0xff]
      %v2324 = vld [vmem:[#allocation2 + $0x90] sm:$0xff]
      %v2325 = vld [vmem:[#allocation2 + $0x98] sm:$0xff]
      %v2326 = vld [vmem:[#allocation2 + $0xa0] sm:$0xff]
      %v2327 = vld [vmem:[#allocation2 + $0xa8] sm:$0xff]
      %v2328 = vld [vmem:[#allocation2 + $0xb0] sm:$0xff]
      %v2329 = vld [vmem:[#allocation2 + $0xb8] sm:$0xff]
      %v2330 = vld [vmem:[#allocation2 + $0xc0] sm:$0xff]
      %v2331 = vld [vmem:[#allocation2 + $0xc8] sm:$0xff]
      %v2332 = vld [vmem:[#allocation2 + $0xd0] sm:$0xff]
      %v2333 = vld [vmem:[#allocation2 + $0xd8] sm:$0xff]
      %v2334 = vld [vmem:[#allocation2 + $0xe0] sm:$0xff]
      %v2335 = vld [vmem:[#allocation2 + $0xe8] sm:$0xff]
      %v2336 = vld [vmem:[#allocation2 + $0xf0] sm:$0xff]
      %v2337 = vld [vmem:[#allocation2 + $0xf8] sm:$0xff]
      %v2338 = vadd.f32 %v2306, %v2148
      %v2339 = vadd.f32 %v2307, %v2153
      %v2340 = vadd.f32 %v2308, %v2158
      %v2341 = vadd.f32 %v2309, %v2163
      %v2342 = vadd.f32 %v2310, %v2168
      %v2343 = vadd.f32 %v2311, %v2173
      %v2344 = vadd.f32 %v2312, %v2178
      %v2345 = vadd.f32 %v2313, %v2183
      %v2346 = vadd.f32 %v2314, %v2188
      %v2347 = vadd.f32 %v2315, %v2193
      %v2348 = vadd.f32 %v2316, %v2198
      %v2349 = vadd.f32 %v2317, %v2203
      %v2350 = vadd.f32 %v2318, %v2208
      %v2351 = vadd.f32 %v2319, %v2213
      %v2352 = vadd.f32 %v2320, %v2218
      %v2353 = vadd.f32 %v2321, %v2223
      %v2354 = vadd.f32 %v2322, %v2228
      %v2355 = vadd.f32 %v2323, %v2233
      %v2356 = vadd.f32 %v2324, %v2238
      %v2357 = vadd.f32 %v2325, %v2243
      %v2358 = vadd.f32 %v2326, %v2248
      %v2359 = vadd.f32 %v2327, %v2253
      %v2360 = vadd.f32 %v2328, %v2258
      %v2361 = vadd.f32 %v2329, %v2263
      %v2362 = vadd.f32 %v2330, %v2268
      %v2363 = vadd.f32 %v2331, %v2273
      %v2364 = vadd.f32 %v2332, %v2278
      %v2365 = vadd.f32 %v2333, %v2283
      %v2366 = vadd.f32 %v2334, %v2288
      %v2367 = vadd.f32 %v2335, %v2293
      %v2368 = vadd.f32 %v2336, %v2298
      %v2369 = vadd.f32 %v2337, %v2303
      %2370 = vst [vmem:[#allocation2] sm:$0xff] %v2338
      %2371 = vst [vmem:[#allocation2 + $0x8] sm:$0xff] %v2339
      %2372 = vst [vmem:[#allocation2 + $0x10] sm:$0xff] %v2340
      %2373 = vst [vmem:[#allocation2 + $0x18] sm:$0xff] %v2341
      %2374 = vst [vmem:[#allocation2 + $0x20] sm:$0xff] %v2342
      %2375 = vst [vmem:[#allocation2 + $0x28] sm:$0xff] %v2343
      %2376 = vst [vmem:[#allocation2 + $0x30] sm:$0xff] %v2344
      %2377 = vst [vmem:[#allocation2 + $0x38] sm:$0xff] %v2345
      %2378 = vst [vmem:[#allocation2 + $0x40] sm:$0xff] %v2346
      %2379 = vst [vmem:[#allocation2 + $0x48] sm:$0xff] %v2347
      %2380 = vst [vmem:[#allocation2 + $0x50] sm:$0xff] %v2348
      %2381 = vst [vmem:[#allocation2 + $0x58] sm:$0xff] %v2349
      %2382 = vst [vmem:[#allocation2 + $0x60] sm:$0xff] %v2350
      %2383 = vst [vmem:[#allocation2 + $0x68] sm:$0xff] %v2351
      %2384 = vst [vmem:[#allocation2 + $0x70] sm:$0xff] %v2352
      %2385 = vst [vmem:[#allocation2 + $0x78] sm:$0xff] %v2353
      %2386 = vst [vmem:[#allocation2 + $0x80] sm:$0xff] %v2354
      %2387 = vst [vmem:[#allocation2 + $0x88] sm:$0xff] %v2355
      %2388 = vst [vmem:[#allocation2 + $0x90] sm:$0xff] %v2356
      %2389 = vst [vmem:[#allocation2 + $0x98] sm:$0xff] %v2357
      %2390 = vst [vmem:[#allocation2 + $0xa0] sm:$0xff] %v2358
      %2391 = vst [vmem:[#allocation2 + $0xa8] sm:$0xff] %v2359
      %2392 = vst [vmem:[#allocation2 + $0xb0] sm:$0xff] %v2360
      %2393 = vst [vmem:[#allocation2 + $0xb8] sm:$0xff] %v2361
      %2394 = vst [vmem:[#allocation2 + $0xc0] sm:$0xff] %v2362
      %2395 = vst [vmem:[#allocation2 + $0xc8] sm:$0xff] %v2363
      %2396 = vst [vmem:[#allocation2 + $0xd0] sm:$0xff] %v2364
      %2397 = vst [vmem:[#allocation2 + $0xd8] sm:$0xff] %v2365
      %2398 = vst [vmem:[#allocation2 + $0xe0] sm:$0xff] %v2366
      %2399 = vst [vmem:[#allocation2 + $0xe8] sm:$0xff] %v2367
      %2400 = vst [vmem:[#allocation2 + $0xf0] sm:$0xff] %v2368
      %2401 = vst [vmem:[#allocation2 + $0xf8] sm:$0xff] %v2369
      %v2402 = vld [vmem:[%s1493 + $0x2] sm:$0xff]
      %v2403 = vld [vmem:[%s1493 + $0xa] sm:$0xff]
      %v2404 = vld [vmem:[%s1493 + $0x1a] sm:$0xff]
      %v2405 = vld [vmem:[%s1493 + $0x22] sm:$0xff]
      %v2406 = vld [vmem:[%s1493 + $0x32] sm:$0xff]
      %v2407 = vld [vmem:[%s1493 + $0x3a] sm:$0xff]
      %v2408 = vld [vmem:[%s1493 + $0x4a] sm:$0xff]
      %v2409 = vld [vmem:[%s1493 + $0x52] sm:$0xff]
      %v2410 = vld [vmem:[%s1493 + $0x62] sm:$0xff]
      %v2411 = vld [vmem:[%s1493 + $0x6a] sm:$0xff]
      %v2412 = vld [vmem:[%s1493 + $0x7a] sm:$0xff]
      %v2413 = vld [vmem:[%s1493 + $0x82] sm:$0xff]
      %v2414 = vld [vmem:[%s1493 + $0x92] sm:$0xff]
      %v2415 = vld [vmem:[%s1493 + $0x9a] sm:$0xff]
      %v2416 = vld [vmem:[%s1493 + $0xaa] sm:$0xff]
      %v2417 = vld [vmem:[%s1493 + $0xb2] sm:$0xff]
      %v2418 = vld [vmem:[%s1493 + $0xc2] sm:$0xff]
      %v2419 = vld [vmem:[%s1493 + $0xca] sm:$0xff]
      %v2420 = vld [vmem:[%s1493 + $0xda] sm:$0xff]
      %v2421 = vld [vmem:[%s1493 + $0xe2] sm:$0xff]
      %v2422 = vld [vmem:[%s1493 + $0xf2] sm:$0xff]
      %v2423 = vld [vmem:[%s1493 + $0xfa] sm:$0xff]
      %v2424 = vld [vmem:[%s1493 + $0x10a] sm:$0xff]
      %v2425 = vld [vmem:[%s1493 + $0x112] sm:$0xff]
      %v2426 = vld [vmem:[%s1493 + $0x122] sm:$0xff]
      %v2427 = vld [vmem:[%s1493 + $0x12a] sm:$0xff]
      %v2428 = vld [vmem:[%s1493 + $0x13a] sm:$0xff]
      %v2429 = vld [vmem:[%s1493 + $0x142] sm:$0xff]
      %v2430 = vld [vmem:[%s1493 + $0x152] sm:$0xff]
      %v2431 = vld [vmem:[%s1493 + $0x15a] sm:$0xff]
      %v2432 = vld [vmem:[%s1493 + $0x16a] sm:$0xff]
      %v2433 = vld [vmem:[%s1493 + $0x172] sm:$0xff]
      %s2434 = scalar_lea.vmem %s1, 20
      %v2435 = vld [vmem:[%s2434] sm:$0xf]
      %v2437 = vsel %vm225, %v2402, 0
      %v2440 = vsel %vm225, %v2403, 0
      %v2443 = vsel %vm225, %v2404, 0
      %v2446 = vsel %vm225, %v2405, 0
      %v2449 = vsel %vm225, %v2406, 0
      %v2452 = vsel %vm225, %v2407, 0
      %v2455 = vsel %vm225, %v2408, 0
      %v2458 = vsel %vm225, %v2409, 0
      %v2461 = vsel %vm225, %v2410, 0
      %v2464 = vsel %vm225, %v2411, 0
      %v2467 = vsel %vm225, %v2412, 0
      %v2470 = vsel %vm225, %v2413, 0
      %v2473 = vsel %vm225, %v2414, 0
      %v2476 = vsel %vm225, %v2415, 0
      %v2479 = vsel %vm225, %v2416, 0
      %v2482 = vsel %vm225, %v2417, 0
      %v2485 = vsel %vm225, %v2418, 0
      %v2488 = vsel %vm225, %v2419, 0
      %v2491 = vsel %vm225, %v2420, 0
      %v2494 = vsel %vm225, %v2421, 0
      %v2497 = vsel %vm225, %v2422, 0
      %v2500 = vsel %vm225, %v2423, 0
      %v2503 = vsel %vm225, %v2424, 0
      %v2506 = vsel %vm225, %v2425, 0
      %v2509 = vsel %vm225, %v2426, 0
      %v2512 = vsel %vm225, %v2427, 0
      %v2515 = vsel %vm225, %v2428, 0
      %v2518 = vsel %vm225, %v2429, 0
      %v2521 = vsel %vm225, %v2430, 0
      %v2524 = vsel %vm225, %v2431, 0
      %v2527 = vsel %vm225, %v2432, 0
      %v2530 = vsel %vm225, %v2433, 0
      %v2533 = vsel %vm322, %v2435, 0
      %2535 = vmatprep.subr.mxu0 0.0
      %2536 = vmatpush1.msra.mxu0 0.0
      %2537 = vmatprep.subr.mxu0 0.0
      %2538 = vmatpush1.msra.mxu0 0.0
      %2539 = vmatprep.subr.mxu0 0.0
      %2540 = vmatpush1.msra.mxu0 0.0
      %2541 = vmatprep.subr.mxu0 0.0
      %2542 = vmatpush1.msra.mxu0 0.0
      %2543 = vmatprep.subr.mxu0 0.0
      %2544 = vmatpush1.msra.mxu0 0.0
      %2545 = vmatprep.subr.mxu0 0.0
      %2546 = vmatpush1.msra.mxu0 0.0
      %2547 = vmatprep.subr.mxu0 0.0
      %2548 = vmatpush1.msra.mxu0 0.0
      %2549 = vmatprep.subr.mxu0 0.0
      %2550 = vmatpush1.msra.mxu0 0.0
      %2551 = vmatprep.subr.mxu0 0.0
      %2552 = vmatpush1.msra.mxu0 0.0
      %2553 = vmatprep.subr.mxu0 0.0
      %2554 = vmatpush1.msra.mxu0 0.0
      %2555 = vmatprep.subr.mxu0 0.0
      %2556 = vmatpush1.msra.mxu0 0.0
      %2557 = vmatprep.subr.mxu0 0.0
      %2558 = vmatpush1.msra.mxu0 0.0
      %2559 = vmatprep.subr.mxu0 0.0
      %2560 = vmatpush1.msra.mxu0 0.0
      %2561 = vmatprep.subr.mxu0 0.0
      %2562 = vmatpush1.msra.mxu0 0.0
      %2563 = vmatprep.subr.mxu0 0.0
      %2564 = vmatpush1.msra.mxu0 0.0
      %2565 = vmatprep.subr.mxu0 0.0
      %2566 = vmatpush1.msra.mxu0 %v2533
      %2567 = vmatprep.subr.mxu0 0.0
      %2568 = vmatpush2.msra.mxu0 0.0
      %2569 = vmatprep.subr.mxu0 0.0
      %2570 = vmatpush2.msra.mxu0 0.0
      %2571 = vmatprep.subr.mxu0 0.0
      %2572 = vmatpush2.msra.mxu0 0.0
      %2573 = vmatprep.subr.mxu0 0.0
      %2574 = vmatpush2.msra.mxu0 0.0
      %2575 = vmatprep.subr.mxu0 0.0
      %2576 = vmatpush2.msra.mxu0 0.0
      %2577 = vmatprep.subr.mxu0 0.0
      %2578 = vmatpush2.msra.mxu0 0.0
      %2579 = vmatprep.subr.mxu0 0.0
      %2580 = vmatpush2.msra.mxu0 0.0
      %2581 = vmatprep.subr.mxu0 0.0
      %2582 = vmatpush2.msra.mxu0 0.0
      %2583 = vmatprep.subr.mxu0 0.0
      %2584 = vmatpush2.msra.mxu0 0.0
      %2585 = vmatprep.subr.mxu0 0.0
      %2586 = vmatpush2.msra.mxu0 0.0
      %2587 = vmatprep.subr.mxu0 0.0
      %2588 = vmatpush2.msra.mxu0 0.0
      %2589 = vmatprep.subr.mxu0 0.0
      %2590 = vmatpush2.msra.mxu0 0.0
      %2591 = vmatprep.subr.mxu0 0.0
      %2592 = vmatpush2.msra.mxu0 0.0
      %2593 = vmatprep.subr.mxu0 0.0
      %2594 = vmatpush2.msra.mxu0 0.0
      %2595 = vmatprep.subr.mxu0 0.0
      %2596 = vmatpush2.msra.mxu0 0.0
      %2597 = vmatprep.subr.mxu0 0.0
      %2598 = vmatpush2.msra.mxu0 0.0
      %2599 = vmatprep.mubr.f32.mxu0 0.0
      %2600 = vmatmul.mubr.f32.gmra.mxu0 %v2437
      %v2601 = vpop.f32.mrf.mxu0
      %v2602 = vadd.f32 0.0, %v2601
      %v2603 = vpop.f32.mrf.mxu0
      %2604 = vmatprep.mubr.f32.mxu0 0.0
      %2605 = vmatmul.mubr.f32.gmra.mxu0 %v2440
      %v2606 = vpop.f32.mrf.mxu0
      %v2607 = vadd.f32 0.0, %v2606
      %v2608 = vpop.f32.mrf.mxu0
      %2609 = vmatprep.mubr.f32.mxu0 0.0
      %2610 = vmatmul.mubr.f32.gmra.mxu0 %v2443
      %v2611 = vpop.f32.mrf.mxu0
      %v2612 = vadd.f32 0.0, %v2611
      %v2613 = vpop.f32.mrf.mxu0
      %2614 = vmatprep.mubr.f32.mxu0 0.0
      %2615 = vmatmul.mubr.f32.gmra.mxu0 %v2446
      %v2616 = vpop.f32.mrf.mxu0
      %v2617 = vadd.f32 0.0, %v2616
      %v2618 = vpop.f32.mrf.mxu0
      %2619 = vmatprep.mubr.f32.mxu0 0.0
      %2620 = vmatmul.mubr.f32.gmra.mxu0 %v2449
      %v2621 = vpop.f32.mrf.mxu0
      %v2622 = vadd.f32 0.0, %v2621
      %v2623 = vpop.f32.mrf.mxu0
      %2624 = vmatprep.mubr.f32.mxu0 0.0
      %2625 = vmatmul.mubr.f32.gmra.mxu0 %v2452
      %v2626 = vpop.f32.mrf.mxu0
      %v2627 = vadd.f32 0.0, %v2626
      %v2628 = vpop.f32.mrf.mxu0
      %2629 = vmatprep.mubr.f32.mxu0 0.0
      %2630 = vmatmul.mubr.f32.gmra.mxu0 %v2455
      %v2631 = vpop.f32.mrf.mxu0
      %v2632 = vadd.f32 0.0, %v2631
      %v2633 = vpop.f32.mrf.mxu0
      %2634 = vmatprep.mubr.f32.mxu0 0.0
      %2635 = vmatmul.mubr.f32.gmra.mxu0 %v2458
      %v2636 = vpop.f32.mrf.mxu0
      %v2637 = vadd.f32 0.0, %v2636
      %v2638 = vpop.f32.mrf.mxu0
      %2639 = vmatprep.mubr.f32.mxu0 0.0
      %2640 = vmatmul.mubr.f32.gmra.mxu0 %v2461
      %v2641 = vpop.f32.mrf.mxu0
      %v2642 = vadd.f32 0.0, %v2641
      %v2643 = vpop.f32.mrf.mxu0
      %2644 = vmatprep.mubr.f32.mxu0 0.0
      %2645 = vmatmul.mubr.f32.gmra.mxu0 %v2464
      %v2646 = vpop.f32.mrf.mxu0
      %v2647 = vadd.f32 0.0, %v2646
      %v2648 = vpop.f32.mrf.mxu0
      %2649 = vmatprep.mubr.f32.mxu0 0.0
      %2650 = vmatmul.mubr.f32.gmra.mxu0 %v2467
      %v2651 = vpop.f32.mrf.mxu0
      %v2652 = vadd.f32 0.0, %v2651
      %v2653 = vpop.f32.mrf.mxu0
      %2654 = vmatprep.mubr.f32.mxu0 0.0
      %2655 = vmatmul.mubr.f32.gmra.mxu0 %v2470
      %v2656 = vpop.f32.mrf.mxu0
      %v2657 = vadd.f32 0.0, %v2656
      %v2658 = vpop.f32.mrf.mxu0
      %2659 = vmatprep.mubr.f32.mxu0 0.0
      %2660 = vmatmul.mubr.f32.gmra.mxu0 %v2473
      %v2661 = vpop.f32.mrf.mxu0
      %v2662 = vadd.f32 0.0, %v2661
      %v2663 = vpop.f32.mrf.mxu0
      %2664 = vmatprep.mubr.f32.mxu0 0.0
      %2665 = vmatmul.mubr.f32.gmra.mxu0 %v2476
      %v2666 = vpop.f32.mrf.mxu0
      %v2667 = vadd.f32 0.0, %v2666
      %v2668 = vpop.f32.mrf.mxu0
      %2669 = vmatprep.mubr.f32.mxu0 0.0
      %2670 = vmatmul.mubr.f32.gmra.mxu0 %v2479
      %v2671 = vpop.f32.mrf.mxu0
      %v2672 = vadd.f32 0.0, %v2671
      %v2673 = vpop.f32.mrf.mxu0
      %2674 = vmatprep.mubr.f32.mxu0 0.0
      %2675 = vmatmul.mubr.f32.gmra.mxu0 %v2482
      %v2676 = vpop.f32.mrf.mxu0
      %v2677 = vadd.f32 0.0, %v2676
      %v2678 = vpop.f32.mrf.mxu0
      %2679 = vmatprep.mubr.f32.mxu0 0.0
      %2680 = vmatmul.mubr.f32.gmra.mxu0 %v2485
      %v2681 = vpop.f32.mrf.mxu0
      %v2682 = vadd.f32 0.0, %v2681
      %v2683 = vpop.f32.mrf.mxu0
      %2684 = vmatprep.mubr.f32.mxu0 0.0
      %2685 = vmatmul.mubr.f32.gmra.mxu0 %v2488
      %v2686 = vpop.f32.mrf.mxu0
      %v2687 = vadd.f32 0.0, %v2686
      %v2688 = vpop.f32.mrf.mxu0
      %2689 = vmatprep.mubr.f32.mxu0 0.0
      %2690 = vmatmul.mubr.f32.gmra.mxu0 %v2491
      %v2691 = vpop.f32.mrf.mxu0
      %v2692 = vadd.f32 0.0, %v2691
      %v2693 = vpop.f32.mrf.mxu0
      %2694 = vmatprep.mubr.f32.mxu0 0.0
      %2695 = vmatmul.mubr.f32.gmra.mxu0 %v2494
      %v2696 = vpop.f32.mrf.mxu0
      %v2697 = vadd.f32 0.0, %v2696
      %v2698 = vpop.f32.mrf.mxu0
      %2699 = vmatprep.mubr.f32.mxu0 0.0
      %2700 = vmatmul.mubr.f32.gmra.mxu0 %v2497
      %v2701 = vpop.f32.mrf.mxu0
      %v2702 = vadd.f32 0.0, %v2701
      %v2703 = vpop.f32.mrf.mxu0
      %2704 = vmatprep.mubr.f32.mxu0 0.0
      %2705 = vmatmul.mubr.f32.gmra.mxu0 %v2500
      %v2706 = vpop.f32.mrf.mxu0
      %v2707 = vadd.f32 0.0, %v2706
      %v2708 = vpop.f32.mrf.mxu0
      %2709 = vmatprep.mubr.f32.mxu0 0.0
      %2710 = vmatmul.mubr.f32.gmra.mxu0 %v2503
      %v2711 = vpop.f32.mrf.mxu0
      %v2712 = vadd.f32 0.0, %v2711
      %v2713 = vpop.f32.mrf.mxu0
      %2714 = vmatprep.mubr.f32.mxu0 0.0
      %2715 = vmatmul.mubr.f32.gmra.mxu0 %v2506
      %v2716 = vpop.f32.mrf.mxu0
      %v2717 = vadd.f32 0.0, %v2716
      %v2718 = vpop.f32.mrf.mxu0
      %2719 = vmatprep.mubr.f32.mxu0 0.0
      %2720 = vmatmul.mubr.f32.gmra.mxu0 %v2509
      %v2721 = vpop.f32.mrf.mxu0
      %v2722 = vadd.f32 0.0, %v2721
      %v2723 = vpop.f32.mrf.mxu0
      %2724 = vmatprep.mubr.f32.mxu0 0.0
      %2725 = vmatmul.mubr.f32.gmra.mxu0 %v2512
      %v2726 = vpop.f32.mrf.mxu0
      %v2727 = vadd.f32 0.0, %v2726
      %v2728 = vpop.f32.mrf.mxu0
      %2729 = vmatprep.mubr.f32.mxu0 0.0
      %2730 = vmatmul.mubr.f32.gmra.mxu0 %v2515
      %v2731 = vpop.f32.mrf.mxu0
      %v2732 = vadd.f32 0.0, %v2731
      %v2733 = vpop.f32.mrf.mxu0
      %2734 = vmatprep.mubr.f32.mxu0 0.0
      %2735 = vmatmul.mubr.f32.gmra.mxu0 %v2518
      %v2736 = vpop.f32.mrf.mxu0
      %v2737 = vadd.f32 0.0, %v2736
      %v2738 = vpop.f32.mrf.mxu0
      %2739 = vmatprep.mubr.f32.mxu0 0.0
      %2740 = vmatmul.mubr.f32.gmra.mxu0 %v2521
      %v2741 = vpop.f32.mrf.mxu0
      %v2742 = vadd.f32 0.0, %v2741
      %v2743 = vpop.f32.mrf.mxu0
      %2744 = vmatprep.mubr.f32.mxu0 0.0
      %2745 = vmatmul.mubr.f32.gmra.mxu0 %v2524
      %v2746 = vpop.f32.mrf.mxu0
      %v2747 = vadd.f32 0.0, %v2746
      %v2748 = vpop.f32.mrf.mxu0
      %2749 = vmatprep.mubr.f32.mxu0 0.0
      %2750 = vmatmul.mubr.f32.gmra.mxu0 %v2527
      %v2751 = vpop.f32.mrf.mxu0
      %v2752 = vadd.f32 0.0, %v2751
      %v2753 = vpop.f32.mrf.mxu0
      %2754 = vmatprep.mubr.f32.mxu0 0.0
      %2755 = vmatmul.mubr.f32.gmra.mxu0 %v2530
      %v2756 = vpop.f32.mrf.mxu0
      %v2757 = vadd.f32 0.0, %v2756
      %v2758 = vpop.f32.mrf.mxu0
      %2759 = vdwg.mxu0
      %v2760 = vld [vmem:[#allocation2] sm:$0xff]
      %v2761 = vld [vmem:[#allocation2 + $0x8] sm:$0xff]
      %v2762 = vld [vmem:[#allocation2 + $0x10] sm:$0xff]
      %v2763 = vld [vmem:[#allocation2 + $0x18] sm:$0xff]
      %v2764 = vld [vmem:[#allocation2 + $0x20] sm:$0xff]
      %v2765 = vld [vmem:[#allocation2 + $0x28] sm:$0xff]
      %v2766 = vld [vmem:[#allocation2 + $0x30] sm:$0xff]
      %v2767 = vld [vmem:[#allocation2 + $0x38] sm:$0xff]
      %v2768 = vld [vmem:[#allocation2 + $0x40] sm:$0xff]
      %v2769 = vld [vmem:[#allocation2 + $0x48] sm:$0xff]
      %v2770 = vld [vmem:[#allocation2 + $0x50] sm:$0xff]
      %v2771 = vld [vmem:[#allocation2 + $0x58] sm:$0xff]
      %v2772 = vld [vmem:[#allocation2 + $0x60] sm:$0xff]
      %v2773 = vld [vmem:[#allocation2 + $0x68] sm:$0xff]
      %v2774 = vld [vmem:[#allocation2 + $0x70] sm:$0xff]
      %v2775 = vld [vmem:[#allocation2 + $0x78] sm:$0xff]
      %v2776 = vld [vmem:[#allocation2 + $0x80] sm:$0xff]
      %v2777 = vld [vmem:[#allocation2 + $0x88] sm:$0xff]
      %v2778 = vld [vmem:[#allocation2 + $0x90] sm:$0xff]
      %v2779 = vld [vmem:[#allocation2 + $0x98] sm:$0xff]
      %v2780 = vld [vmem:[#allocation2 + $0xa0] sm:$0xff]
      %v2781 = vld [vmem:[#allocation2 + $0xa8] sm:$0xff]
      %v2782 = vld [vmem:[#allocation2 + $0xb0] sm:$0xff]
      %v2783 = vld [vmem:[#allocation2 + $0xb8] sm:$0xff]
      %v2784 = vld [vmem:[#allocation2 + $0xc0] sm:$0xff]
      %v2785 = vld [vmem:[#allocation2 + $0xc8] sm:$0xff]
      %v2786 = vld [vmem:[#allocation2 + $0xd0] sm:$0xff]
      %v2787 = vld [vmem:[#allocation2 + $0xd8] sm:$0xff]
      %v2788 = vld [vmem:[#allocation2 + $0xe0] sm:$0xff]
      %v2789 = vld [vmem:[#allocation2 + $0xe8] sm:$0xff]
      %v2790 = vld [vmem:[#allocation2 + $0xf0] sm:$0xff]
      %v2791 = vld [vmem:[#allocation2 + $0xf8] sm:$0xff]
      %v2792 = vadd.f32 %v2760, %v2602
      %v2793 = vadd.f32 %v2761, %v2607
      %v2794 = vadd.f32 %v2762, %v2612
      %v2795 = vadd.f32 %v2763, %v2617
      %v2796 = vadd.f32 %v2764, %v2622
      %v2797 = vadd.f32 %v2765, %v2627
      %v2798 = vadd.f32 %v2766, %v2632
      %v2799 = vadd.f32 %v2767, %v2637
      %v2800 = vadd.f32 %v2768, %v2642
      %v2801 = vadd.f32 %v2769, %v2647
      %v2802 = vadd.f32 %v2770, %v2652
      %v2803 = vadd.f32 %v2771, %v2657
      %v2804 = vadd.f32 %v2772, %v2662
      %v2805 = vadd.f32 %v2773, %v2667
      %v2806 = vadd.f32 %v2774, %v2672
      %v2807 = vadd.f32 %v2775, %v2677
      %v2808 = vadd.f32 %v2776, %v2682
      %v2809 = vadd.f32 %v2777, %v2687
      %v2810 = vadd.f32 %v2778, %v2692
      %v2811 = vadd.f32 %v2779, %v2697
      %v2812 = vadd.f32 %v2780, %v2702
      %v2813 = vadd.f32 %v2781, %v2707
      %v2814 = vadd.f32 %v2782, %v2712
      %v2815 = vadd.f32 %v2783, %v2717
      %v2816 = vadd.f32 %v2784, %v2722
      %v2817 = vadd.f32 %v2785, %v2727
      %v2818 = vadd.f32 %v2786, %v2732
      %v2819 = vadd.f32 %v2787, %v2737
      %v2820 = vadd.f32 %v2788, %v2742
      %v2821 = vadd.f32 %v2789, %v2747
      %v2822 = vadd.f32 %v2790, %v2752
      %v2823 = vadd.f32 %v2791, %v2757
      %2824 = vst [vmem:[#allocation2] sm:$0xff] %v2792
      %2825 = vst [vmem:[#allocation2 + $0x8] sm:$0xff] %v2793
      %2826 = vst [vmem:[#allocation2 + $0x10] sm:$0xff] %v2794
      %2827 = vst [vmem:[#allocation2 + $0x18] sm:$0xff] %v2795
      %2828 = vst [vmem:[#allocation2 + $0x20] sm:$0xff] %v2796
      %2829 = vst [vmem:[#allocation2 + $0x28] sm:$0xff] %v2797
      %2830 = vst [vmem:[#allocation2 + $0x30] sm:$0xff] %v2798
      %2831 = vst [vmem:[#allocation2 + $0x38] sm:$0xff] %v2799
      %2832 = vst [vmem:[#allocation2 + $0x40] sm:$0xff] %v2800
      %2833 = vst [vmem:[#allocation2 + $0x48] sm:$0xff] %v2801
      %2834 = vst [vmem:[#allocation2 + $0x50] sm:$0xff] %v2802
      %2835 = vst [vmem:[#allocation2 + $0x58] sm:$0xff] %v2803
      %2836 = vst [vmem:[#allocation2 + $0x60] sm:$0xff] %v2804
      %2837 = vst [vmem:[#allocation2 + $0x68] sm:$0xff] %v2805
      %2838 = vst [vmem:[#allocation2 + $0x70] sm:$0xff] %v2806
      %2839 = vst [vmem:[#allocation2 + $0x78] sm:$0xff] %v2807
      %2840 = vst [vmem:[#allocation2 + $0x80] sm:$0xff] %v2808
      %2841 = vst [vmem:[#allocation2 + $0x88] sm:$0xff] %v2809
      %2842 = vst [vmem:[#allocation2 + $0x90] sm:$0xff] %v2810
      %2843 = vst [vmem:[#allocation2 + $0x98] sm:$0xff] %v2811
      %2844 = vst [vmem:[#allocation2 + $0xa0] sm:$0xff] %v2812
      %2845 = vst [vmem:[#allocation2 + $0xa8] sm:$0xff] %v2813
      %2846 = vst [vmem:[#allocation2 + $0xb0] sm:$0xff] %v2814
      %2847 = vst [vmem:[#allocation2 + $0xb8] sm:$0xff] %v2815
      %2848 = vst [vmem:[#allocation2 + $0xc0] sm:$0xff] %v2816
      %2849 = vst [vmem:[#allocation2 + $0xc8] sm:$0xff] %v2817
      %2850 = vst [vmem:[#allocation2 + $0xd0] sm:$0xff] %v2818
      %2851 = vst [vmem:[#allocation2 + $0xd8] sm:$0xff] %v2819
      %2852 = vst [vmem:[#allocation2 + $0xe0] sm:$0xff] %v2820
      %2853 = vst [vmem:[#allocation2 + $0xe8] sm:$0xff] %v2821
      %2854 = vst [vmem:[#allocation2 + $0xf0] sm:$0xff] %v2822
      %2855 = vst [vmem:[#allocation2 + $0xf8] sm:$0xff] %v2823
      %s2856 = sadd.s32 %s189, 2
      %s2857 = smul.u32 %s2856, 24
      %s2858 = scalar_lea.vmem %s180, %s2857
      %v2859 = vld [vmem:[%s2858] sm:$0xff]
      %v2860 = vld [vmem:[%s2858 + $0x8] sm:$0xff]
      %v2861 = vld [vmem:[%s2858 + $0x18] sm:$0xff]
      %v2862 = vld [vmem:[%s2858 + $0x20] sm:$0xff]
      %v2863 = vld [vmem:[%s2858 + $0x30] sm:$0xff]
      %v2864 = vld [vmem:[%s2858 + $0x38] sm:$0xff]
      %v2865 = vld [vmem:[%s2858 + $0x48] sm:$0xff]
      %v2866 = vld [vmem:[%s2858 + $0x50] sm:$0xff]
      %v2867 = vld [vmem:[%s2858 + $0x60] sm:$0xff]
      %v2868 = vld [vmem:[%s2858 + $0x68] sm:$0xff]
      %v2869 = vld [vmem:[%s2858 + $0x78] sm:$0xff]
      %v2870 = vld [vmem:[%s2858 + $0x80] sm:$0xff]
      %v2871 = vld [vmem:[%s2858 + $0x90] sm:$0xff]
      %v2872 = vld [vmem:[%s2858 + $0x98] sm:$0xff]
      %v2873 = vld [vmem:[%s2858 + $0xa8] sm:$0xff]
      %v2874 = vld [vmem:[%s2858 + $0xb0] sm:$0xff]
      %v2875 = vld [vmem:[%s2858 + $0xc0] sm:$0xff]
      %v2876 = vld [vmem:[%s2858 + $0xc8] sm:$0xff]
      %v2877 = vld [vmem:[%s2858 + $0xd8] sm:$0xff]
      %v2878 = vld [vmem:[%s2858 + $0xe0] sm:$0xff]
      %v2879 = vld [vmem:[%s2858 + $0xf0] sm:$0xff]
      %v2880 = vld [vmem:[%s2858 + $0xf8] sm:$0xff]
      %v2881 = vld [vmem:[%s2858 + $0x108] sm:$0xff]
      %v2882 = vld [vmem:[%s2858 + $0x110] sm:$0xff]
      %v2883 = vld [vmem:[%s2858 + $0x120] sm:$0xff]
      %v2884 = vld [vmem:[%s2858 + $0x128] sm:$0xff]
      %v2885 = vld [vmem:[%s2858 + $0x138] sm:$0xff]
      %v2886 = vld [vmem:[%s2858 + $0x140] sm:$0xff]
      %v2887 = vld [vmem:[%s2858 + $0x150] sm:$0xff]
      %v2888 = vld [vmem:[%s2858 + $0x158] sm:$0xff]
      %v2889 = vld [vmem:[%s2858 + $0x168] sm:$0xff]
      %v2890 = vld [vmem:[%s2858 + $0x170] sm:$0xff]
      %s2891 = scalar_lea.vmem %s1, 24
      %v2892 = vld [vmem:[%s2891] sm:$0xf]
      %v2894 = vsel %vm225, %v2859, 0
      %v2897 = vsel %vm225, %v2860, 0
      %v2900 = vsel %vm225, %v2861, 0
      %v2903 = vsel %vm225, %v2862, 0
      %v2906 = vsel %vm225, %v2863, 0
      %v2909 = vsel %vm225, %v2864, 0
      %v2912 = vsel %vm225, %v2865, 0
      %v2915 = vsel %vm225, %v2866, 0
      %v2918 = vsel %vm225, %v2867, 0
      %v2921 = vsel %vm225, %v2868, 0
      %v2924 = vsel %vm225, %v2869, 0
      %v2927 = vsel %vm225, %v2870, 0
      %v2930 = vsel %vm225, %v2871, 0
      %v2933 = vsel %vm225, %v2872, 0
      %v2936 = vsel %vm225, %v2873, 0
      %v2939 = vsel %vm225, %v2874, 0
      %v2942 = vsel %vm225, %v2875, 0
      %v2945 = vsel %vm225, %v2876, 0
      %v2948 = vsel %vm225, %v2877, 0
      %v2951 = vsel %vm225, %v2878, 0
      %v2954 = vsel %vm225, %v2879, 0
      %v2957 = vsel %vm225, %v2880, 0
      %v2960 = vsel %vm225, %v2881, 0
      %v2963 = vsel %vm225, %v2882, 0
      %v2966 = vsel %vm225, %v2883, 0
      %v2969 = vsel %vm225, %v2884, 0
      %v2972 = vsel %vm225, %v2885, 0
      %v2975 = vsel %vm225, %v2886, 0
      %v2978 = vsel %vm225, %v2887, 0
      %v2981 = vsel %vm225, %v2888, 0
      %v2984 = vsel %vm225, %v2889, 0
      %v2987 = vsel %vm225, %v2890, 0
      %v2990 = vsel %vm322, %v2892, 0
      %2992 = vmatprep.subr.mxu0 0.0
      %2993 = vmatpush1.msra.mxu0 0.0
      %2994 = vmatprep.subr.mxu0 0.0
      %2995 = vmatpush1.msra.mxu0 0.0
      %2996 = vmatprep.subr.mxu0 0.0
      %2997 = vmatpush1.msra.mxu0 0.0
      %2998 = vmatprep.subr.mxu0 0.0
      %2999 = vmatpush1.msra.mxu0 0.0
      %3000 = vmatprep.subr.mxu0 0.0
      %3001 = vmatpush1.msra.mxu0 0.0
      %3002 = vmatprep.subr.mxu0 0.0
      %3003 = vmatpush1.msra.mxu0 0.0
      %3004 = vmatprep.subr.mxu0 0.0
      %3005 = vmatpush1.msra.mxu0 0.0
      %3006 = vmatprep.subr.mxu0 0.0
      %3007 = vmatpush1.msra.mxu0 0.0
      %3008 = vmatprep.subr.mxu0 0.0
      %3009 = vmatpush1.msra.mxu0 0.0
      %3010 = vmatprep.subr.mxu0 0.0
      %3011 = vmatpush1.msra.mxu0 0.0
      %3012 = vmatprep.subr.mxu0 0.0
      %3013 = vmatpush1.msra.mxu0 0.0
      %3014 = vmatprep.subr.mxu0 0.0
      %3015 = vmatpush1.msra.mxu0 0.0
      %3016 = vmatprep.subr.mxu0 0.0
      %3017 = vmatpush1.msra.mxu0 0.0
      %3018 = vmatprep.subr.mxu0 0.0
      %3019 = vmatpush1.msra.mxu0 0.0
      %3020 = vmatprep.subr.mxu0 0.0
      %3021 = vmatpush1.msra.mxu0 0.0
      %3022 = vmatprep.subr.mxu0 0.0
      %3023 = vmatpush1.msra.mxu0 %v2990
      %3024 = vmatprep.subr.mxu0 0.0
      %3025 = vmatpush2.msra.mxu0 0.0
      %3026 = vmatprep.subr.mxu0 0.0
      %3027 = vmatpush2.msra.mxu0 0.0
      %3028 = vmatprep.subr.mxu0 0.0
      %3029 = vmatpush2.msra.mxu0 0.0
      %3030 = vmatprep.subr.mxu0 0.0
      %3031 = vmatpush2.msra.mxu0 0.0
      %3032 = vmatprep.subr.mxu0 0.0
      %3033 = vmatpush2.msra.mxu0 0.0
      %3034 = vmatprep.subr.mxu0 0.0
      %3035 = vmatpush2.msra.mxu0 0.0
      %3036 = vmatprep.subr.mxu0 0.0
      %3037 = vmatpush2.msra.mxu0 0.0
      %3038 = vmatprep.subr.mxu0 0.0
      %3039 = vmatpush2.msra.mxu0 0.0
      %3040 = vmatprep.subr.mxu0 0.0
      %3041 = vmatpush2.msra.mxu0 0.0
      %3042 = vmatprep.subr.mxu0 0.0
      %3043 = vmatpush2.msra.mxu0 0.0
      %3044 = vmatprep.subr.mxu0 0.0
      %3045 = vmatpush2.msra.mxu0 0.0
      %3046 = vmatprep.subr.mxu0 0.0
      %3047 = vmatpush2.msra.mxu0 0.0
      %3048 = vmatprep.subr.mxu0 0.0
      %3049 = vmatpush2.msra.mxu0 0.0
      %3050 = vmatprep.subr.mxu0 0.0
      %3051 = vmatpush2.msra.mxu0 0.0
      %3052 = vmatprep.subr.mxu0 0.0
      %3053 = vmatpush2.msra.mxu0 0.0
      %3054 = vmatprep.subr.mxu0 0.0
      %3055 = vmatpush2.msra.mxu0 0.0
      %3056 = vmatprep.mubr.f32.mxu0 0.0
      %3057 = vmatmul.mubr.f32.gmra.mxu0 %v2894
      %v3058 = vpop.f32.mrf.mxu0
      %v3059 = vadd.f32 0.0, %v3058
      %v3060 = vpop.f32.mrf.mxu0
      %3061 = vmatprep.mubr.f32.mxu0 0.0
      %3062 = vmatmul.mubr.f32.gmra.mxu0 %v2897
      %v3063 = vpop.f32.mrf.mxu0
      %v3064 = vadd.f32 0.0, %v3063
      %v3065 = vpop.f32.mrf.mxu0
      %3066 = vmatprep.mubr.f32.mxu0 0.0
      %3067 = vmatmul.mubr.f32.gmra.mxu0 %v2900
      %v3068 = vpop.f32.mrf.mxu0
      %v3069 = vadd.f32 0.0, %v3068
      %v3070 = vpop.f32.mrf.mxu0
      %3071 = vmatprep.mubr.f32.mxu0 0.0
      %3072 = vmatmul.mubr.f32.gmra.mxu0 %v2903
      %v3073 = vpop.f32.mrf.mxu0
      %v3074 = vadd.f32 0.0, %v3073
      %v3075 = vpop.f32.mrf.mxu0
      %3076 = vmatprep.mubr.f32.mxu0 0.0
      %3077 = vmatmul.mubr.f32.gmra.mxu0 %v2906
      %v3078 = vpop.f32.mrf.mxu0
      %v3079 = vadd.f32 0.0, %v3078
      %v3080 = vpop.f32.mrf.mxu0
      %3081 = vmatprep.mubr.f32.mxu0 0.0
      %3082 = vmatmul.mubr.f32.gmra.mxu0 %v2909
      %v3083 = vpop.f32.mrf.mxu0
      %v3084 = vadd.f32 0.0, %v3083
      %v3085 = vpop.f32.mrf.mxu0
      %3086 = vmatprep.mubr.f32.mxu0 0.0
      %3087 = vmatmul.mubr.f32.gmra.mxu0 %v2912
      %v3088 = vpop.f32.mrf.mxu0
      %v3089 = vadd.f32 0.0, %v3088
      %v3090 = vpop.f32.mrf.mxu0
      %3091 = vmatprep.mubr.f32.mxu0 0.0
      %3092 = vmatmul.mubr.f32.gmra.mxu0 %v2915
      %v3093 = vpop.f32.mrf.mxu0
      %v3094 = vadd.f32 0.0, %v3093
      %v3095 = vpop.f32.mrf.mxu0
      %3096 = vmatprep.mubr.f32.mxu0 0.0
      %3097 = vmatmul.mubr.f32.gmra.mxu0 %v2918
      %v3098 = vpop.f32.mrf.mxu0
      %v3099 = vadd.f32 0.0, %v3098
      %v3100 = vpop.f32.mrf.mxu0
      %3101 = vmatprep.mubr.f32.mxu0 0.0
      %3102 = vmatmul.mubr.f32.gmra.mxu0 %v2921
      %v3103 = vpop.f32.mrf.mxu0
      %v3104 = vadd.f32 0.0, %v3103
      %v3105 = vpop.f32.mrf.mxu0
      %3106 = vmatprep.mubr.f32.mxu0 0.0
      %3107 = vmatmul.mubr.f32.gmra.mxu0 %v2924
      %v3108 = vpop.f32.mrf.mxu0
      %v3109 = vadd.f32 0.0, %v3108
      %v3110 = vpop.f32.mrf.mxu0
      %3111 = vmatprep.mubr.f32.mxu0 0.0
      %3112 = vmatmul.mubr.f32.gmra.mxu0 %v2927
      %v3113 = vpop.f32.mrf.mxu0
      %v3114 = vadd.f32 0.0, %v3113
      %v3115 = vpop.f32.mrf.mxu0
      %3116 = vmatprep.mubr.f32.mxu0 0.0
      %3117 = vmatmul.mubr.f32.gmra.mxu0 %v2930
      %v3118 = vpop.f32.mrf.mxu0
      %v3119 = vadd.f32 0.0, %v3118
      %v3120 = vpop.f32.mrf.mxu0
      %3121 = vmatprep.mubr.f32.mxu0 0.0
      %3122 = vmatmul.mubr.f32.gmra.mxu0 %v2933
      %v3123 = vpop.f32.mrf.mxu0
      %v3124 = vadd.f32 0.0, %v3123
      %v3125 = vpop.f32.mrf.mxu0
      %3126 = vmatprep.mubr.f32.mxu0 0.0
      %3127 = vmatmul.mubr.f32.gmra.mxu0 %v2936
      %v3128 = vpop.f32.mrf.mxu0
      %v3129 = vadd.f32 0.0, %v3128
      %v3130 = vpop.f32.mrf.mxu0
      %3131 = vmatprep.mubr.f32.mxu0 0.0
      %3132 = vmatmul.mubr.f32.gmra.mxu0 %v2939
      %v3133 = vpop.f32.mrf.mxu0
      %v3134 = vadd.f32 0.0, %v3133
      %v3135 = vpop.f32.mrf.mxu0
      %3136 = vmatprep.mubr.f32.mxu0 0.0
      %3137 = vmatmul.mubr.f32.gmra.mxu0 %v2942
      %v3138 = vpop.f32.mrf.mxu0
      %v3139 = vadd.f32 0.0, %v3138
      %v3140 = vpop.f32.mrf.mxu0
      %3141 = vmatprep.mubr.f32.mxu0 0.0
      %3142 = vmatmul.mubr.f32.gmra.mxu0 %v2945
      %v3143 = vpop.f32.mrf.mxu0
      %v3144 = vadd.f32 0.0, %v3143
      %v3145 = vpop.f32.mrf.mxu0
      %3146 = vmatprep.mubr.f32.mxu0 0.0
      %3147 = vmatmul.mubr.f32.gmra.mxu0 %v2948
      %v3148 = vpop.f32.mrf.mxu0
      %v3149 = vadd.f32 0.0, %v3148
      %v3150 = vpop.f32.mrf.mxu0
      %3151 = vmatprep.mubr.f32.mxu0 0.0
      %3152 = vmatmul.mubr.f32.gmra.mxu0 %v2951
      %v3153 = vpop.f32.mrf.mxu0
      %v3154 = vadd.f32 0.0, %v3153
      %v3155 = vpop.f32.mrf.mxu0
      %3156 = vmatprep.mubr.f32.mxu0 0.0
      %3157 = vmatmul.mubr.f32.gmra.mxu0 %v2954
      %v3158 = vpop.f32.mrf.mxu0
      %v3159 = vadd.f32 0.0, %v3158
      %v3160 = vpop.f32.mrf.mxu0
      %3161 = vmatprep.mubr.f32.mxu0 0.0
      %3162 = vmatmul.mubr.f32.gmra.mxu0 %v2957
      %v3163 = vpop.f32.mrf.mxu0
      %v3164 = vadd.f32 0.0, %v3163
      %v3165 = vpop.f32.mrf.mxu0
      %3166 = vmatprep.mubr.f32.mxu0 0.0
      %3167 = vmatmul.mubr.f32.gmra.mxu0 %v2960
      %v3168 = vpop.f32.mrf.mxu0
      %v3169 = vadd.f32 0.0, %v3168
      %v3170 = vpop.f32.mrf.mxu0
      %3171 = vmatprep.mubr.f32.mxu0 0.0
      %3172 = vmatmul.mubr.f32.gmra.mxu0 %v2963
      %v3173 = vpop.f32.mrf.mxu0
      %v3174 = vadd.f32 0.0, %v3173
      %v3175 = vpop.f32.mrf.mxu0
      %3176 = vmatprep.mubr.f32.mxu0 0.0
      %3177 = vmatmul.mubr.f32.gmra.mxu0 %v2966
      %v3178 = vpop.f32.mrf.mxu0
      %v3179 = vadd.f32 0.0, %v3178
      %v3180 = vpop.f32.mrf.mxu0
      %3181 = vmatprep.mubr.f32.mxu0 0.0
      %3182 = vmatmul.mubr.f32.gmra.mxu0 %v2969
      %v3183 = vpop.f32.mrf.mxu0
      %v3184 = vadd.f32 0.0, %v3183
      %v3185 = vpop.f32.mrf.mxu0
      %3186 = vmatprep.mubr.f32.mxu0 0.0
      %3187 = vmatmul.mubr.f32.gmra.mxu0 %v2972
      %v3188 = vpop.f32.mrf.mxu0
      %v3189 = vadd.f32 0.0, %v3188
      %v3190 = vpop.f32.mrf.mxu0
      %3191 = vmatprep.mubr.f32.mxu0 0.0
      %3192 = vmatmul.mubr.f32.gmra.mxu0 %v2975
      %v3193 = vpop.f32.mrf.mxu0
      %v3194 = vadd.f32 0.0, %v3193
      %v3195 = vpop.f32.mrf.mxu0
      %3196 = vmatprep.mubr.f32.mxu0 0.0
      %3197 = vmatmul.mubr.f32.gmra.mxu0 %v2978
      %v3198 = vpop.f32.mrf.mxu0
      %v3199 = vadd.f32 0.0, %v3198
      %v3200 = vpop.f32.mrf.mxu0
      %3201 = vmatprep.mubr.f32.mxu0 0.0
      %3202 = vmatmul.mubr.f32.gmra.mxu0 %v2981
      %v3203 = vpop.f32.mrf.mxu0
      %v3204 = vadd.f32 0.0, %v3203
      %v3205 = vpop.f32.mrf.mxu0
      %3206 = vmatprep.mubr.f32.mxu0 0.0
      %3207 = vmatmul.mubr.f32.gmra.mxu0 %v2984
      %v3208 = vpop.f32.mrf.mxu0
      %v3209 = vadd.f32 0.0, %v3208
      %v3210 = vpop.f32.mrf.mxu0
      %3211 = vmatprep.mubr.f32.mxu0 0.0
      %3212 = vmatmul.mubr.f32.gmra.mxu0 %v2987
      %v3213 = vpop.f32.mrf.mxu0
      %v3214 = vadd.f32 0.0, %v3213
      %v3215 = vpop.f32.mrf.mxu0
      %3216 = vdwg.mxu0
      %v3217 = vld [vmem:[#allocation2] sm:$0xff]
      %v3218 = vld [vmem:[#allocation2 + $0x8] sm:$0xff]
      %v3219 = vld [vmem:[#allocation2 + $0x10] sm:$0xff]
      %v3220 = vld [vmem:[#allocation2 + $0x18] sm:$0xff]
      %v3221 = vld [vmem:[#allocation2 + $0x20] sm:$0xff]
      %v3222 = vld [vmem:[#allocation2 + $0x28] sm:$0xff]
      %v3223 = vld [vmem:[#allocation2 + $0x30] sm:$0xff]
      %v3224 = vld [vmem:[#allocation2 + $0x38] sm:$0xff]
      %v3225 = vld [vmem:[#allocation2 + $0x40] sm:$0xff]
      %v3226 = vld [vmem:[#allocation2 + $0x48] sm:$0xff]
      %v3227 = vld [vmem:[#allocation2 + $0x50] sm:$0xff]
      %v3228 = vld [vmem:[#allocation2 + $0x58] sm:$0xff]
      %v3229 = vld [vmem:[#allocation2 + $0x60] sm:$0xff]
      %v3230 = vld [vmem:[#allocation2 + $0x68] sm:$0xff]
      %v3231 = vld [vmem:[#allocation2 + $0x70] sm:$0xff]
      %v3232 = vld [vmem:[#allocation2 + $0x78] sm:$0xff]
      %v3233 = vld [vmem:[#allocation2 + $0x80] sm:$0xff]
      %v3234 = vld [vmem:[#allocation2 + $0x88] sm:$0xff]
      %v3235 = vld [vmem:[#allocation2 + $0x90] sm:$0xff]
      %v3236 = vld [vmem:[#allocation2 + $0x98] sm:$0xff]
      %v3237 = vld [vmem:[#allocation2 + $0xa0] sm:$0xff]
      %v3238 = vld [vmem:[#allocation2 + $0xa8] sm:$0xff]
      %v3239 = vld [vmem:[#allocation2 + $0xb0] sm:$0xff]
      %v3240 = vld [vmem:[#allocation2 + $0xb8] sm:$0xff]
      %v3241 = vld [vmem:[#allocation2 + $0xc0] sm:$0xff]
      %v3242 = vld [vmem:[#allocation2 + $0xc8] sm:$0xff]
      %v3243 = vld [vmem:[#allocation2 + $0xd0] sm:$0xff]
      %v3244 = vld [vmem:[#allocation2 + $0xd8] sm:$0xff]
      %v3245 = vld [vmem:[#allocation2 + $0xe0] sm:$0xff]
      %v3246 = vld [vmem:[#allocation2 + $0xe8] sm:$0xff]
      %v3247 = vld [vmem:[#allocation2 + $0xf0] sm:$0xff]
      %v3248 = vld [vmem:[#allocation2 + $0xf8] sm:$0xff]
      %v3249 = vadd.f32 %v3217, %v3059
      %v3250 = vadd.f32 %v3218, %v3064
      %v3251 = vadd.f32 %v3219, %v3069
      %v3252 = vadd.f32 %v3220, %v3074
      %v3253 = vadd.f32 %v3221, %v3079
      %v3254 = vadd.f32 %v3222, %v3084
      %v3255 = vadd.f32 %v3223, %v3089
      %v3256 = vadd.f32 %v3224, %v3094
      %v3257 = vadd.f32 %v3225, %v3099
      %v3258 = vadd.f32 %v3226, %v3104
      %v3259 = vadd.f32 %v3227, %v3109
      %v3260 = vadd.f32 %v3228, %v3114
      %v3261 = vadd.f32 %v3229, %v3119
      %v3262 = vadd.f32 %v3230, %v3124
      %v3263 = vadd.f32 %v3231, %v3129
      %v3264 = vadd.f32 %v3232, %v3134
      %v3265 = vadd.f32 %v3233, %v3139
      %v3266 = vadd.f32 %v3234, %v3144
      %v3267 = vadd.f32 %v3235, %v3149
      %v3268 = vadd.f32 %v3236, %v3154
      %v3269 = vadd.f32 %v3237, %v3159
      %v3270 = vadd.f32 %v3238, %v3164
      %v3271 = vadd.f32 %v3239, %v3169
      %v3272 = vadd.f32 %v3240, %v3174
      %v3273 = vadd.f32 %v3241, %v3179
      %v3274 = vadd.f32 %v3242, %v3184
      %v3275 = vadd.f32 %v3243, %v3189
      %v3276 = vadd.f32 %v3244, %v3194
      %v3277 = vadd.f32 %v3245, %v3199
      %v3278 = vadd.f32 %v3246, %v3204
      %v3279 = vadd.f32 %v3247, %v3209
      %v3280 = vadd.f32 %v3248, %v3214
      %3281 = vst [vmem:[#allocation2] sm:$0xff] %v3249
      %3282 = vst [vmem:[#allocation2 + $0x8] sm:$0xff] %v3250
      %3283 = vst [vmem:[#allocation2 + $0x10] sm:$0xff] %v3251
      %3284 = vst [vmem:[#allocation2 + $0x18] sm:$0xff] %v3252
      %3285 = vst [vmem:[#allocation2 + $0x20] sm:$0xff] %v3253
      %3286 = vst [vmem:[#allocation2 + $0x28] sm:$0xff] %v3254
      %3287 = vst [vmem:[#allocation2 + $0x30] sm:$0xff] %v3255
      %3288 = vst [vmem:[#allocation2 + $0x38] sm:$0xff] %v3256
      %3289 = vst [vmem:[#allocation2 + $0x40] sm:$0xff] %v3257
      %3290 = vst [vmem:[#allocation2 + $0x48] sm:$0xff] %v3258
      %3291 = vst [vmem:[#allocation2 + $0x50] sm:$0xff] %v3259
      %3292 = vst [vmem:[#allocation2 + $0x58] sm:$0xff] %v3260
      %3293 = vst [vmem:[#allocation2 + $0x60] sm:$0xff] %v3261
      %3294 = vst [vmem:[#allocation2 + $0x68] sm:$0xff] %v3262
      %3295 = vst [vmem:[#allocation2 + $0x70] sm:$0xff] %v3263
      %3296 = vst [vmem:[#allocation2 + $0x78] sm:$0xff] %v3264
      %3297 = vst [vmem:[#allocation2 + $0x80] sm:$0xff] %v3265
      %3298 = vst [vmem:[#allocation2 + $0x88] sm:$0xff] %v3266
      %3299 = vst [vmem:[#allocation2 + $0x90] sm:$0xff] %v3267
      %3300 = vst [vmem:[#allocation2 + $0x98] sm:$0xff] %v3268
      %3301 = vst [vmem:[#allocation2 + $0xa0] sm:$0xff] %v3269
      %3302 = vst [vmem:[#allocation2 + $0xa8] sm:$0xff] %v3270
      %3303 = vst [vmem:[#allocation2 + $0xb0] sm:$0xff] %v3271
      %3304 = vst [vmem:[#allocation2 + $0xb8] sm:$0xff] %v3272
      %3305 = vst [vmem:[#allocation2 + $0xc0] sm:$0xff] %v3273
      %3306 = vst [vmem:[#allocation2 + $0xc8] sm:$0xff] %v3274
      %3307 = vst [vmem:[#allocation2 + $0xd0] sm:$0xff] %v3275
      %3308 = vst [vmem:[#allocation2 + $0xd8] sm:$0xff] %v3276
      %3309 = vst [vmem:[#allocation2 + $0xe0] sm:$0xff] %v3277
      %3310 = vst [vmem:[#allocation2 + $0xe8] sm:$0xff] %v3278
      %3311 = vst [vmem:[#allocation2 + $0xf0] sm:$0xff] %v3279
      %3312 = vst [vmem:[#allocation2 + $0xf8] sm:$0xff] %v3280
      %v3313 = vld [vmem:[%s2858 + $0x1] sm:$0xff]
      %v3314 = vld [vmem:[%s2858 + $0x9] sm:$0xff]
      %v3315 = vld [vmem:[%s2858 + $0x19] sm:$0xff]
      %v3316 = vld [vmem:[%s2858 + $0x21] sm:$0xff]
      %v3317 = vld [vmem:[%s2858 + $0x31] sm:$0xff]
      %v3318 = vld [vmem:[%s2858 + $0x39] sm:$0xff]
      %v3319 = vld [vmem:[%s2858 + $0x49] sm:$0xff]
      %v3320 = vld [vmem:[%s2858 + $0x51] sm:$0xff]
      %v3321 = vld [vmem:[%s2858 + $0x61] sm:$0xff]
      %v3322 = vld [vmem:[%s2858 + $0x69] sm:$0xff]
      %v3323 = vld [vmem:[%s2858 + $0x79] sm:$0xff]
      %v3324 = vld [vmem:[%s2858 + $0x81] sm:$0xff]
      %v3325 = vld [vmem:[%s2858 + $0x91] sm:$0xff]
      %v3326 = vld [vmem:[%s2858 + $0x99] sm:$0xff]
      %v3327 = vld [vmem:[%s2858 + $0xa9] sm:$0xff]
      %v3328 = vld [vmem:[%s2858 + $0xb1] sm:$0xff]
      %v3329 = vld [vmem:[%s2858 + $0xc1] sm:$0xff]
      %v3330 = vld [vmem:[%s2858 + $0xc9] sm:$0xff]
      %v3331 = vld [vmem:[%s2858 + $0xd9] sm:$0xff]
      %v3332 = vld [vmem:[%s2858 + $0xe1] sm:$0xff]
      %v3333 = vld [vmem:[%s2858 + $0xf1] sm:$0xff]
      %v3334 = vld [vmem:[%s2858 + $0xf9] sm:$0xff]
      %v3335 = vld [vmem:[%s2858 + $0x109] sm:$0xff]
      %v3336 = vld [vmem:[%s2858 + $0x111] sm:$0xff]
      %v3337 = vld [vmem:[%s2858 + $0x121] sm:$0xff]
      %v3338 = vld [vmem:[%s2858 + $0x129] sm:$0xff]
      %v3339 = vld [vmem:[%s2858 + $0x139] sm:$0xff]
      %v3340 = vld [vmem:[%s2858 + $0x141] sm:$0xff]
      %v3341 = vld [vmem:[%s2858 + $0x151] sm:$0xff]
      %v3342 = vld [vmem:[%s2858 + $0x159] sm:$0xff]
      %v3343 = vld [vmem:[%s2858 + $0x169] sm:$0xff]
      %v3344 = vld [vmem:[%s2858 + $0x171] sm:$0xff]
      %s3345 = scalar_lea.vmem %s1, 28
      %v3346 = vld [vmem:[%s3345] sm:$0xf]
      %v3348 = vsel %vm225, %v3313, 0
      %v3351 = vsel %vm225, %v3314, 0
      %v3354 = vsel %vm225, %v3315, 0
      %v3357 = vsel %vm225, %v3316, 0
      %v3360 = vsel %vm225, %v3317, 0
      %v3363 = vsel %vm225, %v3318, 0
      %v3366 = vsel %vm225, %v3319, 0
      %v3369 = vsel %vm225, %v3320, 0
      %v3372 = vsel %vm225, %v3321, 0
      %v3375 = vsel %vm225, %v3322, 0
      %v3378 = vsel %vm225, %v3323, 0
      %v3381 = vsel %vm225, %v3324, 0
      %v3384 = vsel %vm225, %v3325, 0
      %v3387 = vsel %vm225, %v3326, 0
      %v3390 = vsel %vm225, %v3327, 0
      %v3393 = vsel %vm225, %v3328, 0
      %v3396 = vsel %vm225, %v3329, 0
      %v3399 = vsel %vm225, %v3330, 0
      %v3402 = vsel %vm225, %v3331, 0
      %v3405 = vsel %vm225, %v3332, 0
      %v3408 = vsel %vm225, %v3333, 0
      %v3411 = vsel %vm225, %v3334, 0
      %v3414 = vsel %vm225, %v3335, 0
      %v3417 = vsel %vm225, %v3336, 0
      %v3420 = vsel %vm225, %v3337, 0
      %v3423 = vsel %vm225, %v3338, 0
      %v3426 = vsel %vm225, %v3339, 0
      %v3429 = vsel %vm225, %v3340, 0
      %v3432 = vsel %vm225, %v3341, 0
      %v3435 = vsel %vm225, %v3342, 0
      %v3438 = vsel %vm225, %v3343, 0
      %v3441 = vsel %vm225, %v3344, 0
      %v3444 = vsel %vm322, %v3346, 0
      %3446 = vmatprep.subr.mxu0 0.0
      %3447 = vmatpush1.msra.mxu0 0.0
      %3448 = vmatprep.subr.mxu0 0.0
      %3449 = vmatpush1.msra.mxu0 0.0
      %3450 = vmatprep.subr.mxu0 0.0
      %3451 = vmatpush1.msra.mxu0 0.0
      %3452 = vmatprep.subr.mxu0 0.0
      %3453 = vmatpush1.msra.mxu0 0.0
      %3454 = vmatprep.subr.mxu0 0.0
      %3455 = vmatpush1.msra.mxu0 0.0
      %3456 = vmatprep.subr.mxu0 0.0
      %3457 = vmatpush1.msra.mxu0 0.0
      %3458 = vmatprep.subr.mxu0 0.0
      %3459 = vmatpush1.msra.mxu0 0.0
      %3460 = vmatprep.subr.mxu0 0.0
      %3461 = vmatpush1.msra.mxu0 0.0
      %3462 = vmatprep.subr.mxu0 0.0
      %3463 = vmatpush1.msra.mxu0 0.0
      %3464 = vmatprep.subr.mxu0 0.0
      %3465 = vmatpush1.msra.mxu0 0.0
      %3466 = vmatprep.subr.mxu0 0.0
      %3467 = vmatpush1.msra.mxu0 0.0
      %3468 = vmatprep.subr.mxu0 0.0
      %3469 = vmatpush1.msra.mxu0 0.0
      %3470 = vmatprep.subr.mxu0 0.0
      %3471 = vmatpush1.msra.mxu0 0.0
      %3472 = vmatprep.subr.mxu0 0.0
      %3473 = vmatpush1.msra.mxu0 0.0
      %3474 = vmatprep.subr.mxu0 0.0
      %3475 = vmatpush1.msra.mxu0 0.0
      %3476 = vmatprep.subr.mxu0 0.0
      %3477 = vmatpush1.msra.mxu0 %v3444
      %3478 = vmatprep.subr.mxu0 0.0
      %3479 = vmatpush2.msra.mxu0 0.0
      %3480 = vmatprep.subr.mxu0 0.0
      %3481 = vmatpush2.msra.mxu0 0.0
      %3482 = vmatprep.subr.mxu0 0.0
      %3483 = vmatpush2.msra.mxu0 0.0
      %3484 = vmatprep.subr.mxu0 0.0
      %3485 = vmatpush2.msra.mxu0 0.0
      %3486 = vmatprep.subr.mxu0 0.0
      %3487 = vmatpush2.msra.mxu0 0.0
      %3488 = vmatprep.subr.mxu0 0.0
      %3489 = vmatpush2.msra.mxu0 0.0
      %3490 = vmatprep.subr.mxu0 0.0
      %3491 = vmatpush2.msra.mxu0 0.0
      %3492 = vmatprep.subr.mxu0 0.0
      %3493 = vmatpush2.msra.mxu0 0.0
      %3494 = vmatprep.subr.mxu0 0.0
      %3495 = vmatpush2.msra.mxu0 0.0
      %3496 = vmatprep.subr.mxu0 0.0
      %3497 = vmatpush2.msra.mxu0 0.0
      %3498 = vmatprep.subr.mxu0 0.0
      %3499 = vmatpush2.msra.mxu0 0.0
      %3500 = vmatprep.subr.mxu0 0.0
      %3501 = vmatpush2.msra.mxu0 0.0
      %3502 = vmatprep.subr.mxu0 0.0
      %3503 = vmatpush2.msra.mxu0 0.0
      %3504 = vmatprep.subr.mxu0 0.0
      %3505 = vmatpush2.msra.mxu0 0.0
      %3506 = vmatprep.subr.mxu0 0.0
      %3507 = vmatpush2.msra.mxu0 0.0
      %3508 = vmatprep.subr.mxu0 0.0
      %3509 = vmatpush2.msra.mxu0 0.0
      %3510 = vmatprep.mubr.f32.mxu0 0.0
      %3511 = vmatmul.mubr.f32.gmra.mxu0 %v3348
      %v3512 = vpop.f32.mrf.mxu0
      %v3513 = vadd.f32 0.0, %v3512
      %v3514 = vpop.f32.mrf.mxu0
      %3515 = vmatprep.mubr.f32.mxu0 0.0
      %3516 = vmatmul.mubr.f32.gmra.mxu0 %v3351
      %v3517 = vpop.f32.mrf.mxu0
      %v3518 = vadd.f32 0.0, %v3517
      %v3519 = vpop.f32.mrf.mxu0
      %3520 = vmatprep.mubr.f32.mxu0 0.0
      %3521 = vmatmul.mubr.f32.gmra.mxu0 %v3354
      %v3522 = vpop.f32.mrf.mxu0
      %v3523 = vadd.f32 0.0, %v3522
      %v3524 = vpop.f32.mrf.mxu0
      %3525 = vmatprep.mubr.f32.mxu0 0.0
      %3526 = vmatmul.mubr.f32.gmra.mxu0 %v3357
      %v3527 = vpop.f32.mrf.mxu0
      %v3528 = vadd.f32 0.0, %v3527
      %v3529 = vpop.f32.mrf.mxu0
      %3530 = vmatprep.mubr.f32.mxu0 0.0
      %3531 = vmatmul.mubr.f32.gmra.mxu0 %v3360
      %v3532 = vpop.f32.mrf.mxu0
      %v3533 = vadd.f32 0.0, %v3532
      %v3534 = vpop.f32.mrf.mxu0
      %3535 = vmatprep.mubr.f32.mxu0 0.0
      %3536 = vmatmul.mubr.f32.gmra.mxu0 %v3363
      %v3537 = vpop.f32.mrf.mxu0
      %v3538 = vadd.f32 0.0, %v3537
      %v3539 = vpop.f32.mrf.mxu0
      %3540 = vmatprep.mubr.f32.mxu0 0.0
      %3541 = vmatmul.mubr.f32.gmra.mxu0 %v3366
      %v3542 = vpop.f32.mrf.mxu0
      %v3543 = vadd.f32 0.0, %v3542
      %v3544 = vpop.f32.mrf.mxu0
      %3545 = vmatprep.mubr.f32.mxu0 0.0
      %3546 = vmatmul.mubr.f32.gmra.mxu0 %v3369
      %v3547 = vpop.f32.mrf.mxu0
      %v3548 = vadd.f32 0.0, %v3547
      %v3549 = vpop.f32.mrf.mxu0
      %3550 = vmatprep.mubr.f32.mxu0 0.0
      %3551 = vmatmul.mubr.f32.gmra.mxu0 %v3372
      %v3552 = vpop.f32.mrf.mxu0
      %v3553 = vadd.f32 0.0, %v3552
      %v3554 = vpop.f32.mrf.mxu0
      %3555 = vmatprep.mubr.f32.mxu0 0.0
      %3556 = vmatmul.mubr.f32.gmra.mxu0 %v3375
      %v3557 = vpop.f32.mrf.mxu0
      %v3558 = vadd.f32 0.0, %v3557
      %v3559 = vpop.f32.mrf.mxu0
      %3560 = vmatprep.mubr.f32.mxu0 0.0
      %3561 = vmatmul.mubr.f32.gmra.mxu0 %v3378
      %v3562 = vpop.f32.mrf.mxu0
      %v3563 = vadd.f32 0.0, %v3562
      %v3564 = vpop.f32.mrf.mxu0
      %3565 = vmatprep.mubr.f32.mxu0 0.0
      %3566 = vmatmul.mubr.f32.gmra.mxu0 %v3381
      %v3567 = vpop.f32.mrf.mxu0
      %v3568 = vadd.f32 0.0, %v3567
      %v3569 = vpop.f32.mrf.mxu0
      %3570 = vmatprep.mubr.f32.mxu0 0.0
      %3571 = vmatmul.mubr.f32.gmra.mxu0 %v3384
      %v3572 = vpop.f32.mrf.mxu0
      %v3573 = vadd.f32 0.0, %v3572
      %v3574 = vpop.f32.mrf.mxu0
      %3575 = vmatprep.mubr.f32.mxu0 0.0
      %3576 = vmatmul.mubr.f32.gmra.mxu0 %v3387
      %v3577 = vpop.f32.mrf.mxu0
      %v3578 = vadd.f32 0.0, %v3577
      %v3579 = vpop.f32.mrf.mxu0
      %3580 = vmatprep.mubr.f32.mxu0 0.0
      %3581 = vmatmul.mubr.f32.gmra.mxu0 %v3390
      %v3582 = vpop.f32.mrf.mxu0
      %v3583 = vadd.f32 0.0, %v3582
      %v3584 = vpop.f32.mrf.mxu0
      %3585 = vmatprep.mubr.f32.mxu0 0.0
      %3586 = vmatmul.mubr.f32.gmra.mxu0 %v3393
      %v3587 = vpop.f32.mrf.mxu0
      %v3588 = vadd.f32 0.0, %v3587
      %v3589 = vpop.f32.mrf.mxu0
      %3590 = vmatprep.mubr.f32.mxu0 0.0
      %3591 = vmatmul.mubr.f32.gmra.mxu0 %v3396
      %v3592 = vpop.f32.mrf.mxu0
      %v3593 = vadd.f32 0.0, %v3592
      %v3594 = vpop.f32.mrf.mxu0
      %3595 = vmatprep.mubr.f32.mxu0 0.0
      %3596 = vmatmul.mubr.f32.gmra.mxu0 %v3399
      %v3597 = vpop.f32.mrf.mxu0
      %v3598 = vadd.f32 0.0, %v3597
      %v3599 = vpop.f32.mrf.mxu0
      %3600 = vmatprep.mubr.f32.mxu0 0.0
      %3601 = vmatmul.mubr.f32.gmra.mxu0 %v3402
      %v3602 = vpop.f32.mrf.mxu0
      %v3603 = vadd.f32 0.0, %v3602
      %v3604 = vpop.f32.mrf.mxu0
      %3605 = vmatprep.mubr.f32.mxu0 0.0
      %3606 = vmatmul.mubr.f32.gmra.mxu0 %v3405
      %v3607 = vpop.f32.mrf.mxu0
      %v3608 = vadd.f32 0.0, %v3607
      %v3609 = vpop.f32.mrf.mxu0
      %3610 = vmatprep.mubr.f32.mxu0 0.0
      %3611 = vmatmul.mubr.f32.gmra.mxu0 %v3408
      %v3612 = vpop.f32.mrf.mxu0
      %v3613 = vadd.f32 0.0, %v3612
      %v3614 = vpop.f32.mrf.mxu0
      %3615 = vmatprep.mubr.f32.mxu0 0.0
      %3616 = vmatmul.mubr.f32.gmra.mxu0 %v3411
      %v3617 = vpop.f32.mrf.mxu0
      %v3618 = vadd.f32 0.0, %v3617
      %v3619 = vpop.f32.mrf.mxu0
      %3620 = vmatprep.mubr.f32.mxu0 0.0
      %3621 = vmatmul.mubr.f32.gmra.mxu0 %v3414
      %v3622 = vpop.f32.mrf.mxu0
      %v3623 = vadd.f32 0.0, %v3622
      %v3624 = vpop.f32.mrf.mxu0
      %3625 = vmatprep.mubr.f32.mxu0 0.0
      %3626 = vmatmul.mubr.f32.gmra.mxu0 %v3417
      %v3627 = vpop.f32.mrf.mxu0
      %v3628 = vadd.f32 0.0, %v3627
      %v3629 = vpop.f32.mrf.mxu0
      %3630 = vmatprep.mubr.f32.mxu0 0.0
      %3631 = vmatmul.mubr.f32.gmra.mxu0 %v3420
      %v3632 = vpop.f32.mrf.mxu0
      %v3633 = vadd.f32 0.0, %v3632
      %v3634 = vpop.f32.mrf.mxu0
      %3635 = vmatprep.mubr.f32.mxu0 0.0
      %3636 = vmatmul.mubr.f32.gmra.mxu0 %v3423
      %v3637 = vpop.f32.mrf.mxu0
      %v3638 = vadd.f32 0.0, %v3637
      %v3639 = vpop.f32.mrf.mxu0
      %3640 = vmatprep.mubr.f32.mxu0 0.0
      %3641 = vmatmul.mubr.f32.gmra.mxu0 %v3426
      %v3642 = vpop.f32.mrf.mxu0
      %v3643 = vadd.f32 0.0, %v3642
      %v3644 = vpop.f32.mrf.mxu0
      %3645 = vmatprep.mubr.f32.mxu0 0.0
      %3646 = vmatmul.mubr.f32.gmra.mxu0 %v3429
      %v3647 = vpop.f32.mrf.mxu0
      %v3648 = vadd.f32 0.0, %v3647
      %v3649 = vpop.f32.mrf.mxu0
      %3650 = vmatprep.mubr.f32.mxu0 0.0
      %3651 = vmatmul.mubr.f32.gmra.mxu0 %v3432
      %v3652 = vpop.f32.mrf.mxu0
      %v3653 = vadd.f32 0.0, %v3652
      %v3654 = vpop.f32.mrf.mxu0
      %3655 = vmatprep.mubr.f32.mxu0 0.0
      %3656 = vmatmul.mubr.f32.gmra.mxu0 %v3435
      %v3657 = vpop.f32.mrf.mxu0
      %v3658 = vadd.f32 0.0, %v3657
      %v3659 = vpop.f32.mrf.mxu0
      %3660 = vmatprep.mubr.f32.mxu0 0.0
      %3661 = vmatmul.mubr.f32.gmra.mxu0 %v3438
      %v3662 = vpop.f32.mrf.mxu0
      %v3663 = vadd.f32 0.0, %v3662
      %v3664 = vpop.f32.mrf.mxu0
      %3665 = vmatprep.mubr.f32.mxu0 0.0
      %3666 = vmatmul.mubr.f32.gmra.mxu0 %v3441
      %v3667 = vpop.f32.mrf.mxu0
      %v3668 = vadd.f32 0.0, %v3667
      %v3669 = vpop.f32.mrf.mxu0
      %3670 = vdwg.mxu0
      %v3671 = vld [vmem:[#allocation2] sm:$0xff]
      %v3672 = vld [vmem:[#allocation2 + $0x8] sm:$0xff]
      %v3673 = vld [vmem:[#allocation2 + $0x10] sm:$0xff]
      %v3674 = vld [vmem:[#allocation2 + $0x18] sm:$0xff]
      %v3675 = vld [vmem:[#allocation2 + $0x20] sm:$0xff]
      %v3676 = vld [vmem:[#allocation2 + $0x28] sm:$0xff]
      %v3677 = vld [vmem:[#allocation2 + $0x30] sm:$0xff]
      %v3678 = vld [vmem:[#allocation2 + $0x38] sm:$0xff]
      %v3679 = vld [vmem:[#allocation2 + $0x40] sm:$0xff]
      %v3680 = vld [vmem:[#allocation2 + $0x48] sm:$0xff]
      %v3681 = vld [vmem:[#allocation2 + $0x50] sm:$0xff]
      %v3682 = vld [vmem:[#allocation2 + $0x58] sm:$0xff]
      %v3683 = vld [vmem:[#allocation2 + $0x60] sm:$0xff]
      %v3684 = vld [vmem:[#allocation2 + $0x68] sm:$0xff]
      %v3685 = vld [vmem:[#allocation2 + $0x70] sm:$0xff]
      %v3686 = vld [vmem:[#allocation2 + $0x78] sm:$0xff]
      %v3687 = vld [vmem:[#allocation2 + $0x80] sm:$0xff]
      %v3688 = vld [vmem:[#allocation2 + $0x88] sm:$0xff]
      %v3689 = vld [vmem:[#allocation2 + $0x90] sm:$0xff]
      %v3690 = vld [vmem:[#allocation2 + $0x98] sm:$0xff]
      %v3691 = vld [vmem:[#allocation2 + $0xa0] sm:$0xff]
      %v3692 = vld [vmem:[#allocation2 + $0xa8] sm:$0xff]
      %v3693 = vld [vmem:[#allocation2 + $0xb0] sm:$0xff]
      %v3694 = vld [vmem:[#allocation2 + $0xb8] sm:$0xff]
      %v3695 = vld [vmem:[#allocation2 + $0xc0] sm:$0xff]
      %v3696 = vld [vmem:[#allocation2 + $0xc8] sm:$0xff]
      %v3697 = vld [vmem:[#allocation2 + $0xd0] sm:$0xff]
      %v3698 = vld [vmem:[#allocation2 + $0xd8] sm:$0xff]
      %v3699 = vld [vmem:[#allocation2 + $0xe0] sm:$0xff]
      %v3700 = vld [vmem:[#allocation2 + $0xe8] sm:$0xff]
      %v3701 = vld [vmem:[#allocation2 + $0xf0] sm:$0xff]
      %v3702 = vld [vmem:[#allocation2 + $0xf8] sm:$0xff]
      %v3703 = vadd.f32 %v3671, %v3513
      %v3704 = vadd.f32 %v3672, %v3518
      %v3705 = vadd.f32 %v3673, %v3523
      %v3706 = vadd.f32 %v3674, %v3528
      %v3707 = vadd.f32 %v3675, %v3533
      %v3708 = vadd.f32 %v3676, %v3538
      %v3709 = vadd.f32 %v3677, %v3543
      %v3710 = vadd.f32 %v3678, %v3548
      %v3711 = vadd.f32 %v3679, %v3553
      %v3712 = vadd.f32 %v3680, %v3558
      %v3713 = vadd.f32 %v3681, %v3563
      %v3714 = vadd.f32 %v3682, %v3568
      %v3715 = vadd.f32 %v3683, %v3573
      %v3716 = vadd.f32 %v3684, %v3578
      %v3717 = vadd.f32 %v3685, %v3583
      %v3718 = vadd.f32 %v3686, %v3588
      %v3719 = vadd.f32 %v3687, %v3593
      %v3720 = vadd.f32 %v3688, %v3598
      %v3721 = vadd.f32 %v3689, %v3603
      %v3722 = vadd.f32 %v3690, %v3608
      %v3723 = vadd.f32 %v3691, %v3613
      %v3724 = vadd.f32 %v3692, %v3618
      %v3725 = vadd.f32 %v3693, %v3623
      %v3726 = vadd.f32 %v3694, %v3628
      %v3727 = vadd.f32 %v3695, %v3633
      %v3728 = vadd.f32 %v3696, %v3638
      %v3729 = vadd.f32 %v3697, %v3643
      %v3730 = vadd.f32 %v3698, %v3648
      %v3731 = vadd.f32 %v3699, %v3653
      %v3732 = vadd.f32 %v3700, %v3658
      %v3733 = vadd.f32 %v3701, %v3663
      %v3734 = vadd.f32 %v3702, %v3668
      %3735 = vst [vmem:[#allocation2] sm:$0xff] %v3703
      %3736 = vst [vmem:[#allocation2 + $0x8] sm:$0xff] %v3704
      %3737 = vst [vmem:[#allocation2 + $0x10] sm:$0xff] %v3705
      %3738 = vst [vmem:[#allocation2 + $0x18] sm:$0xff] %v3706
      %3739 = vst [vmem:[#allocation2 + $0x20] sm:$0xff] %v3707
      %3740 = vst [vmem:[#allocation2 + $0x28] sm:$0xff] %v3708
      %3741 = vst [vmem:[#allocation2 + $0x30] sm:$0xff] %v3709
      %3742 = vst [vmem:[#allocation2 + $0x38] sm:$0xff] %v3710
      %3743 = vst [vmem:[#allocation2 + $0x40] sm:$0xff] %v3711
      %3744 = vst [vmem:[#allocation2 + $0x48] sm:$0xff] %v3712
      %3745 = vst [vmem:[#allocation2 + $0x50] sm:$0xff] %v3713
      %3746 = vst [vmem:[#allocation2 + $0x58] sm:$0xff] %v3714
      %3747 = vst [vmem:[#allocation2 + $0x60] sm:$0xff] %v3715
      %3748 = vst [vmem:[#allocation2 + $0x68] sm:$0xff] %v3716
      %3749 = vst [vmem:[#allocation2 + $0x70] sm:$0xff] %v3717
      %3750 = vst [vmem:[#allocation2 + $0x78] sm:$0xff] %v3718
      %3751 = vst [vmem:[#allocation2 + $0x80] sm:$0xff] %v3719
      %3752 = vst [vmem:[#allocation2 + $0x88] sm:$0xff] %v3720
      %3753 = vst [vmem:[#allocation2 + $0x90] sm:$0xff] %v3721
      %3754 = vst [vmem:[#allocation2 + $0x98] sm:$0xff] %v3722
      %3755 = vst [vmem:[#allocation2 + $0xa0] sm:$0xff] %v3723
      %3756 = vst [vmem:[#allocation2 + $0xa8] sm:$0xff] %v3724
      %3757 = vst [vmem:[#allocation2 + $0xb0] sm:$0xff] %v3725
      %3758 = vst [vmem:[#allocation2 + $0xb8] sm:$0xff] %v3726
      %3759 = vst [vmem:[#allocation2 + $0xc0] sm:$0xff] %v3727
      %3760 = vst [vmem:[#allocation2 + $0xc8] sm:$0xff] %v3728
      %3761 = vst [vmem:[#allocation2 + $0xd0] sm:$0xff] %v3729
      %3762 = vst [vmem:[#allocation2 + $0xd8] sm:$0xff] %v3730
      %3763 = vst [vmem:[#allocation2 + $0xe0] sm:$0xff] %v3731
      %3764 = vst [vmem:[#allocation2 + $0xe8] sm:$0xff] %v3732
      %3765 = vst [vmem:[#allocation2 + $0xf0] sm:$0xff] %v3733
      %3766 = vst [vmem:[#allocation2 + $0xf8] sm:$0xff] %v3734
      %v3767 = vld [vmem:[%s2858 + $0x2] sm:$0xff]
      %v3768 = vld [vmem:[%s2858 + $0xa] sm:$0xff]
      %v3769 = vld [vmem:[%s2858 + $0x1a] sm:$0xff]
      %v3770 = vld [vmem:[%s2858 + $0x22] sm:$0xff]
      %v3771 = vld [vmem:[%s2858 + $0x32] sm:$0xff]
      %v3772 = vld [vmem:[%s2858 + $0x3a] sm:$0xff]
      %v3773 = vld [vmem:[%s2858 + $0x4a] sm:$0xff]
      %v3774 = vld [vmem:[%s2858 + $0x52] sm:$0xff]
      %v3775 = vld [vmem:[%s2858 + $0x62] sm:$0xff]
      %v3776 = vld [vmem:[%s2858 + $0x6a] sm:$0xff]
      %v3777 = vld [vmem:[%s2858 + $0x7a] sm:$0xff]
      %v3778 = vld [vmem:[%s2858 + $0x82] sm:$0xff]
      %v3779 = vld [vmem:[%s2858 + $0x92] sm:$0xff]
      %v3780 = vld [vmem:[%s2858 + $0x9a] sm:$0xff]
      %v3781 = vld [vmem:[%s2858 + $0xaa] sm:$0xff]
      %v3782 = vld [vmem:[%s2858 + $0xb2] sm:$0xff]
      %v3783 = vld [vmem:[%s2858 + $0xc2] sm:$0xff]
      %v3784 = vld [vmem:[%s2858 + $0xca] sm:$0xff]
      %v3785 = vld [vmem:[%s2858 + $0xda] sm:$0xff]
      %v3786 = vld [vmem:[%s2858 + $0xe2] sm:$0xff]
      %v3787 = vld [vmem:[%s2858 + $0xf2] sm:$0xff]
      %v3788 = vld [vmem:[%s2858 + $0xfa] sm:$0xff]
      %v3789 = vld [vmem:[%s2858 + $0x10a] sm:$0xff]
      %v3790 = vld [vmem:[%s2858 + $0x112] sm:$0xff]
      %v3791 = vld [vmem:[%s2858 + $0x122] sm:$0xff]
      %v3792 = vld [vmem:[%s2858 + $0x12a] sm:$0xff]
      %v3793 = vld [vmem:[%s2858 + $0x13a] sm:$0xff]
      %v3794 = vld [vmem:[%s2858 + $0x142] sm:$0xff]
      %v3795 = vld [vmem:[%s2858 + $0x152] sm:$0xff]
      %v3796 = vld [vmem:[%s2858 + $0x15a] sm:$0xff]
      %v3797 = vld [vmem:[%s2858 + $0x16a] sm:$0xff]
      %v3798 = vld [vmem:[%s2858 + $0x172] sm:$0xff]
      %s3799 = scalar_lea.vmem %s1, 32
      %v3800 = vld [vmem:[%s3799] sm:$0xf]
      %v3802 = vsel %vm225, %v3767, 0
      %v3805 = vsel %vm225, %v3768, 0
      %v3808 = vsel %vm225, %v3769, 0
      %v3811 = vsel %vm225, %v3770, 0
      %v3814 = vsel %vm225, %v3771, 0
      %v3817 = vsel %vm225, %v3772, 0
      %v3820 = vsel %vm225, %v3773, 0
      %v3823 = vsel %vm225, %v3774, 0
      %v3826 = vsel %vm225, %v3775, 0
      %v3829 = vsel %vm225, %v3776, 0
      %v3832 = vsel %vm225, %v3777, 0
      %v3835 = vsel %vm225, %v3778, 0
      %v3838 = vsel %vm225, %v3779, 0
      %v3841 = vsel %vm225, %v3780, 0
      %v3844 = vsel %vm225, %v3781, 0
      %v3847 = vsel %vm225, %v3782, 0
      %v3850 = vsel %vm225, %v3783, 0
      %v3853 = vsel %vm225, %v3784, 0
      %v3856 = vsel %vm225, %v3785, 0
      %v3859 = vsel %vm225, %v3786, 0
      %v3862 = vsel %vm225, %v3787, 0
      %v3865 = vsel %vm225, %v3788, 0
      %v3868 = vsel %vm225, %v3789, 0
      %v3871 = vsel %vm225, %v3790, 0
      %v3874 = vsel %vm225, %v3791, 0
      %v3877 = vsel %vm225, %v3792, 0
      %v3880 = vsel %vm225, %v3793, 0
      %v3883 = vsel %vm225, %v3794, 0
      %v3886 = vsel %vm225, %v3795, 0
      %v3889 = vsel %vm225, %v3796, 0
      %v3892 = vsel %vm225, %v3797, 0
      %v3895 = vsel %vm225, %v3798, 0
      %v3898 = vsel %vm322, %v3800, 0
      %3900 = vmatprep.subr.mxu0 0.0
      %3901 = vmatpush1.msra.mxu0 0.0
      %3902 = vmatprep.subr.mxu0 0.0
      %3903 = vmatpush1.msra.mxu0 0.0
      %3904 = vmatprep.subr.mxu0 0.0
      %3905 = vmatpush1.msra.mxu0 0.0
      %3906 = vmatprep.subr.mxu0 0.0
      %3907 = vmatpush1.msra.mxu0 0.0
      %3908 = vmatprep.subr.mxu0 0.0
      %3909 = vmatpush1.msra.mxu0 0.0
      %3910 = vmatprep.subr.mxu0 0.0
      %3911 = vmatpush1.msra.mxu0 0.0
      %3912 = vmatprep.subr.mxu0 0.0
      %3913 = vmatpush1.msra.mxu0 0.0
      %3914 = vmatprep.subr.mxu0 0.0
      %3915 = vmatpush1.msra.mxu0 0.0
      %3916 = vmatprep.subr.mxu0 0.0
      %3917 = vmatpush1.msra.mxu0 0.0
      %3918 = vmatprep.subr.mxu0 0.0
      %3919 = vmatpush1.msra.mxu0 0.0
      %3920 = vmatprep.subr.mxu0 0.0
      %3921 = vmatpush1.msra.mxu0 0.0
      %3922 = vmatprep.subr.mxu0 0.0
      %3923 = vmatpush1.msra.mxu0 0.0
      %3924 = vmatprep.subr.mxu0 0.0
      %3925 = vmatpush1.msra.mxu0 0.0
      %3926 = vmatprep.subr.mxu0 0.0
      %3927 = vmatpush1.msra.mxu0 0.0
      %3928 = vmatprep.subr.mxu0 0.0
      %3929 = vmatpush1.msra.mxu0 0.0
      %3930 = vmatprep.subr.mxu0 0.0
      %3931 = vmatpush1.msra.mxu0 %v3898
      %3932 = vmatprep.subr.mxu0 0.0
      %3933 = vmatpush2.msra.mxu0 0.0
      %3934 = vmatprep.subr.mxu0 0.0
      %3935 = vmatpush2.msra.mxu0 0.0
      %3936 = vmatprep.subr.mxu0 0.0
      %3937 = vmatpush2.msra.mxu0 0.0
      %3938 = vmatprep.subr.mxu0 0.0
      %3939 = vmatpush2.msra.mxu0 0.0
      %3940 = vmatprep.subr.mxu0 0.0
      %3941 = vmatpush2.msra.mxu0 0.0
      %3942 = vmatprep.subr.mxu0 0.0
      %3943 = vmatpush2.msra.mxu0 0.0
      %3944 = vmatprep.subr.mxu0 0.0
      %3945 = vmatpush2.msra.mxu0 0.0
      %3946 = vmatprep.subr.mxu0 0.0
      %3947 = vmatpush2.msra.mxu0 0.0
      %3948 = vmatprep.subr.mxu0 0.0
      %3949 = vmatpush2.msra.mxu0 0.0
      %3950 = vmatprep.subr.mxu0 0.0
      %3951 = vmatpush2.msra.mxu0 0.0
      %3952 = vmatprep.subr.mxu0 0.0
      %3953 = vmatpush2.msra.mxu0 0.0
      %3954 = vmatprep.subr.mxu0 0.0
      %3955 = vmatpush2.msra.mxu0 0.0
      %3956 = vmatprep.subr.mxu0 0.0
      %3957 = vmatpush2.msra.mxu0 0.0
      %3958 = vmatprep.subr.mxu0 0.0
      %3959 = vmatpush2.msra.mxu0 0.0
      %3960 = vmatprep.subr.mxu0 0.0
      %3961 = vmatpush2.msra.mxu0 0.0
      %3962 = vmatprep.subr.mxu0 0.0
      %3963 = vmatpush2.msra.mxu0 0.0
      %3964 = vmatprep.mubr.f32.mxu0 0.0
      %3965 = vmatmul.mubr.f32.gmra.mxu0 %v3802
      %v3966 = vpop.f32.mrf.mxu0
      %v3967 = vadd.f32 0.0, %v3966
      %v3968 = vpop.f32.mrf.mxu0
      %3969 = vmatprep.mubr.f32.mxu0 0.0
      %3970 = vmatmul.mubr.f32.gmra.mxu0 %v3805
      %v3971 = vpop.f32.mrf.mxu0
      %v3972 = vadd.f32 0.0, %v3971
      %v3973 = vpop.f32.mrf.mxu0
      %3974 = vmatprep.mubr.f32.mxu0 0.0
      %3975 = vmatmul.mubr.f32.gmra.mxu0 %v3808
      %v3976 = vpop.f32.mrf.mxu0
      %v3977 = vadd.f32 0.0, %v3976
      %v3978 = vpop.f32.mrf.mxu0
      %3979 = vmatprep.mubr.f32.mxu0 0.0
      %3980 = vmatmul.mubr.f32.gmra.mxu0 %v3811
      %v3981 = vpop.f32.mrf.mxu0
      %v3982 = vadd.f32 0.0, %v3981
      %v3983 = vpop.f32.mrf.mxu0
      %3984 = vmatprep.mubr.f32.mxu0 0.0
      %3985 = vmatmul.mubr.f32.gmra.mxu0 %v3814
      %v3986 = vpop.f32.mrf.mxu0
      %v3987 = vadd.f32 0.0, %v3986
      %v3988 = vpop.f32.mrf.mxu0
      %3989 = vmatprep.mubr.f32.mxu0 0.0
      %3990 = vmatmul.mubr.f32.gmra.mxu0 %v3817
      %v3991 = vpop.f32.mrf.mxu0
      %v3992 = vadd.f32 0.0, %v3991
      %v3993 = vpop.f32.mrf.mxu0
      %3994 = vmatprep.mubr.f32.mxu0 0.0
      %3995 = vmatmul.mubr.f32.gmra.mxu0 %v3820
      %v3996 = vpop.f32.mrf.mxu0
      %v3997 = vadd.f32 0.0, %v3996
      %v3998 = vpop.f32.mrf.mxu0
      %3999 = vmatprep.mubr.f32.mxu0 0.0
      %4000 = vmatmul.mubr.f32.gmra.mxu0 %v3823
      %v4001 = vpop.f32.mrf.mxu0
      %v4002 = vadd.f32 0.0, %v4001
      %v4003 = vpop.f32.mrf.mxu0
      %4004 = vmatprep.mubr.f32.mxu0 0.0
      %4005 = vmatmul.mubr.f32.gmra.mxu0 %v3826
      %v4006 = vpop.f32.mrf.mxu0
      %v4007 = vadd.f32 0.0, %v4006
      %v4008 = vpop.f32.mrf.mxu0
      %4009 = vmatprep.mubr.f32.mxu0 0.0
      %4010 = vmatmul.mubr.f32.gmra.mxu0 %v3829
      %v4011 = vpop.f32.mrf.mxu0
      %v4012 = vadd.f32 0.0, %v4011
      %v4013 = vpop.f32.mrf.mxu0
      %4014 = vmatprep.mubr.f32.mxu0 0.0
      %4015 = vmatmul.mubr.f32.gmra.mxu0 %v3832
      %v4016 = vpop.f32.mrf.mxu0
      %v4017 = vadd.f32 0.0, %v4016
      %v4018 = vpop.f32.mrf.mxu0
      %4019 = vmatprep.mubr.f32.mxu0 0.0
      %4020 = vmatmul.mubr.f32.gmra.mxu0 %v3835
      %v4021 = vpop.f32.mrf.mxu0
      %v4022 = vadd.f32 0.0, %v4021
      %v4023 = vpop.f32.mrf.mxu0
      %4024 = vmatprep.mubr.f32.mxu0 0.0
      %4025 = vmatmul.mubr.f32.gmra.mxu0 %v3838
      %v4026 = vpop.f32.mrf.mxu0
      %v4027 = vadd.f32 0.0, %v4026
      %v4028 = vpop.f32.mrf.mxu0
      %4029 = vmatprep.mubr.f32.mxu0 0.0
      %4030 = vmatmul.mubr.f32.gmra.mxu0 %v3841
      %v4031 = vpop.f32.mrf.mxu0
      %v4032 = vadd.f32 0.0, %v4031
      %v4033 = vpop.f32.mrf.mxu0
      %4034 = vmatprep.mubr.f32.mxu0 0.0
      %4035 = vmatmul.mubr.f32.gmra.mxu0 %v3844
      %v4036 = vpop.f32.mrf.mxu0
      %v4037 = vadd.f32 0.0, %v4036
      %v4038 = vpop.f32.mrf.mxu0
      %4039 = vmatprep.mubr.f32.mxu0 0.0
      %4040 = vmatmul.mubr.f32.gmra.mxu0 %v3847
      %v4041 = vpop.f32.mrf.mxu0
      %v4042 = vadd.f32 0.0, %v4041
      %v4043 = vpop.f32.mrf.mxu0
      %4044 = vmatprep.mubr.f32.mxu0 0.0
      %4045 = vmatmul.mubr.f32.gmra.mxu0 %v3850
      %v4046 = vpop.f32.mrf.mxu0
      %v4047 = vadd.f32 0.0, %v4046
      %v4048 = vpop.f32.mrf.mxu0
      %4049 = vmatprep.mubr.f32.mxu0 0.0
      %4050 = vmatmul.mubr.f32.gmra.mxu0 %v3853
      %v4051 = vpop.f32.mrf.mxu0
      %v4052 = vadd.f32 0.0, %v4051
      %v4053 = vpop.f32.mrf.mxu0
      %4054 = vmatprep.mubr.f32.mxu0 0.0
      %4055 = vmatmul.mubr.f32.gmra.mxu0 %v3856
      %v4056 = vpop.f32.mrf.mxu0
      %v4057 = vadd.f32 0.0, %v4056
      %v4058 = vpop.f32.mrf.mxu0
      %4059 = vmatprep.mubr.f32.mxu0 0.0
      %4060 = vmatmul.mubr.f32.gmra.mxu0 %v3859
      %v4061 = vpop.f32.mrf.mxu0
      %v4062 = vadd.f32 0.0, %v4061
      %v4063 = vpop.f32.mrf.mxu0
      %4064 = vmatprep.mubr.f32.mxu0 0.0
      %4065 = vmatmul.mubr.f32.gmra.mxu0 %v3862
      %v4066 = vpop.f32.mrf.mxu0
      %v4067 = vadd.f32 0.0, %v4066
      %v4068 = vpop.f32.mrf.mxu0
      %4069 = vmatprep.mubr.f32.mxu0 0.0
      %4070 = vmatmul.mubr.f32.gmra.mxu0 %v3865
      %v4071 = vpop.f32.mrf.mxu0
      %v4072 = vadd.f32 0.0, %v4071
      %v4073 = vpop.f32.mrf.mxu0
      %4074 = vmatprep.mubr.f32.mxu0 0.0
      %4075 = vmatmul.mubr.f32.gmra.mxu0 %v3868
      %v4076 = vpop.f32.mrf.mxu0
      %v4077 = vadd.f32 0.0, %v4076
      %v4078 = vpop.f32.mrf.mxu0
      %4079 = vmatprep.mubr.f32.mxu0 0.0
      %4080 = vmatmul.mubr.f32.gmra.mxu0 %v3871
      %v4081 = vpop.f32.mrf.mxu0
      %v4082 = vadd.f32 0.0, %v4081
      %v4083 = vpop.f32.mrf.mxu0
      %4084 = vmatprep.mubr.f32.mxu0 0.0
      %4085 = vmatmul.mubr.f32.gmra.mxu0 %v3874
      %v4086 = vpop.f32.mrf.mxu0
      %v4087 = vadd.f32 0.0, %v4086
      %v4088 = vpop.f32.mrf.mxu0
      %4089 = vmatprep.mubr.f32.mxu0 0.0
      %4090 = vmatmul.mubr.f32.gmra.mxu0 %v3877
      %v4091 = vpop.f32.mrf.mxu0
      %v4092 = vadd.f32 0.0, %v4091
      %v4093 = vpop.f32.mrf.mxu0
      %4094 = vmatprep.mubr.f32.mxu0 0.0
      %4095 = vmatmul.mubr.f32.gmra.mxu0 %v3880
      %v4096 = vpop.f32.mrf.mxu0
      %v4097 = vadd.f32 0.0, %v4096
      %v4098 = vpop.f32.mrf.mxu0
      %4099 = vmatprep.mubr.f32.mxu0 0.0
      %4100 = vmatmul.mubr.f32.gmra.mxu0 %v3883
      %v4101 = vpop.f32.mrf.mxu0
      %v4102 = vadd.f32 0.0, %v4101
      %v4103 = vpop.f32.mrf.mxu0
      %4104 = vmatprep.mubr.f32.mxu0 0.0
      %4105 = vmatmul.mubr.f32.gmra.mxu0 %v3886
      %v4106 = vpop.f32.mrf.mxu0
      %v4107 = vadd.f32 0.0, %v4106
      %v4108 = vpop.f32.mrf.mxu0
      %4109 = vmatprep.mubr.f32.mxu0 0.0
      %4110 = vmatmul.mubr.f32.gmra.mxu0 %v3889
      %v4111 = vpop.f32.mrf.mxu0
      %v4112 = vadd.f32 0.0, %v4111
      %v4113 = vpop.f32.mrf.mxu0
      %4114 = vmatprep.mubr.f32.mxu0 0.0
      %4115 = vmatmul.mubr.f32.gmra.mxu0 %v3892
      %v4116 = vpop.f32.mrf.mxu0
      %v4117 = vadd.f32 0.0, %v4116
      %v4118 = vpop.f32.mrf.mxu0
      %4119 = vmatprep.mubr.f32.mxu0 0.0
      %4120 = vmatmul.mubr.f32.gmra.mxu0 %v3895
      %v4121 = vpop.f32.mrf.mxu0
      %v4122 = vadd.f32 0.0, %v4121
      %v4123 = vpop.f32.mrf.mxu0
      %4124 = vdwg.mxu0
      %v4125 = vld [vmem:[#allocation2] sm:$0xff]
      %v4126 = vld [vmem:[#allocation2 + $0x8] sm:$0xff]
      %v4127 = vld [vmem:[#allocation2 + $0x10] sm:$0xff]
      %v4128 = vld [vmem:[#allocation2 + $0x18] sm:$0xff]
      %v4129 = vld [vmem:[#allocation2 + $0x20] sm:$0xff]
      %v4130 = vld [vmem:[#allocation2 + $0x28] sm:$0xff]
      %v4131 = vld [vmem:[#allocation2 + $0x30] sm:$0xff]
      %v4132 = vld [vmem:[#allocation2 + $0x38] sm:$0xff]
      %v4133 = vld [vmem:[#allocation2 + $0x40] sm:$0xff]
      %v4134 = vld [vmem:[#allocation2 + $0x48] sm:$0xff]
      %v4135 = vld [vmem:[#allocation2 + $0x50] sm:$0xff]
      %v4136 = vld [vmem:[#allocation2 + $0x58] sm:$0xff]
      %v4137 = vld [vmem:[#allocation2 + $0x60] sm:$0xff]
      %v4138 = vld [vmem:[#allocation2 + $0x68] sm:$0xff]
      %v4139 = vld [vmem:[#allocation2 + $0x70] sm:$0xff]
      %v4140 = vld [vmem:[#allocation2 + $0x78] sm:$0xff]
      %v4141 = vld [vmem:[#allocation2 + $0x80] sm:$0xff]
      %v4142 = vld [vmem:[#allocation2 + $0x88] sm:$0xff]
      %v4143 = vld [vmem:[#allocation2 + $0x90] sm:$0xff]
      %v4144 = vld [vmem:[#allocation2 + $0x98] sm:$0xff]
      %v4145 = vld [vmem:[#allocation2 + $0xa0] sm:$0xff]
      %v4146 = vld [vmem:[#allocation2 + $0xa8] sm:$0xff]
      %v4147 = vld [vmem:[#allocation2 + $0xb0] sm:$0xff]
      %v4148 = vld [vmem:[#allocation2 + $0xb8] sm:$0xff]
      %v4149 = vld [vmem:[#allocation2 + $0xc0] sm:$0xff]
      %v4150 = vld [vmem:[#allocation2 + $0xc8] sm:$0xff]
      %v4151 = vld [vmem:[#allocation2 + $0xd0] sm:$0xff]
      %v4152 = vld [vmem:[#allocation2 + $0xd8] sm:$0xff]
      %v4153 = vld [vmem:[#allocation2 + $0xe0] sm:$0xff]
      %v4154 = vld [vmem:[#allocation2 + $0xe8] sm:$0xff]
      %v4155 = vld [vmem:[#allocation2 + $0xf0] sm:$0xff]
      %v4156 = vld [vmem:[#allocation2 + $0xf8] sm:$0xff]
      %v4157 = vadd.f32 %v4125, %v3967
      %v4158 = vadd.f32 %v4126, %v3972
      %v4159 = vadd.f32 %v4127, %v3977
      %v4160 = vadd.f32 %v4128, %v3982
      %v4161 = vadd.f32 %v4129, %v3987
      %v4162 = vadd.f32 %v4130, %v3992
      %v4163 = vadd.f32 %v4131, %v3997
      %v4164 = vadd.f32 %v4132, %v4002
      %v4165 = vadd.f32 %v4133, %v4007
      %v4166 = vadd.f32 %v4134, %v4012
      %v4167 = vadd.f32 %v4135, %v4017
      %v4168 = vadd.f32 %v4136, %v4022
      %v4169 = vadd.f32 %v4137, %v4027
      %v4170 = vadd.f32 %v4138, %v4032
      %v4171 = vadd.f32 %v4139, %v4037
      %v4172 = vadd.f32 %v4140, %v4042
      %v4173 = vadd.f32 %v4141, %v4047
      %v4174 = vadd.f32 %v4142, %v4052
      %v4175 = vadd.f32 %v4143, %v4057
      %v4176 = vadd.f32 %v4144, %v4062
      %v4177 = vadd.f32 %v4145, %v4067
      %v4178 = vadd.f32 %v4146, %v4072
      %v4179 = vadd.f32 %v4147, %v4077
      %v4180 = vadd.f32 %v4148, %v4082
      %v4181 = vadd.f32 %v4149, %v4087
      %v4182 = vadd.f32 %v4150, %v4092
      %v4183 = vadd.f32 %v4151, %v4097
      %v4184 = vadd.f32 %v4152, %v4102
      %v4185 = vadd.f32 %v4153, %v4107
      %v4186 = vadd.f32 %v4154, %v4112
      %v4187 = vadd.f32 %v4155, %v4117
      %v4188 = vadd.f32 %v4156, %v4122
      %4189 = vst [vmem:[#allocation2] sm:$0xff] %v4157
      %4190 = vst [vmem:[#allocation2 + $0x8] sm:$0xff] %v4158
      %4191 = vst [vmem:[#allocation2 + $0x10] sm:$0xff] %v4159
      %4192 = vst [vmem:[#allocation2 + $0x18] sm:$0xff] %v4160
      %4193 = vst [vmem:[#allocation2 + $0x20] sm:$0xff] %v4161
      %4194 = vst [vmem:[#allocation2 + $0x28] sm:$0xff] %v4162
      %4195 = vst [vmem:[#allocation2 + $0x30] sm:$0xff] %v4163
      %4196 = vst [vmem:[#allocation2 + $0x38] sm:$0xff] %v4164
      %4197 = vst [vmem:[#allocation2 + $0x40] sm:$0xff] %v4165
      %4198 = vst [vmem:[#allocation2 + $0x48] sm:$0xff] %v4166
      %4199 = vst [vmem:[#allocation2 + $0x50] sm:$0xff] %v4167
      %4200 = vst [vmem:[#allocation2 + $0x58] sm:$0xff] %v4168
      %4201 = vst [vmem:[#allocation2 + $0x60] sm:$0xff] %v4169
      %4202 = vst [vmem:[#allocation2 + $0x68] sm:$0xff] %v4170
      %4203 = vst [vmem:[#allocation2 + $0x70] sm:$0xff] %v4171
      %4204 = vst [vmem:[#allocation2 + $0x78] sm:$0xff] %v4172
      %4205 = vst [vmem:[#allocation2 + $0x80] sm:$0xff] %v4173
      %4206 = vst [vmem:[#allocation2 + $0x88] sm:$0xff] %v4174
      %4207 = vst [vmem:[#allocation2 + $0x90] sm:$0xff] %v4175
      %4208 = vst [vmem:[#allocation2 + $0x98] sm:$0xff] %v4176
      %4209 = vst [vmem:[#allocation2 + $0xa0] sm:$0xff] %v4177
      %4210 = vst [vmem:[#allocation2 + $0xa8] sm:$0xff] %v4178
      %4211 = vst [vmem:[#allocation2 + $0xb0] sm:$0xff] %v4179
      %4212 = vst [vmem:[#allocation2 + $0xb8] sm:$0xff] %v4180
      %4213 = vst [vmem:[#allocation2 + $0xc0] sm:$0xff] %v4181
      %4214 = vst [vmem:[#allocation2 + $0xc8] sm:$0xff] %v4182
      %4215 = vst [vmem:[#allocation2 + $0xd0] sm:$0xff] %v4183
      %4216 = vst [vmem:[#allocation2 + $0xd8] sm:$0xff] %v4184
      %4217 = vst [vmem:[#allocation2 + $0xe0] sm:$0xff] %v4185
      %4218 = vst [vmem:[#allocation2 + $0xe8] sm:$0xff] %v4186
      %4219 = vst [vmem:[#allocation2 + $0xf0] sm:$0xff] %v4187
      %4220 = vst [vmem:[#allocation2 + $0xf8] sm:$0xff] %v4188
      %v4221 = vld [vmem:[#allocation2] sm:$0xff]
      %v4222 = vld [vmem:[#allocation2 + $0x8] sm:$0xff]
      %v4223 = vld [vmem:[#allocation2 + $0x10] sm:$0xff]
      %v4224 = vld [vmem:[#allocation2 + $0x18] sm:$0xff]
      %v4225 = vld [vmem:[#allocation2 + $0x20] sm:$0xff]
      %v4226 = vld [vmem:[#allocation2 + $0x28] sm:$0xff]
      %v4227 = vld [vmem:[#allocation2 + $0x30] sm:$0xff]
      %v4228 = vld [vmem:[#allocation2 + $0x38] sm:$0xff]
      %v4229 = vld [vmem:[#allocation2 + $0x40] sm:$0xff]
      %v4230 = vld [vmem:[#allocation2 + $0x48] sm:$0xff]
      %v4231 = vld [vmem:[#allocation2 + $0x50] sm:$0xff]
      %v4232 = vld [vmem:[#allocation2 + $0x58] sm:$0xff]
      %v4233 = vld [vmem:[#allocation2 + $0x60] sm:$0xff]
      %v4234 = vld [vmem:[#allocation2 + $0x68] sm:$0xff]
      %v4235 = vld [vmem:[#allocation2 + $0x70] sm:$0xff]
      %v4236 = vld [vmem:[#allocation2 + $0x78] sm:$0xff]
      %v4237 = vld [vmem:[#allocation2 + $0x80] sm:$0xff]
      %v4238 = vld [vmem:[#allocation2 + $0x88] sm:$0xff]
      %v4239 = vld [vmem:[#allocation2 + $0x90] sm:$0xff]
      %v4240 = vld [vmem:[#allocation2 + $0x98] sm:$0xff]
      %v4241 = vld [vmem:[#allocation2 + $0xa0] sm:$0xff]
      %v4242 = vld [vmem:[#allocation2 + $0xa8] sm:$0xff]
      %v4243 = vld [vmem:[#allocation2 + $0xb0] sm:$0xff]
      %v4244 = vld [vmem:[#allocation2 + $0xb8] sm:$0xff]
      %v4245 = vld [vmem:[#allocation2 + $0xc0] sm:$0xff]
      %v4246 = vld [vmem:[#allocation2 + $0xc8] sm:$0xff]
      %v4247 = vld [vmem:[#allocation2 + $0xd0] sm:$0xff]
      %v4248 = vld [vmem:[#allocation2 + $0xd8] sm:$0xff]
      %v4249 = vld [vmem:[#allocation2 + $0xe0] sm:$0xff]
      %v4250 = vld [vmem:[#allocation2 + $0xe8] sm:$0xff]
      %v4251 = vld [vmem:[#allocation2 + $0xf0] sm:$0xff]
      %v4252 = vld [vmem:[#allocation2 + $0xf8] sm:$0xff]
      %v4253 = vld [vmem:[%s2] sm:$0x1]
      %v4255 = vlaneseq
      %v4256 = vshrl.u32 %v4255, 7
      %v4257 = vsub.s32 0, %v4256
      %v4258 = vrot.slane %v4253, %v4257
      %v4260 = vadd.f32 %v4221, %v4258
      %v4261 = vadd.f32 %v4222, %v4258
      %v4262 = vadd.f32 %v4223, %v4258
      %v4263 = vadd.f32 %v4224, %v4258
      %v4264 = vadd.f32 %v4225, %v4258
      %v4265 = vadd.f32 %v4226, %v4258
      %v4266 = vadd.f32 %v4227, %v4258
      %v4267 = vadd.f32 %v4228, %v4258
      %v4268 = vadd.f32 %v4229, %v4258
      %v4269 = vadd.f32 %v4230, %v4258
      %v4270 = vadd.f32 %v4231, %v4258
      %v4271 = vadd.f32 %v4232, %v4258
      %v4272 = vadd.f32 %v4233, %v4258
      %v4273 = vadd.f32 %v4234, %v4258
      %v4274 = vadd.f32 %v4235, %v4258
      %v4275 = vadd.f32 %v4236, %v4258
      %v4276 = vadd.f32 %v4237, %v4258
      %v4277 = vadd.f32 %v4238, %v4258
      %v4278 = vadd.f32 %v4239, %v4258
      %v4279 = vadd.f32 %v4240, %v4258
      %v4280 = vadd.f32 %v4241, %v4258
      %v4281 = vadd.f32 %v4242, %v4258
      %v4282 = vadd.f32 %v4243, %v4258
      %v4283 = vadd.f32 %v4244, %v4258
      %v4284 = vadd.f32 %v4245, %v4258
      %v4285 = vadd.f32 %v4246, %v4258
      %v4286 = vadd.f32 %v4247, %v4258
      %v4287 = vadd.f32 %v4248, %v4258
      %v4288 = vadd.f32 %v4249, %v4258
      %v4289 = vadd.f32 %v4250, %v4258
      %v4290 = vadd.f32 %v4251, %v4258
      %v4291 = vadd.f32 %v4252, %v4258
      %4292 = vst [vmem:[%s186] sm:$0xff] %v4260
      %4293 = vst [vmem:[%s186 + $0x8] sm:$0xff] %v4261
      %4294 = vst [vmem:[%s186 + $0x10] sm:$0xff] %v4262
      %4295 = vst [vmem:[%s186 + $0x18] sm:$0xff] %v4263
      %4296 = vst [vmem:[%s186 + $0x20] sm:$0xff] %v4264
      %4297 = vst [vmem:[%s186 + $0x28] sm:$0xff] %v4265
      %4298 = vst [vmem:[%s186 + $0x30] sm:$0xff] %v4266
      %4299 = vst [vmem:[%s186 + $0x38] sm:$0xff] %v4267
      %4300 = vst [vmem:[%s186 + $0x40] sm:$0xff] %v4268
      %4301 = vst [vmem:[%s186 + $0x48] sm:$0xff] %v4269
      %4302 = vst [vmem:[%s186 + $0x50] sm:$0xff] %v4270
      %4303 = vst [vmem:[%s186 + $0x58] sm:$0xff] %v4271
      %4304 = vst [vmem:[%s186 + $0x60] sm:$0xff] %v4272
      %4305 = vst [vmem:[%s186 + $0x68] sm:$0xff] %v4273
      %4306 = vst [vmem:[%s186 + $0x70] sm:$0xff] %v4274
      %4307 = vst [vmem:[%s186 + $0x78] sm:$0xff] %v4275
      %4308 = vst [vmem:[%s186 + $0x80] sm:$0xff] %v4276
      %4309 = vst [vmem:[%s186 + $0x88] sm:$0xff] %v4277
      %4310 = vst [vmem:[%s186 + $0x90] sm:$0xff] %v4278
      %4311 = vst [vmem:[%s186 + $0x98] sm:$0xff] %v4279
      %4312 = vst [vmem:[%s186 + $0xa0] sm:$0xff] %v4280
      %4313 = vst [vmem:[%s186 + $0xa8] sm:$0xff] %v4281
      %4314 = vst [vmem:[%s186 + $0xb0] sm:$0xff] %v4282
      %4315 = vst [vmem:[%s186 + $0xb8] sm:$0xff] %v4283
      %4316 = vst [vmem:[%s186 + $0xc0] sm:$0xff] %v4284
      %4317 = vst [vmem:[%s186 + $0xc8] sm:$0xff] %v4285
      %4318 = vst [vmem:[%s186 + $0xd0] sm:$0xff] %v4286
      %4319 = vst [vmem:[%s186 + $0xd8] sm:$0xff] %v4287
      %4320 = vst [vmem:[%s186 + $0xe0] sm:$0xff] %v4288
      %4321 = vst [vmem:[%s186 + $0xe8] sm:$0xff] %v4289
      %4322 = vst [vmem:[%s186 + $0xf0] sm:$0xff] %v4290
      %4323 = vst [vmem:[%s186 + $0xf8] sm:$0xff] %v4291
      %s4324 = sadd.s32 %s18, %s19
      %s4325 = smul.u32 32, %s4324
      %p4326 = scmp.lt.s32.totalorder %s4325, 63
      %s4327 = scalar_select %p4326, %s4325, 63
      %s4328 = smul.addr %s4327, 8
      %s4329 = scalar_lea.vmem %s3, %s4328
      // Predicated region
      $region33: #{my_convolution_forward.1} parent=31 // pred_check
        %p4330 = pneg %p114
      $region34: #{my_convolution_forward.1} parent=31 // pred_check_branch
        %4332 = sbr.rel (%p4330) target = $region36
      $region35: #{my_convolution_forward.1} parent=31 // pred_region
        %s4333 = sadd.s32 %s18, %s19
        %s4334 = smul.u32 32, %s4333
      $region36: #{my_convolution_forward.1} parent=31 // pred_fallthru
        _
    $region32: #{my_convolution_forward.1} parent=5 // pred_fallthru
      _
    %p4335 = scmp.le.s32.totalorder 2, %s9
    // Predicated region
    $region37: #{my_convolution_forward.1} parent=5 // pred_check
      %p4336 = pneg %p4335
    $region38: #{my_convolution_forward.1} parent=5 // pred_check_branch
      %4338 = sbr.rel (%p4336) target = $region40
    $region39: #{my_convolution_forward.1} parent=5 // pred_region
      %s4339 = ssub.s32 %s9, 2
      // Predicated region
      $region41: #{my_convolution_forward.1} parent=39 // pred_check
        %p4340 = pneg %p120
      $region42: #{my_convolution_forward.1} parent=39 // pred_check_branch
        %4342 = sbr.rel (%p4340) target = $region44
      $region43: #{my_convolution_forward.1} parent=39 // pred_region
        %s4343 = sadd.s32 %s20, %s21
        %s4344 = smul.u32 32, %s4343
        %p4345 = scmp.lt.s32.totalorder %s4344, 63
        %s4346 = scalar_select %p4345, %s4344, 63
        %s4347 = smul.addr %s4346, 8
        %s4348 = scalar_lea.vmem %s3, %s4347
      $region44: #{my_convolution_forward.1} parent=39 // pred_fallthru
        _
    $region40: #{my_convolution_forward.1} parent=5 // pred_fallthru
      _
  $region6: #{my_convolution_forward.1} parent=0 // loop_footer
    %s13 = sadd.s32 1, %s9
  $region7: #{my_convolution_forward.1} parent=0 // loop_footer_branch
    %8 = sbr.rel target = $region3
  $region8: #{my_convolution_forward.1} parent=0 // loop_exit
    _

</llo_original>
